<compile_context>
chip_gen: v7x
topology: tpu7x:2x2x1
jax: 0.10.0
libtpu: 0.0.40
codegen_flags: <defaults>
</compile_context>

<pallas_src>
import math
import functools

import numpy as np
import jax
import jax.numpy as jnp
from jax import lax
from jax.experimental import pallas as pl
from jax.experimental.pallas import tpu as pltpu


def attention_block_kernel(x_ref, w_qkv_ref, b_qkv_ref, w_proj_ref, b_proj_ref,
                           o_ref, qkv_scratch, h_scratch, *, num_heads):
    """Processes a (block_b, C, T) slab of images per grid step.

    x_ref:       (block_b, C, T) f32   input (channels on sublanes, positions on lanes)
    w_qkv_ref:   (3C, C)          bf16 qkv 1x1-conv weight, rows permuted to
                                       [q_0..q_{H-1} | k_0.. | v_0..]; q rows pre-scaled
    b_qkv_ref:   (3C, 1)          f32  qkv bias (same permutation / scaling)
    w_proj_ref:  (C, C)           bf16 proj_out 1x1-conv weight
    b_proj_ref:  (C, 1)           f32  proj_out bias
    o_ref:       (block_b, C, T)  f32  output
    qkv_scratch: (3C, T)          bf16 qkv activations (bias added, cast once)
    h_scratch:   (C, T)           bf16 concatenated per-head attention outputs
    """
    block_b, C, T = x_ref.shape
    d = C // num_heads

    # Hoisted once per grid step: weight loads and bias lane-broadcasts
    # (JAX does not CSE broadcast_in_dim, so do it outside the per-image loop).
    w_qkv = w_qkv_ref[...]                                    # (3C, C) bf16
    w_proj = w_proj_ref[...]                                  # (C, C)  bf16
    b_qkv_b = jnp.broadcast_to(b_qkv_ref[...], (3 * C, T))    # (3C, T) f32
    b_proj_b = jnp.broadcast_to(b_proj_ref[...], (C, T))      # (C, T)  f32

    def per_head(h, carry):
        q0 = pl.multiple_of(h * d, d)
        k0 = pl.multiple_of(C + h * d, d)
        v0 = pl.multiple_of(2 * C + h * d, d)
        q = qkv_scratch[pl.ds(q0, d), :]                      # (d, T) bf16 (scale folded)
        k = qkv_scratch[pl.ds(k0, d), :]                      # (d, T) bf16
        v = qkv_scratch[pl.ds(v0, d), :]                      # (d, T) bf16

        # scores[t, s] = sum_c q[c, t] * k[c, s]   (MXU, f32 accumulation)
        s = lax.dot_general(q, k, (((0,), (0,)), ((), ())),
                            preferred_element_type=jnp.float32)          # (T, T) f32
        # softmax along s (f32 throughout, matching torch's .float() softmax)
        s = s - jnp.max(s, axis=-1, keepdims=True)
        p = jnp.exp(s)
        p = p * pl.reciprocal(jnp.sum(p, axis=-1, keepdims=True), approx=True)

        # out[c, t] = sum_s p[t, s] * v[c, s]
        attn = lax.dot_general(v, p.astype(jnp.bfloat16), (((1,), (1,)), ((), ())),
                               preferred_element_type=jnp.float32)       # (d, T) f32
        h_scratch[pl.ds(q0, d), :] = attn.astype(jnp.bfloat16)           # aligned bf16 store
        return carry

    def per_image(bi, carry):
        x_bf = x_ref[bi].astype(jnp.bfloat16)                 # (C, T)

        # 1x1 Conv1d == W @ x on the MXU (bf16 operands, f32 accumulation);
        # cast to bf16 exactly once after the bias add.
        qkv = lax.dot_general(w_qkv, x_bf, (((1,), (0,)), ((), ())),
                              preferred_element_type=jnp.float32)        # (3C, T) f32
        qkv_scratch[...] = (qkv + b_qkv_b).astype(jnp.bfloat16)

        lax.fori_loop(0, num_heads, per_head, None, unroll=True)

        proj = lax.dot_general(w_proj, h_scratch[...], (((1,), (0,)), ((), ())),
                               preferred_element_type=jnp.float32)       # (C, T) f32
        # Deferred residual read from the VMEM-resident input block.
        o_ref[bi] = x_ref[bi] + (proj + b_proj_b)
        return carry

    lax.fori_loop(0, block_b, per_image, None)


def _pick_block_b(b, max_block=8):
    """Largest block that keeps the grid length even and >= 2 (v7x dual-TC
    friendly); falls back to the largest divisor of b otherwise."""
    for blk in range(min(b, max_block), 0, -1):
        if b % blk == 0 and (b // blk) >= 2 and (b // blk) % 2 == 0:
            return blk
    for blk in range(min(b, max_block), 0, -1):
        if b % blk == 0:
            return blk
    return 1


def attention_block(x_nchw, params, num_heads, *, block_b=None):
    """x_nchw: (b, c, *spatial) float32, like the PyTorch module input."""
    b, c, *spatial = x_nchw.shape
    T = int(np.prod(spatial))
    assert c % num_heads == 0
    d = c // num_heads
    if block_b is None:
        block_b = _pick_block_b(b)
    assert b % block_b == 0

    x = x_nchw.reshape(b, c, T)        # contiguous reshape: no HBM transpose

    # Permute qkv-conv rows from per-head interleaved [q_h|k_h|v_h] to
    # [q_0..q_{H-1} | k_0..k_{H-1} | v_0..v_{H-1}] and fold the softmax scale
    # (scale*scale = 1/sqrt(d)) into the q rows.  Constant work on weights only.
    perm = np.arange(3 * c).reshape(num_heads, 3, d).transpose(1, 0, 2).reshape(-1)
    row_scale = np.concatenate([np.full((c,), 1.0 / math.sqrt(d), np.float32),
                                np.ones((2 * c,), np.float32)])
    w_qkv_p = (params["w_qkv"][perm] * row_scale[:, None]).astype(jnp.bfloat16)   # (3C, C)
    b_qkv_p = (params["b_qkv"][perm] * row_scale).reshape(3 * c, 1).astype(jnp.float32)
    w_proj = params["w_proj"].astype(jnp.bfloat16)                                # (C, C)
    b_proj = params["b_proj"].reshape(c, 1).astype(jnp.float32)

    # Derived VMEM budget: double-buffered in/out blocks + weights + bf16
    # scratch slabs + unrolled per-head (T, T) f32 temporaries, with headroom.
    # Clamped to <= 32 MiB so it stays well inside v7x's 64 MiB per-TC VMEM.
    io_bytes = 2 * 2 * block_b * c * T * 4                    # in + out, double-buffered
    weight_bytes = 2 * (3 * c * c * 2 + c * c * 2 + 3 * c * 4 + c * 4)
    scratch_bytes = (3 * c * T + c * T) * 2                   # bf16 scratch slabs
    temp_bytes = num_heads * T * T * 4                        # unrolled head score temps
    vmem_limit = int((io_bytes + weight_bytes + scratch_bytes + temp_bytes) * 1.5)
    vmem_limit = min(max(vmem_limit, 16 * 1024 * 1024), 32 * 1024 * 1024)

    kernel = functools.partial(attention_block_kernel, num_heads=num_heads)
    out = pl.pallas_call(
        kernel,
        out_shape=jax.ShapeDtypeStruct((b, c, T), jnp.float32),
        grid=(b // block_b,),
        in_specs=[
            pl.BlockSpec((block_b, c, T), lambda i: (i, 0, 0)),
            pl.BlockSpec((3 * c, c), lambda i: (0, 0)),
            pl.BlockSpec((3 * c, 1), lambda i: (0, 0)),
            pl.BlockSpec((c, c), lambda i: (0, 0)),
            pl.BlockSpec((c, 1), lambda i: (0, 0)),
        ],
        out_specs=pl.BlockSpec((block_b, c, T), lambda i: (i, 0, 0)),
        scratch_shapes=[
            pltpu.VMEM((3 * c, T), jnp.bfloat16),   # qkv activations (bias added)
            pltpu.VMEM((c, T), jnp.bfloat16),       # concatenated head outputs
        ],
        compiler_params=pltpu.CompilerParams(
            dimension_semantics=("parallel",),
            vmem_limit_bytes=vmem_limit,
        ),
    )(x, w_qkv_p, b_qkv_p, w_proj, b_proj)

    return out.reshape(b, c, *spatial)


def attention_block_reference(x_nchw, params, num_heads):
    """Pure-JAX f32 reference that mirrors the PyTorch forward exactly."""
    b, c, *spatial = x_nchw.shape
    T = int(np.prod(spatial))
    x = x_nchw.reshape(b, c, T)
    qkv = jnp.einsum('oc,bct->bot', params["w_qkv"], x) + params["b_qkv"][None, :, None]
    qkv = qkv.reshape(b * num_heads, -1, T)
    ch = qkv.shape[1] // 3
    q, k, v = jnp.split(qkv, 3, axis=1)
    scale = 1 / math.sqrt(math.sqrt(ch))
    w = jnp.einsum('bct,bcs->bts', q * scale, k * scale)
    w = jax.nn.softmax(w, axis=-1)
    h = jnp.einsum('bts,bcs->bct', w, v)
    h = h.reshape(b, c, T)
    h = jnp.einsum('oc,bct->bot', params["w_proj"], h) + params["b_proj"][None, :, None]
    return (x + h).reshape(b, c, *spatial)


if __name__ == "__main__":
    # Small, deterministic config consistent with AttentionBlock(channels, num_heads).
    # T = 16*16 = 256 (lane-dense multiple of 128), head_dim = 16 (sublane-aligned).
    batch, channels, num_heads = 4, 64, 4
    spatial = (16, 16)

    key = jax.random.PRNGKey(0)
    kx, k1, k2, k3, k4 = jax.random.split(key, 5)

    x = jax.random.normal(kx, (batch, channels, *spatial), dtype=jnp.float32)

    # Conv1d(channels, 3*channels, 1): weight (3C, C, 1) -> (3C, C); bias (3C,)
    # Conv1d(channels, channels, 1):  weight (C, C, 1)  -> (C, C);  bias (C,)
    bound = 1.0 / math.sqrt(channels)
    params = {
        "w_qkv": jax.random.uniform(k1, (3 * channels, channels), jnp.float32, -bound, bound),
        "b_qkv": jax.random.uniform(k2, (3 * channels,), jnp.float32, -bound, bound),
        "w_proj": jax.random.uniform(k3, (channels, channels), jnp.float32, -bound, bound),
        "b_proj": jax.random.uniform(k4, (channels,), jnp.float32, -bound, bound),
    }

    out = attention_block(x, params, num_heads)   # block_b auto-picked (grid even, >= 2)
    out = jax.block_until_ready(out)

    ref = jax.block_until_ready(attention_block_reference(x, params, num_heads))
    # bf16 matmul operands + approx reciprocal => looser tolerance than pure f32.
    np.testing.assert_allclose(np.asarray(out), np.asarray(ref), rtol=2e-2, atol=2e-2)
    assert out.shape == x.shape and out.dtype == x.dtype

    print("KERNEL_OK")
</pallas_src>

<mosaic_0001>
module attributes {stable_mosaic.version = 11 : i64} {
  func.func @attention_block_kernel(%arg0: i32, %arg1: memref<2x64x256xf32, #tpu.memory_space<vmem>>, %arg2: memref<192x64xbf16, #tpu.memory_space<vmem>>, %arg3: memref<192x1xf32, #tpu.memory_space<vmem>>, %arg4: memref<64x64xbf16, #tpu.memory_space<vmem>>, %arg5: memref<64x1xf32, #tpu.memory_space<vmem>>, %arg6: memref<2x64x256xf32, #tpu.memory_space<vmem>>, %arg7: memref<192x256xbf16, #tpu.memory_space<vmem>>, %arg8: memref<64x256xbf16, #tpu.memory_space<vmem>>) attributes {dimension_semantics = [#tpu.dimension_semantics<parallel>], iteration_bounds = array<i64: 2>, scalar_prefetch = 0 : i64, scratch_operands = 2 : i64, tpu.core_type = #tpu.core_type<tc>, window_params = [{transform_indices = @transform_0, window_bounds = array<i64: 2, 64, 256>}, {pipeline_mode = #tpu.pipeline_mode<synchronous>, transform_indices = @transform_1, window_bounds = array<i64: 192, 64>}, {pipeline_mode = #tpu.pipeline_mode<synchronous>, transform_indices = @transform_2, window_bounds = array<i64: 192, 1>}, {pipeline_mode = #tpu.pipeline_mode<synchronous>, transform_indices = @transform_3, window_bounds = array<i64: 64, 64>}, {pipeline_mode = #tpu.pipeline_mode<synchronous>, transform_indices = @transform_4, window_bounds = array<i64: 64, 1>}, {transform_indices = @transform_5, window_bounds = array<i64: 2, 64, 256>}]} {
    %c0 = arith.constant 0 : index
    %c0_0 = arith.constant 0 : index
    %0 = vector.load %arg2[%c0, %c0_0] : memref<192x64xbf16, #tpu.memory_space<vmem>>, vector<192x64xbf16>
    %c0_1 = arith.constant 0 : index
    %c0_2 = arith.constant 0 : index
    %1 = vector.load %arg4[%c0_1, %c0_2] : memref<64x64xbf16, #tpu.memory_space<vmem>>, vector<64x64xbf16>
    %c0_3 = arith.constant 0 : index
    %c0_4 = arith.constant 0 : index
    %2 = vector.load %arg3[%c0_3, %c0_4] : memref<192x1xf32, #tpu.memory_space<vmem>>, vector<192x1xf32>
    %3 = vector.shape_cast %2 : vector<192x1xf32> to vector<192x1xf32>
    %4 = vector.broadcast %3 : vector<192x1xf32> to vector<192x256xf32>
    %c0_5 = arith.constant 0 : index
    %c0_6 = arith.constant 0 : index
    %5 = vector.load %arg5[%c0_5, %c0_6] : memref<64x1xf32, #tpu.memory_space<vmem>>, vector<64x1xf32>
    %6 = vector.shape_cast %5 : vector<64x1xf32> to vector<64x1xf32>
    %7 = vector.broadcast %6 : vector<64x1xf32> to vector<64x256xf32>
    %c0_i32 = arith.constant 0 : i32
    %c2_i32 = arith.constant 2 : i32
    %8 = arith.addi %c0_i32, %c2_i32 : i32
    %c1_i32 = arith.constant 1 : i32
    scf.for %arg9 = %c0_i32 to %8 step %c1_i32  : i32 {
      %9 = arith.index_cast %arg9 : i32 to index
      %c0_8 = arith.constant 0 : index
      %c0_9 = arith.constant 0 : index
      %10 = vector.load %arg1[%9, %c0_8, %c0_9] : memref<2x64x256xf32, #tpu.memory_space<vmem>>, vector<1x64x256xf32>
      %11 = vector.shape_cast %10 : vector<1x64x256xf32> to vector<64x256xf32>
      %12 = arith.truncf %11 : vector<64x256xf32> to vector<64x256xbf16>
      %cst = arith.constant dense<0.000000e+00> : vector<192x256xf32>
      %13 = tpu.matmul %0, %12, %cst {dimension_numbers = #tpu.dot_dimension_numbers<[1], [0], [0], [1], [0, 0, 1, 1], [], []>} : vector<192x64xbf16>, vector<64x256xbf16>, vector<192x256xf32> -> vector<192x256xf32>
      %14 = arith.addf %13, %4 : vector<192x256xf32>
      %15 = arith.truncf %14 : vector<192x256xf32> to vector<192x256xbf16>
      %c0_10 = arith.constant 0 : index
      %c0_11 = arith.constant 0 : index
      %16 = vector.load %arg7[%c0_10, %c0_11] : memref<192x256xbf16, #tpu.memory_space<vmem>>, vector<192x256xbf16>
      tpu.vector_store %arg7[%c0_10, %c0_11], %15 {strides = array<i32>} : memref<192x256xbf16, #tpu.memory_space<vmem>>, vector<192x256xbf16>,
      %c0_i32_12 = arith.constant 0 : i32
      %c16_i32 = arith.constant 16 : i32
      %17 = arith.muli %c0_i32_12, %c16_i32 : i32
      %18 = tpu.assume_multiple %17, 16 : i32
      %c16_i32_13 = arith.constant 16 : i32
      %19 = arith.muli %c0_i32_12, %c16_i32_13 : i32
      %c64_i32 = arith.constant 64 : i32
      %20 = arith.addi %c64_i32, %19 : i32
      %21 = tpu.assume_multiple %20, 16 : i32
      %c16_i32_14 = arith.constant 16 : i32
      %22 = arith.muli %c0_i32_12, %c16_i32_14 : i32
      %c128_i32 = arith.constant 128 : i32
      %23 = arith.addi %c128_i32, %22 : i32
      %24 = tpu.assume_multiple %23, 16 : i32
      %25 = arith.index_cast %18 : i32 to index
      %c0_15 = arith.constant 0 : index
      %26 = vector.load %arg7[%25, %c0_15] : memref<192x256xbf16, #tpu.memory_space<vmem>>, vector<16x256xbf16>
      %27 = arith.index_cast %21 : i32 to index
      %c0_16 = arith.constant 0 : index
      %28 = vector.load %arg7[%27, %c0_16] : memref<192x256xbf16, #tpu.memory_space<vmem>>, vector<16x256xbf16>
      %29 = arith.index_cast %24 : i32 to index
      %c0_17 = arith.constant 0 : index
      %30 = vector.load %arg7[%29, %c0_17] : memref<192x256xbf16, #tpu.memory_space<vmem>>, vector<16x256xbf16>
      %cst_18 = arith.constant dense<0.000000e+00> : vector<256x256xf32>
      %31 = tpu.matmul %26, %28, %cst_18 {dimension_numbers = #tpu.dot_dimension_numbers<[0], [0], [1], [1], [0, 1, 1, 1], [], []>} : vector<16x256xbf16>, vector<16x256xbf16>, vector<256x256xf32> -> vector<256x256xf32>
      %cst_19 = arith.constant dense<0xFF800000> : vector<256xf32>
      %32 = vector.multi_reduction <maximumf>, %31, %cst_19 [1] : vector<256x256xf32> to vector<256xf32>
      %33 = vector.shape_cast %32 : vector<256xf32> to vector<256x1xf32>
      %34 = vector.broadcast %33 : vector<256x1xf32> to vector<256x256xf32>
      %35 = arith.subf %31, %34 : vector<256x256xf32>
      %36 = math.exp %35 : vector<256x256xf32>
      %cst_20 = arith.constant dense<0.000000e+00> : vector<256xf32>
      %37 = vector.multi_reduction <add>, %36, %cst_20 [1] : vector<256x256xf32> to vector<256xf32>
      %38 = vector.shape_cast %37 : vector<256xf32> to vector<256x1xf32>
      %39 = tpu.reciprocal %38 {approx = true} : vector<256x1xf32> -> vector<256x1xf32>
      %40 = vector.broadcast %39 : vector<256x1xf32> to vector<256x256xf32>
      %41 = arith.mulf %36, %40 : vector<256x256xf32>
      %42 = arith.truncf %41 : vector<256x256xf32> to vector<256x256xbf16>
      %cst_21 = arith.constant dense<0.000000e+00> : vector<16x256xf32>
      %43 = tpu.matmul %30, %42, %cst_21 {dimension_numbers = #tpu.dot_dimension_numbers<[1], [1], [0], [0], [0, 0, 1, 0], [], []>} : vector<16x256xbf16>, vector<256x256xbf16>, vector<16x256xf32> -> vector<16x256xf32>
      %44 = arith.truncf %43 : vector<16x256xf32> to vector<16x256xbf16>
      %45 = arith.index_cast %18 : i32 to index
      %c0_22 = arith.constant 0 : index
      %46 = vector.load %arg8[%45, %c0_22] : memref<64x256xbf16, #tpu.memory_space<vmem>>, vector<16x256xbf16>
      tpu.vector_store %arg8[%45, %c0_22], %44 {strides = array<i32>} : memref<64x256xbf16, #tpu.memory_space<vmem>>, vector<16x256xbf16>,
      %c1_i32_23 = arith.constant 1 : i32
      %c16_i32_24 = arith.constant 16 : i32
      %47 = arith.muli %c1_i32_23, %c16_i32_24 : i32
      %48 = tpu.assume_multiple %47, 16 : i32
      %c16_i32_25 = arith.constant 16 : i32
      %49 = arith.muli %c1_i32_23, %c16_i32_25 : i32
      %c64_i32_26 = arith.constant 64 : i32
      %50 = arith.addi %c64_i32_26, %49 : i32
      %51 = tpu.assume_multiple %50, 16 : i32
      %c16_i32_27 = arith.constant 16 : i32
      %52 = arith.muli %c1_i32_23, %c16_i32_27 : i32
      %c128_i32_28 = arith.constant 128 : i32
      %53 = arith.addi %c128_i32_28, %52 : i32
      %54 = tpu.assume_multiple %53, 16 : i32
      %55 = arith.index_cast %48 : i32 to index
      %c0_29 = arith.constant 0 : index
      %56 = vector.load %arg7[%55, %c0_29] : memref<192x256xbf16, #tpu.memory_space<vmem>>, vector<16x256xbf16>
      %57 = arith.index_cast %51 : i32 to index
      %c0_30 = arith.constant 0 : index
      %58 = vector.load %arg7[%57, %c0_30] : memref<192x256xbf16, #tpu.memory_space<vmem>>, vector<16x256xbf16>
      %59 = arith.index_cast %54 : i32 to index
      %c0_31 = arith.constant 0 : index
      %60 = vector.load %arg7[%59, %c0_31] : memref<192x256xbf16, #tpu.memory_space<vmem>>, vector<16x256xbf16>
      %cst_32 = arith.constant dense<0.000000e+00> : vector<256x256xf32>
      %61 = tpu.matmul %56, %58, %cst_32 {dimension_numbers = #tpu.dot_dimension_numbers<[0], [0], [1], [1], [0, 1, 1, 1], [], []>} : vector<16x256xbf16>, vector<16x256xbf16>, vector<256x256xf32> -> vector<256x256xf32>
      %cst_33 = arith.constant dense<0xFF800000> : vector<256xf32>
      %62 = vector.multi_reduction <maximumf>, %61, %cst_33 [1] : vector<256x256xf32> to vector<256xf32>
      %63 = vector.shape_cast %62 : vector<256xf32> to vector<256x1xf32>
      %64 = vector.broadcast %63 : vector<256x1xf32> to vector<256x256xf32>
      %65 = arith.subf %61, %64 : vector<256x256xf32>
      %66 = math.exp %65 : vector<256x256xf32>
      %cst_34 = arith.constant dense<0.000000e+00> : vector<256xf32>
      %67 = vector.multi_reduction <add>, %66, %cst_34 [1] : vector<256x256xf32> to vector<256xf32>
      %68 = vector.shape_cast %67 : vector<256xf32> to vector<256x1xf32>
      %69 = tpu.reciprocal %68 {approx = true} : vector<256x1xf32> -> vector<256x1xf32>
      %70 = vector.broadcast %69 : vector<256x1xf32> to vector<256x256xf32>
      %71 = arith.mulf %66, %70 : vector<256x256xf32>
      %72 = arith.truncf %71 : vector<256x256xf32> to vector<256x256xbf16>
      %cst_35 = arith.constant dense<0.000000e+00> : vector<16x256xf32>
      %73 = tpu.matmul %60, %72, %cst_35 {dimension_numbers = #tpu.dot_dimension_numbers<[1], [1], [0], [0], [0, 0, 1, 0], [], []>} : vector<16x256xbf16>, vector<256x256xbf16>, vector<16x256xf32> -> vector<16x256xf32>
      %74 = arith.truncf %73 : vector<16x256xf32> to vector<16x256xbf16>
      %75 = arith.index_cast %48 : i32 to index
      %c0_36 = arith.constant 0 : index
      %76 = vector.load %arg8[%75, %c0_36] : memref<64x256xbf16, #tpu.memory_space<vmem>>, vector<16x256xbf16>
      tpu.vector_store %arg8[%75, %c0_36], %74 {strides = array<i32>} : memref<64x256xbf16, #tpu.memory_space<vmem>>, vector<16x256xbf16>,
      %c2_i32_37 = arith.constant 2 : i32
      %c16_i32_38 = arith.constant 16 : i32
      %77 = arith.muli %c2_i32_37, %c16_i32_38 : i32
      %78 = tpu.assume_multiple %77, 16 : i32
      %c16_i32_39 = arith.constant 16 : i32
      %79 = arith.muli %c2_i32_37, %c16_i32_39 : i32
      %c64_i32_40 = arith.constant 64 : i32
      %80 = arith.addi %c64_i32_40, %79 : i32
      %81 = tpu.assume_multiple %80, 16 : i32
      %c16_i32_41 = arith.constant 16 : i32
      %82 = arith.muli %c2_i32_37, %c16_i32_41 : i32
      %c128_i32_42 = arith.constant 128 : i32
      %83 = arith.addi %c128_i32_42, %82 : i32
      %84 = tpu.assume_multiple %83, 16 : i32
      %85 = arith.index_cast %78 : i32 to index
      %c0_43 = arith.constant 0 : index
      %86 = vector.load %arg7[%85, %c0_43] : memref<192x256xbf16, #tpu.memory_space<vmem>>, vector<16x256xbf16>
      %87 = arith.index_cast %81 : i32 to index
      %c0_44 = arith.constant 0 : index
      %88 = vector.load %arg7[%87, %c0_44] : memref<192x256xbf16, #tpu.memory_space<vmem>>, vector<16x256xbf16>
      %89 = arith.index_cast %84 : i32 to index
      %c0_45 = arith.constant 0 : index
      %90 = vector.load %arg7[%89, %c0_45] : memref<192x256xbf16, #tpu.memory_space<vmem>>, vector<16x256xbf16>
      %cst_46 = arith.constant dense<0.000000e+00> : vector<256x256xf32>
      %91 = tpu.matmul %86, %88, %cst_46 {dimension_numbers = #tpu.dot_dimension_numbers<[0], [0], [1], [1], [0, 1, 1, 1], [], []>} : vector<16x256xbf16>, vector<16x256xbf16>, vector<256x256xf32> -> vector<256x256xf32>
      %cst_47 = arith.constant dense<0xFF800000> : vector<256xf32>
      %92 = vector.multi_reduction <maximumf>, %91, %cst_47 [1] : vector<256x256xf32> to vector<256xf32>
      %93 = vector.shape_cast %92 : vector<256xf32> to vector<256x1xf32>
      %94 = vector.broadcast %93 : vector<256x1xf32> to vector<256x256xf32>
      %95 = arith.subf %91, %94 : vector<256x256xf32>
      %96 = math.exp %95 : vector<256x256xf32>
      %cst_48 = arith.constant dense<0.000000e+00> : vector<256xf32>
      %97 = vector.multi_reduction <add>, %96, %cst_48 [1] : vector<256x256xf32> to vector<256xf32>
      %98 = vector.shape_cast %97 : vector<256xf32> to vector<256x1xf32>
      %99 = tpu.reciprocal %98 {approx = true} : vector<256x1xf32> -> vector<256x1xf32>
      %100 = vector.broadcast %99 : vector<256x1xf32> to vector<256x256xf32>
      %101 = arith.mulf %96, %100 : vector<256x256xf32>
      %102 = arith.truncf %101 : vector<256x256xf32> to vector<256x256xbf16>
      %cst_49 = arith.constant dense<0.000000e+00> : vector<16x256xf32>
      %103 = tpu.matmul %90, %102, %cst_49 {dimension_numbers = #tpu.dot_dimension_numbers<[1], [1], [0], [0], [0, 0, 1, 0], [], []>} : vector<16x256xbf16>, vector<256x256xbf16>, vector<16x256xf32> -> vector<16x256xf32>
      %104 = arith.truncf %103 : vector<16x256xf32> to vector<16x256xbf16>
      %105 = arith.index_cast %78 : i32 to index
      %c0_50 = arith.constant 0 : index
      %106 = vector.load %arg8[%105, %c0_50] : memref<64x256xbf16, #tpu.memory_space<vmem>>, vector<16x256xbf16>
      tpu.vector_store %arg8[%105, %c0_50], %104 {strides = array<i32>} : memref<64x256xbf16, #tpu.memory_space<vmem>>, vector<16x256xbf16>,
      %c3_i32 = arith.constant 3 : i32
      %c16_i32_51 = arith.constant 16 : i32
      %107 = arith.muli %c3_i32, %c16_i32_51 : i32
      %108 = tpu.assume_multiple %107, 16 : i32
      %c16_i32_52 = arith.constant 16 : i32
      %109 = arith.muli %c3_i32, %c16_i32_52 : i32
      %c64_i32_53 = arith.constant 64 : i32
      %110 = arith.addi %c64_i32_53, %109 : i32
      %111 = tpu.assume_multiple %110, 16 : i32
      %c16_i32_54 = arith.constant 16 : i32
      %112 = arith.muli %c3_i32, %c16_i32_54 : i32
      %c128_i32_55 = arith.constant 128 : i32
      %113 = arith.addi %c128_i32_55, %112 : i32
      %114 = tpu.assume_multiple %113, 16 : i32
      %115 = arith.index_cast %108 : i32 to index
      %c0_56 = arith.constant 0 : index
      %116 = vector.load %arg7[%115, %c0_56] : memref<192x256xbf16, #tpu.memory_space<vmem>>, vector<16x256xbf16>
      %117 = arith.index_cast %111 : i32 to index
      %c0_57 = arith.constant 0 : index
      %118 = vector.load %arg7[%117, %c0_57] : memref<192x256xbf16, #tpu.memory_space<vmem>>, vector<16x256xbf16>
      %119 = arith.index_cast %114 : i32 to index
      %c0_58 = arith.constant 0 : index
      %120 = vector.load %arg7[%119, %c0_58] : memref<192x256xbf16, #tpu.memory_space<vmem>>, vector<16x256xbf16>
      %cst_59 = arith.constant dense<0.000000e+00> : vector<256x256xf32>
      %121 = tpu.matmul %116, %118, %cst_59 {dimension_numbers = #tpu.dot_dimension_numbers<[0], [0], [1], [1], [0, 1, 1, 1], [], []>} : vector<16x256xbf16>, vector<16x256xbf16>, vector<256x256xf32> -> vector<256x256xf32>
      %cst_60 = arith.constant dense<0xFF800000> : vector<256xf32>
      %122 = vector.multi_reduction <maximumf>, %121, %cst_60 [1] : vector<256x256xf32> to vector<256xf32>
      %123 = vector.shape_cast %122 : vector<256xf32> to vector<256x1xf32>
      %124 = vector.broadcast %123 : vector<256x1xf32> to vector<256x256xf32>
      %125 = arith.subf %121, %124 : vector<256x256xf32>
      %126 = math.exp %125 : vector<256x256xf32>
      %cst_61 = arith.constant dense<0.000000e+00> : vector<256xf32>
      %127 = vector.multi_reduction <add>, %126, %cst_61 [1] : vector<256x256xf32> to vector<256xf32>
      %128 = vector.shape_cast %127 : vector<256xf32> to vector<256x1xf32>
      %129 = tpu.reciprocal %128 {approx = true} : vector<256x1xf32> -> vector<256x1xf32>
      %130 = vector.broadcast %129 : vector<256x1xf32> to vector<256x256xf32>
      %131 = arith.mulf %126, %130 : vector<256x256xf32>
      %132 = arith.truncf %131 : vector<256x256xf32> to vector<256x256xbf16>
      %cst_62 = arith.constant dense<0.000000e+00> : vector<16x256xf32>
      %133 = tpu.matmul %120, %132, %cst_62 {dimension_numbers = #tpu.dot_dimension_numbers<[1], [1], [0], [0], [0, 0, 1, 0], [], []>} : vector<16x256xbf16>, vector<256x256xbf16>, vector<16x256xf32> -> vector<16x256xf32>
      %134 = arith.truncf %133 : vector<16x256xf32> to vector<16x256xbf16>
      %135 = arith.index_cast %108 : i32 to index
      %c0_63 = arith.constant 0 : index
      %136 = vector.load %arg8[%135, %c0_63] : memref<64x256xbf16, #tpu.memory_space<vmem>>, vector<16x256xbf16>
      tpu.vector_store %arg8[%135, %c0_63], %134 {strides = array<i32>} : memref<64x256xbf16, #tpu.memory_space<vmem>>, vector<16x256xbf16>,
      %c4_i32 = arith.constant 4 : i32
      %c0_64 = arith.constant 0 : index
      %c0_65 = arith.constant 0 : index
      %137 = vector.load %arg8[%c0_64, %c0_65] : memref<64x256xbf16, #tpu.memory_space<vmem>>, vector<64x256xbf16>
      %cst_66 = arith.constant dense<0.000000e+00> : vector<64x256xf32>
      %138 = tpu.matmul %1, %137, %cst_66 {dimension_numbers = #tpu.dot_dimension_numbers<[1], [0], [0], [1], [0, 0, 1, 1], [], []>} : vector<64x64xbf16>, vector<64x256xbf16>, vector<64x256xf32> -> vector<64x256xf32>
      %139 = arith.index_cast %arg9 : i32 to index
      %c0_67 = arith.constant 0 : index
      %c0_68 = arith.constant 0 : index
      %140 = vector.load %arg1[%139, %c0_67, %c0_68] : memref<2x64x256xf32, #tpu.memory_space<vmem>>, vector<1x64x256xf32>
      %141 = vector.shape_cast %140 : vector<1x64x256xf32> to vector<64x256xf32>
      %142 = arith.addf %138, %7 : vector<64x256xf32>
      %143 = arith.addf %141, %142 : vector<64x256xf32>
      %144 = arith.index_cast %arg9 : i32 to index
      %c0_69 = arith.constant 0 : index
      %c0_70 = arith.constant 0 : index
      %145 = vector.load %arg6[%144, %c0_69, %c0_70] : memref<2x64x256xf32, #tpu.memory_space<vmem>>, vector<1x64x256xf32>
      %146 = vector.shape_cast %145 : vector<1x64x256xf32> to vector<64x256xf32>
      %147 = vector.shape_cast %143 : vector<64x256xf32> to vector<1x64x256xf32>
      tpu.vector_store %arg6[%144, %c0_69, %c0_70], %147 {strides = array<i32>} : memref<2x64x256xf32, #tpu.memory_space<vmem>>, vector<1x64x256xf32>,
    }
    %c2_i32_7 = arith.constant 2 : i32
    return
  }
  func.func @transform_0(%arg0: i32) -> (i32, i32, i32) {
    %c0_i32 = arith.constant 0 : i32
    %c0_i32_0 = arith.constant 0 : i32
    %c0_i32_1 = arith.constant 0 : i32
    return %arg0, %c0_i32, %c0_i32_0 : i32, i32, i32
  }
  func.func @transform_1(%arg0: i32) -> (i32, i32) {
    %c0_i32 = arith.constant 0 : i32
    %c0_i32_0 = arith.constant 0 : i32
    %c0_i32_1 = arith.constant 0 : i32
    return %c0_i32, %c0_i32_0 : i32, i32
  }
  func.func @transform_2(%arg0: i32) -> (i32, i32) {
    %c0_i32 = arith.constant 0 : i32
    %c0_i32_0 = arith.constant 0 : i32
    %c0_i32_1 = arith.constant 0 : i32
    return %c0_i32, %c0_i32_0 : i32, i32
  }
  func.func @transform_3(%arg0: i32) -> (i32, i32) {
    %c0_i32 = arith.constant 0 : i32
    %c0_i32_0 = arith.constant 0 : i32
    %c0_i32_1 = arith.constant 0 : i32
    return %c0_i32, %c0_i32_0 : i32, i32
  }
  func.func @transform_4(%arg0: i32) -> (i32, i32) {
    %c0_i32 = arith.constant 0 : i32
    %c0_i32_0 = arith.constant 0 : i32
    %c0_i32_1 = arith.constant 0 : i32
    return %c0_i32, %c0_i32_0 : i32, i32
  }
  func.func @transform_5(%arg0: i32) -> (i32, i32, i32) {
    %c0_i32 = arith.constant 0 : i32
    %c0_i32_0 = arith.constant 0 : i32
    %c0_i32_1 = arith.constant 0 : i32
    return %arg0, %c0_i32, %c0_i32_0 : i32, i32, i32
  }
}

</mosaic_0001>

<llo_original>
// kernel: tpu_custom_call.1
$region0: #{tpu_custom_call.1}
  #allocation0 [shape = 'u32[]', space=smem, size = 0x4, offset = 0x4, fixed_abs, tag = 'smem constant byte address 0x4 - core index']
  #allocation1 [shape = 'u32[144,128]{1,0:T(1,128)}', space=vmem, size = 0x12000, scoped, tag = 'internal scratch']
  #allocation2 [shape = 'bf16[192,256]{1,0:T(16,128)(2,1)}', space=vmem, size = 0x18000, scoped, tag = 'scratch operand']
  #allocation3 [shape = 'bf16[64,256]{1,0:T(16,128)(2,1)}', space=vmem, size = 0x8000, scoped, tag = 'scratch operand']
  %s0 = inlined_call_operand.hbm [shape: f32[4,64,256], index: 0, kind: input, shape index: {}]
  %s1 = inlined_call_operand.vmem [shape: bf16[192,64], index: 1, kind: input, shape index: {}]
  %s2 = inlined_call_operand.vmem [shape: f32[192,1], index: 2, kind: input, shape index: {}]
  %s3 = inlined_call_operand.vmem [shape: bf16[64,64], index: 3, kind: input, shape index: {}]
  %s4 = inlined_call_operand.vmem [shape: f32[64,1], index: 4, kind: input, shape index: {}]
  %s5 = inlined_call_operand.hbm [shape: f32[4,64,256], index: 5, kind: output, shape index: {}]
  %s6 = sld [smem:[#allocation0]]
  $region64: #{tpu_custom_call.1} parent=0
    _
  %s8 = ssub.s32 1, %s6
  %s9 = scalar_select 0, %s8, %s6
  $region1: #{tpu_custom_call.1} parent=0
    #allocation4 [shape = 'u8[262144]{0}', space=vmem, size = 0x40000, scoped, tag = 'input window, operand 0']
    #allocation5 [shape = 's32[2]{0}', space=sflag, size = 0x8, scoped, tag = 'scoped memory for tpu_custom_call.1']
    #allocation6 [shape = 's32[2]{0}', space=sflag, size = 0x8, scoped, tag = 'scoped memory for tpu_custom_call.1']
    #allocation7 [shape = 'u8[262144]{0}', space=vmem, size = 0x40000, scoped, tag = 'output window, operand 0']
    %10 = vsyncpa [#allocation5], 0
    %s11 = scalar_lea.sflag [#allocation5], 1
    %12 = vsyncpa %s11, 0
    %13 = vsyncpa [#allocation6], 0
    %s14 = scalar_lea.sflag [#allocation6], 1
    %15 = vsyncpa %s14, 0
    loop: start=0, step=1, limit=4
    $region2: #{tpu_custom_call.1} parent=1 // loop_pre_header
      _
    $region3: #{tpu_custom_call.1} parent=1 // loop_header
      %s17 = sphi 0, %s21
      %p18 = scmp.ge.s32.totalorder %s17, 4
      %s27 = sphi 0, %s29
      %s30 = sphi 0, %s27
      %s31 = sphi 0, %s30
      %s47 = sphi 0, %s31
      %s51 = sphi 0, %s51
      %s53 = sphi 0, %s51
      %s54 = sphi 0, %s53
      %s68 = sphi 0, %s54
      %s72 = sphi 0, %s72
      %s74 = sphi 0, %s72
      %s75 = sphi 0, %s74
      %s89 = sphi 0, %s75
      %s93 = sphi 0, %s93
      %s95 = sphi 0, %s93
      %s96 = sphi 0, %s95
      %s110 = sphi 0, %s96
      %s114 = sphi 0, %s114
      %s116 = sphi 0, %s114
      %s117 = sphi 0, %s116
      %s131 = sphi 0, %s117
      %s137 = sphi 0, %s139
      %s140 = sphi 0, %s137
      %s141 = sphi 0, %s140
      %s157 = sphi 0, %s141
    $region4: #{tpu_custom_call.1} parent=1 // loop_header_branch
      %20 = sbr.rel (%p18) target = $region8
    $region5: #{tpu_custom_call.1} parent=1 // loop_body
      %s22 = ssub.s32 %s17, 1
      %s23 = ssub.s32 %s17, 2
      %s24 = sadd.s32 %s17, 1
      %s25 = ssub.s32 %s17, %s24
      %p26 = scmp.eq.s32.totalorder %s25, 0
      %s28 = sadd.s32 %s27, 1
      %s29 = scalar_select %p26, %s27, %s28
      %p32 = pneg %p26
      %p33 = scmp.eq.s32.totalorder %s17, 1
      %p34 = por %p32, %p33
      %p35 = scmp.ne.s32.totalorder %s27, %s30
      %p36 = scmp.eq.s32.totalorder %s17, 0
      %p37 = por %p35, %p36
      %p38 = scmp.ne.s32.totalorder %s27, %s30
      %p39 = scmp.eq.s32.totalorder %s22, 1
      %p40 = por %p38, %p39
      %p41 = scmp.ne.s32.totalorder %s30, %s31
      %p42 = scmp.eq.s32.totalorder %s22, 0
      %p43 = por %p41, %p42
      %p44 = scmp.ne.s32.totalorder %s30, %s31
      %p45 = scmp.eq.s32.totalorder %s23, 1
      %p46 = por %p44, %p45
      %p48 = scmp.ne.s32.totalorder %s31, %s47
      %p49 = scmp.eq.s32.totalorder %s23, 0
      %p50 = por %p48, %p49
      %s52 = sadd.s32 %s51, 1
      %p55 = scmp.eq.s32.totalorder %s17, 1
      %p56 = scmp.ne.s32.totalorder %s51, %s53
      %p57 = scmp.eq.s32.totalorder %s17, 0
      %p58 = por %p56, %p57
      %p59 = scmp.ne.s32.totalorder %s51, %s53
      %p60 = scmp.eq.s32.totalorder %s22, 1
      %p61 = por %p59, %p60
      %p62 = scmp.ne.s32.totalorder %s53, %s54
      %p63 = scmp.eq.s32.totalorder %s22, 0
      %p64 = por %p62, %p63
      %p65 = scmp.ne.s32.totalorder %s53, %s54
      %p66 = scmp.eq.s32.totalorder %s23, 1
      %p67 = por %p65, %p66
      %p69 = scmp.ne.s32.totalorder %s54, %s68
      %p70 = scmp.eq.s32.totalorder %s23, 0
      %p71 = por %p69, %p70
      %s73 = sadd.s32 %s72, 1
      %p76 = scmp.eq.s32.totalorder %s17, 1
      %p77 = scmp.ne.s32.totalorder %s72, %s74
      %p78 = scmp.eq.s32.totalorder %s17, 0
      %p79 = por %p77, %p78
      %p80 = scmp.ne.s32.totalorder %s72, %s74
      %p81 = scmp.eq.s32.totalorder %s22, 1
      %p82 = por %p80, %p81
      %p83 = scmp.ne.s32.totalorder %s74, %s75
      %p84 = scmp.eq.s32.totalorder %s22, 0
      %p85 = por %p83, %p84
      %p86 = scmp.ne.s32.totalorder %s74, %s75
      %p87 = scmp.eq.s32.totalorder %s23, 1
      %p88 = por %p86, %p87
      %p90 = scmp.ne.s32.totalorder %s75, %s89
      %p91 = scmp.eq.s32.totalorder %s23, 0
      %p92 = por %p90, %p91
      %s94 = sadd.s32 %s93, 1
      %p97 = scmp.eq.s32.totalorder %s17, 1
      %p98 = scmp.ne.s32.totalorder %s93, %s95
      %p99 = scmp.eq.s32.totalorder %s17, 0
      %p100 = por %p98, %p99
      %p101 = scmp.ne.s32.totalorder %s93, %s95
      %p102 = scmp.eq.s32.totalorder %s22, 1
      %p103 = por %p101, %p102
      %p104 = scmp.ne.s32.totalorder %s95, %s96
      %p105 = scmp.eq.s32.totalorder %s22, 0
      %p106 = por %p104, %p105
      %p107 = scmp.ne.s32.totalorder %s95, %s96
      %p108 = scmp.eq.s32.totalorder %s23, 1
      %p109 = por %p107, %p108
      %p111 = scmp.ne.s32.totalorder %s96, %s110
      %p112 = scmp.eq.s32.totalorder %s23, 0
      %p113 = por %p111, %p112
      %s115 = sadd.s32 %s114, 1
      %p118 = scmp.eq.s32.totalorder %s17, 1
      %p119 = scmp.ne.s32.totalorder %s114, %s116
      %p120 = scmp.eq.s32.totalorder %s17, 0
      %p121 = por %p119, %p120
      %p122 = scmp.ne.s32.totalorder %s114, %s116
      %p123 = scmp.eq.s32.totalorder %s22, 1
      %p124 = por %p122, %p123
      %p125 = scmp.ne.s32.totalorder %s116, %s117
      %p126 = scmp.eq.s32.totalorder %s22, 0
      %p127 = por %p125, %p126
      %p128 = scmp.ne.s32.totalorder %s116, %s117
      %p129 = scmp.eq.s32.totalorder %s23, 1
      %p130 = por %p128, %p129
      %p132 = scmp.ne.s32.totalorder %s117, %s131
      %p133 = scmp.eq.s32.totalorder %s23, 0
      %p134 = por %p132, %p133
      %s135 = ssub.s32 %s17, %s24
      %p136 = scmp.eq.s32.totalorder %s135, 0
      %s138 = sadd.s32 %s137, 1
      %s139 = scalar_select %p136, %s137, %s138
      %p142 = pneg %p136
      %p143 = scmp.eq.s32.totalorder %s17, 1
      %p144 = por %p142, %p143
      %p145 = scmp.ne.s32.totalorder %s137, %s140
      %p146 = scmp.eq.s32.totalorder %s17, 0
      %p147 = por %p145, %p146
      %p148 = scmp.ne.s32.totalorder %s137, %s140
      %p149 = scmp.eq.s32.totalorder %s22, 1
      %p150 = por %p148, %p149
      %p151 = scmp.ne.s32.totalorder %s140, %s141
      %p152 = scmp.eq.s32.totalorder %s22, 0
      %p153 = por %p151, %p152
      %p154 = scmp.ne.s32.totalorder %s140, %s141
      %p155 = scmp.eq.s32.totalorder %s23, 1
      %p156 = por %p154, %p155
      %p158 = scmp.ne.s32.totalorder %s141, %s157
      %p159 = scmp.eq.s32.totalorder %s23, 0
      %p160 = por %p158, %p159
      %p161 = scmp.le.s32.totalorder 1, %s17
      %p162 = scmp.lt.s32.totalorder %s17, 3
      %p163 = pnand %p161, %p162
      %p164 = pneg %p163
      // Predicated region
      $region9: #{tpu_custom_call.1} parent=5 // pred_check
        _
      $region10: #{tpu_custom_call.1} parent=5 // pred_check_branch
        %166 = sbr.rel (%p163) target = $region12
      $region11: #{tpu_custom_call.1} parent=5 // pred_region
        %s167 = ssub.s32 %s17, 1
        // Predicated region
        $region13: #{tpu_custom_call.1} parent=11 // pred_check
          %p168 = pneg %p64
        $region14: #{tpu_custom_call.1} parent=11 // pred_check_branch
          %170 = sbr.rel (%p168) target = $region16
        $region15: #{tpu_custom_call.1} parent=11 // pred_region
          _
        $region16: #{tpu_custom_call.1} parent=11 // pred_fallthru
          _
        // Predicated region
        $region17: #{tpu_custom_call.1} parent=11 // pred_check
          %p171 = pneg %p85
        $region18: #{tpu_custom_call.1} parent=11 // pred_check_branch
          %173 = sbr.rel (%p171) target = $region20
        $region19: #{tpu_custom_call.1} parent=11 // pred_region
          _
        $region20: #{tpu_custom_call.1} parent=11 // pred_fallthru
          _
        // Predicated region
        $region21: #{tpu_custom_call.1} parent=11 // pred_check
          %p174 = pneg %p106
        $region22: #{tpu_custom_call.1} parent=11 // pred_check_branch
          %176 = sbr.rel (%p174) target = $region24
        $region23: #{tpu_custom_call.1} parent=11 // pred_region
          _
        $region24: #{tpu_custom_call.1} parent=11 // pred_fallthru
          _
        // Predicated region
        $region25: #{tpu_custom_call.1} parent=11 // pred_check
          %p177 = pneg %p127
        $region26: #{tpu_custom_call.1} parent=11 // pred_check_branch
          %179 = sbr.rel (%p177) target = $region28
        $region27: #{tpu_custom_call.1} parent=11 // pred_region
          _
        $region28: #{tpu_custom_call.1} parent=11 // pred_fallthru
          _
      $region12: #{tpu_custom_call.1} parent=5 // pred_fallthru
        _
      %p180 = scmp.lt.s32.totalorder %s17, 2
      // Predicated region
      $region29: #{tpu_custom_call.1} parent=5 // pred_check
        %p181 = pneg %p180
      $region30: #{tpu_custom_call.1} parent=5 // pred_check_branch
        %183 = sbr.rel (%p181) target = $region32
      $region31: #{tpu_custom_call.1} parent=5 // pred_region
        // Predicated region
        $region33: #{tpu_custom_call.1} parent=31 // pred_check
          %p184 = pneg %p37
        $region34: #{tpu_custom_call.1} parent=31 // pred_check_branch
          %186 = sbr.rel (%p184) target = $region36
        $region35: #{tpu_custom_call.1} parent=31 // pred_region
          %s187 = sand.u32 %s27, 1
          %s188 = scalar_lea.sflag [#allocation5], %s187
          %s189 = sand.u32 %s27, 1
          %s190 = smul.addr %s189, 256
          %s191 = scalar_lea.vmem [#allocation4], %s190
          %s192 = smul.u32 2, %s17
          %s194 = ssub.s32 4096, 4096
          %195 = vsyncadd %s188, %s194
          %s196 = smul.addr %s192, 16
          %s197 = smul.addr %s196, 128
          %s198 = scalar_lea.hbm %s0, %s197
          %s199 = sshll.u32 %s191, 4
          %s200 = int_to_ptr.vmem [resolvable:$true] %s199
          %205 = dma.hbm_to_vmem [thread:$0]  %s198, 4096, %s200, %s188, 256, 256, 16
        $region36: #{tpu_custom_call.1} parent=31 // pred_fallthru
          _
      $region32: #{tpu_custom_call.1} parent=5 // pred_fallthru
        _
      %p206 = scmp.le.s32.totalorder 1, %s17
      %p207 = scmp.lt.s32.totalorder %s17, 3
      %p208 = pnand %p206, %p207
      %p209 = pneg %p208
      // Predicated region
      $region37: #{tpu_custom_call.1} parent=5 // pred_check
        _
      $region38: #{tpu_custom_call.1} parent=5 // pred_check_branch
        %211 = sbr.rel (%p208) target = $region40
      $region39: #{tpu_custom_call.1} parent=5 // pred_region
        %s212 = ssub.s32 %s17, 1
        %s213 = sand.u32 %s30, 1
        %s214 = scalar_lea.sflag [#allocation5], %s213
        %s215 = sand.u32 %s30, 1
        %s216 = smul.addr %s215, 256
        %s217 = scalar_lea.vmem [#allocation4], %s216
        // Predicated region
        $region41: #{tpu_custom_call.1} parent=39 // pred_check
          %p218 = pneg %p43
        $region42: #{tpu_custom_call.1} parent=39 // pred_check_branch
          %220 = sbr.rel (%p218) target = $region44
        $region43: #{tpu_custom_call.1} parent=39 // pred_region
          %221 = dma.done %s214, 4096
        $region44: #{tpu_custom_call.1} parent=39 // pred_fallthru
          _
        %s222 = sand.u32 %s30, 1
        %s223 = scalar_lea.sflag [#allocation5], %s222
        %s224 = sand.u32 %s30, 1
        %s225 = smul.addr %s224, 256
        %s226 = scalar_lea.vmem [#allocation4], %s225
        %p227 = pneg %p43
        %p228 = pneg %p40
        %p229 = pneg %p64
        %p230 = pneg %p61
        %p231 = pneg %p85
        %p232 = pneg %p82
        %p233 = pneg %p106
        %p234 = pneg %p103
        %p235 = pneg %p127
        %p236 = pneg %p124
        %p237 = pneg %p153
        %p238 = pneg %p150
        %s239 = sand.u32 %s140, 1
        %s240 = scalar_lea.sflag [#allocation6], %s239
        %s241 = sand.u32 %s140, 1
        %s242 = smul.addr %s241, 256
        %s243 = scalar_lea.vmem [#allocation7], %s242
        %s244 = smul.u32 2, %s22
        %s245 = smul.u32 2, %s22
        %v247 = vld [vmem:[%s1] sm:$0xf]
        %v248 = vld [vmem:[%s1 + $0x4] sm:$0xf]
        %v249 = vld [vmem:[%s1 + $0x8] sm:$0xf]
        %v250 = vld [vmem:[%s1 + $0xc] sm:$0xf]
        %v251 = vld [vmem:[%s1 + $0x10] sm:$0xf]
        %v252 = vld [vmem:[%s1 + $0x14] sm:$0xf]
        %v253 = vld [vmem:[%s1 + $0x18] sm:$0xf]
        %v254 = vld [vmem:[%s1 + $0x1c] sm:$0xf]
        %v255 = vld [vmem:[%s1 + $0x20] sm:$0xf]
        %v256 = vld [vmem:[%s1 + $0x24] sm:$0xf]
        %v257 = vld [vmem:[%s1 + $0x28] sm:$0xf]
        %v258 = vld [vmem:[%s1 + $0x2c] sm:$0xf]
        %v259 = vld [vmem:[%s1 + $0x30] sm:$0xf]
        %v260 = vld [vmem:[%s1 + $0x34] sm:$0xf]
        %v261 = vld [vmem:[%s1 + $0x38] sm:$0xf]
        %v262 = vld [vmem:[%s1 + $0x3c] sm:$0xf]
        %v263 = vld [vmem:[%s1 + $0x40] sm:$0xf]
        %v264 = vld [vmem:[%s1 + $0x44] sm:$0xf]
        %v265 = vld [vmem:[%s1 + $0x48] sm:$0xf]
        %v266 = vld [vmem:[%s1 + $0x4c] sm:$0xf]
        %v267 = vld [vmem:[%s1 + $0x50] sm:$0xf]
        %v268 = vld [vmem:[%s1 + $0x54] sm:$0xf]
        %v269 = vld [vmem:[%s1 + $0x58] sm:$0xf]
        %v270 = vld [vmem:[%s1 + $0x5c] sm:$0xf]
        %v271 = vld [vmem:[%s3] sm:$0xf]
        %v272 = vld [vmem:[%s3 + $0x4] sm:$0xf]
        %v273 = vld [vmem:[%s3 + $0x8] sm:$0xf]
        %v274 = vld [vmem:[%s3 + $0xc] sm:$0xf]
        %v275 = vld [vmem:[%s3 + $0x10] sm:$0xf]
        %v276 = vld [vmem:[%s3 + $0x14] sm:$0xf]
        %v277 = vld [vmem:[%s3 + $0x18] sm:$0xf]
        %v278 = vld [vmem:[%s3 + $0x1c] sm:$0xf]
        %v279 = vld [vmem:[%s2] sm:$0xff]
        %v280 = vld [vmem:[%s2 + $0x8] sm:$0xff]
        %v281 = vld [vmem:[%s2 + $0x10] sm:$0xff]
        %v282 = vld [vmem:[%s2 + $0x18] sm:$0xff]
        %v283 = vld [vmem:[%s2 + $0x20] sm:$0xff]
        %v284 = vld [vmem:[%s2 + $0x28] sm:$0xff]
        %v285 = vld [vmem:[%s2 + $0x30] sm:$0xff]
        %v286 = vld [vmem:[%s2 + $0x38] sm:$0xff]
        %v287 = vld [vmem:[%s2 + $0x40] sm:$0xff]
        %v288 = vld [vmem:[%s2 + $0x48] sm:$0xff]
        %v289 = vld [vmem:[%s2 + $0x50] sm:$0xff]
        %v290 = vld [vmem:[%s2 + $0x58] sm:$0xff]
        %v291 = vld [vmem:[%s2 + $0x60] sm:$0xff]
        %v292 = vld [vmem:[%s2 + $0x68] sm:$0xff]
        %v293 = vld [vmem:[%s2 + $0x70] sm:$0xff]
        %v294 = vld [vmem:[%s2 + $0x78] sm:$0xff]
        %v295 = vld [vmem:[%s2 + $0x80] sm:$0xff]
        %v296 = vld [vmem:[%s2 + $0x88] sm:$0xff]
        %v297 = vld [vmem:[%s2 + $0x90] sm:$0xff]
        %v298 = vld [vmem:[%s2 + $0x98] sm:$0xff]
        %v299 = vld [vmem:[%s2 + $0xa0] sm:$0xff]
        %v300 = vld [vmem:[%s2 + $0xa8] sm:$0xff]
        %v301 = vld [vmem:[%s2 + $0xb0] sm:$0xff]
        %v302 = vld [vmem:[%s2 + $0xb8] sm:$0xff]
        %304 = vset.pattern.permute.xlu0 0
        %305 = vperm.xlu0 %304, %v279
        %v306 = vpop.permute.xlu0 %305
        %309 = vset.pattern.permute.xlu0 0
        %310 = vperm.xlu0 %309, %v280
        %v311 = vpop.permute.xlu0 %310
        %314 = vset.pattern.permute.xlu0 0
        %315 = vperm.xlu0 %314, %v281
        %v316 = vpop.permute.xlu0 %315
        %319 = vset.pattern.permute.xlu0 0
        %320 = vperm.xlu0 %319, %v282
        %v321 = vpop.permute.xlu0 %320
        %324 = vset.pattern.permute.xlu0 0
        %325 = vperm.xlu0 %324, %v283
        %v326 = vpop.permute.xlu0 %325
        %329 = vset.pattern.permute.xlu0 0
        %330 = vperm.xlu0 %329, %v284
        %v331 = vpop.permute.xlu0 %330
        %334 = vset.pattern.permute.xlu0 0
        %335 = vperm.xlu0 %334, %v285
        %v336 = vpop.permute.xlu0 %335
        %339 = vset.pattern.permute.xlu0 0
        %340 = vperm.xlu0 %339, %v286
        %v341 = vpop.permute.xlu0 %340
        %344 = vset.pattern.permute.xlu0 0
        %345 = vperm.xlu0 %344, %v287
        %v346 = vpop.permute.xlu0 %345
        %349 = vset.pattern.permute.xlu0 0
        %350 = vperm.xlu0 %349, %v288
        %v351 = vpop.permute.xlu0 %350
        %354 = vset.pattern.permute.xlu0 0
        %355 = vperm.xlu0 %354, %v289
        %v356 = vpop.permute.xlu0 %355
        %359 = vset.pattern.permute.xlu0 0
        %360 = vperm.xlu0 %359, %v290
        %v361 = vpop.permute.xlu0 %360
        %364 = vset.pattern.permute.xlu0 0
        %365 = vperm.xlu0 %364, %v291
        %v366 = vpop.permute.xlu0 %365
        %369 = vset.pattern.permute.xlu0 0
        %370 = vperm.xlu0 %369, %v292
        %v371 = vpop.permute.xlu0 %370
        %374 = vset.pattern.permute.xlu0 0
        %375 = vperm.xlu0 %374, %v293
        %v376 = vpop.permute.xlu0 %375
        %379 = vset.pattern.permute.xlu0 0
        %380 = vperm.xlu0 %379, %v294
        %v381 = vpop.permute.xlu0 %380
        %384 = vset.pattern.permute.xlu0 0
        %385 = vperm.xlu0 %384, %v295
        %v386 = vpop.permute.xlu0 %385
        %389 = vset.pattern.permute.xlu0 0
        %390 = vperm.xlu0 %389, %v296
        %v391 = vpop.permute.xlu0 %390
        %394 = vset.pattern.permute.xlu0 0
        %395 = vperm.xlu0 %394, %v297
        %v396 = vpop.permute.xlu0 %395
        %399 = vset.pattern.permute.xlu0 0
        %400 = vperm.xlu0 %399, %v298
        %v401 = vpop.permute.xlu0 %400
        %404 = vset.pattern.permute.xlu0 0
        %405 = vperm.xlu0 %404, %v299
        %v406 = vpop.permute.xlu0 %405
        %409 = vset.pattern.permute.xlu0 0
        %410 = vperm.xlu0 %409, %v300
        %v411 = vpop.permute.xlu0 %410
        %414 = vset.pattern.permute.xlu0 0
        %415 = vperm.xlu0 %414, %v301
        %v416 = vpop.permute.xlu0 %415
        %419 = vset.pattern.permute.xlu0 0
        %420 = vperm.xlu0 %419, %v302
        %v421 = vpop.permute.xlu0 %420
        %v423 = vld [vmem:[%s4] sm:$0xff]
        %v424 = vld [vmem:[%s4 + $0x8] sm:$0xff]
        %v425 = vld [vmem:[%s4 + $0x10] sm:$0xff]
        %v426 = vld [vmem:[%s4 + $0x18] sm:$0xff]
        %v427 = vld [vmem:[%s4 + $0x20] sm:$0xff]
        %v428 = vld [vmem:[%s4 + $0x28] sm:$0xff]
        %v429 = vld [vmem:[%s4 + $0x30] sm:$0xff]
        %v430 = vld [vmem:[%s4 + $0x38] sm:$0xff]
        %432 = vset.pattern.permute.xlu0 0
        %433 = vperm.xlu0 %432, %v423
        %v434 = vpop.permute.xlu0 %433
        %437 = vset.pattern.permute.xlu0 0
        %438 = vperm.xlu0 %437, %v424
        %v439 = vpop.permute.xlu0 %438
        %442 = vset.pattern.permute.xlu0 0
        %443 = vperm.xlu0 %442, %v425
        %v444 = vpop.permute.xlu0 %443
        %447 = vset.pattern.permute.xlu0 0
        %448 = vperm.xlu0 %447, %v426
        %v449 = vpop.permute.xlu0 %448
        %452 = vset.pattern.permute.xlu0 0
        %453 = vperm.xlu0 %452, %v427
        %v454 = vpop.permute.xlu0 %453
        %457 = vset.pattern.permute.xlu0 0
        %458 = vperm.xlu0 %457, %v428
        %v459 = vpop.permute.xlu0 %458
        %462 = vset.pattern.permute.xlu0 0
        %463 = vperm.xlu0 %462, %v429
        %v464 = vpop.permute.xlu0 %463
        %467 = vset.pattern.permute.xlu0 0
        %468 = vperm.xlu0 %467, %v430
        %v469 = vpop.permute.xlu0 %468
        loop: start=0, step=1, limit=2
        $region45: #{tpu_custom_call.1} parent=39 // loop_pre_header
          _
        $region46: #{tpu_custom_call.1} parent=39 // loop_header
          %s472 = sphi 0, %s476
          %p473 = scmp.ge.s32.totalorder %s472, 2
        $region47: #{tpu_custom_call.1} parent=39 // loop_header_branch
          %475 = sbr.rel (%p473) target = $region51
        $region48: #{tpu_custom_call.1} parent=39 // loop_body
          %s477 = smul.u32 %s472, 16
          %s478 = smul.addr %s477, 8
          %s479 = scalar_lea.vmem %s217, %s478 [#allocation4]
          %v480 = vld [vmem:[%s479] sm:$0xff]
          %v481 = vld [vmem:[%s479 + $0x8] sm:$0xff]
          %v482 = vld [vmem:[%s479 + $0x10] sm:$0xff]
          %v483 = vld [vmem:[%s479 + $0x18] sm:$0xff]
          %v484 = vld [vmem:[%s479 + $0x20] sm:$0xff]
          %v485 = vld [vmem:[%s479 + $0x28] sm:$0xff]
          %v486 = vld [vmem:[%s479 + $0x30] sm:$0xff]
          %v487 = vld [vmem:[%s479 + $0x38] sm:$0xff]
          %v488 = vld [vmem:[%s479 + $0x40] sm:$0xff]
          %v489 = vld [vmem:[%s479 + $0x48] sm:$0xff]
          %v490 = vld [vmem:[%s479 + $0x50] sm:$0xff]
          %v491 = vld [vmem:[%s479 + $0x58] sm:$0xff]
          %v492 = vld [vmem:[%s479 + $0x60] sm:$0xff]
          %v493 = vld [vmem:[%s479 + $0x68] sm:$0xff]
          %v494 = vld [vmem:[%s479 + $0x70] sm:$0xff]
          %v495 = vld [vmem:[%s479 + $0x78] sm:$0xff]
          %v496 = vpack.c.bf16 %v482, %v480
          %v497 = vpack.c.bf16 %v483, %v481
          %v498 = vpack.c.bf16 %v486, %v484
          %v499 = vpack.c.bf16 %v487, %v485
          %v500 = vpack.c.bf16 %v490, %v488
          %v501 = vpack.c.bf16 %v491, %v489
          %v502 = vpack.c.bf16 %v494, %v492
          %v503 = vpack.c.bf16 %v495, %v493
          %v528 = vunpack.c.l.b16 %v247
          %v529 = vunpack.c.l.b16 %v248
          %v530 = vunpack.c.l.b16 %v249
          %v531 = vunpack.c.l.b16 %v250
          %v532 = vunpack.c.l.b16 %v251
          %v533 = vunpack.c.l.b16 %v252
          %v534 = vunpack.c.l.b16 %v253
          %v535 = vunpack.c.l.b16 %v254
          %v536 = vunpack.c.l.b16 %v255
          %v537 = vunpack.c.l.b16 %v256
          %v538 = vunpack.c.l.b16 %v257
          %v539 = vunpack.c.l.b16 %v258
          %v540 = vunpack.c.l.b16 %v259
          %v541 = vunpack.c.l.b16 %v260
          %v542 = vunpack.c.l.b16 %v261
          %v543 = vunpack.c.l.b16 %v262
          %v544 = vunpack.c.l.b16 %v263
          %v545 = vunpack.c.l.b16 %v264
          %v546 = vunpack.c.l.b16 %v265
          %v547 = vunpack.c.l.b16 %v266
          %v548 = vunpack.c.l.b16 %v267
          %v549 = vunpack.c.l.b16 %v268
          %v550 = vunpack.c.l.b16 %v269
          %v551 = vunpack.c.l.b16 %v270
          %v552 = vpack.c.b16 %v529, %v528
          %v553 = vpack.c.b16 %v531, %v530
          %v554 = vpack.c.b16 %v533, %v532
          %v555 = vpack.c.b16 %v535, %v534
          %v556 = vpack.c.b16 %v537, %v536
          %v557 = vpack.c.b16 %v539, %v538
          %v558 = vpack.c.b16 %v541, %v540
          %v559 = vpack.c.b16 %v543, %v542
          %v560 = vpack.c.b16 %v545, %v544
          %v561 = vpack.c.b16 %v547, %v546
          %v562 = vpack.c.b16 %v549, %v548
          %v563 = vpack.c.b16 %v551, %v550
          %vm564 = vcmask 523264
          %v566 = vsel %vm564, %v552, 0
          %v569 = vsel %vm564, %v553, 0
          %v572 = vsel %vm564, %v554, 0
          %v575 = vsel %vm564, %v555, 0
          %v578 = vsel %vm564, %v556, 0
          %v581 = vsel %vm564, %v557, 0
          %v584 = vsel %vm564, %v558, 0
          %v587 = vsel %vm564, %v559, 0
          %v590 = vsel %vm564, %v560, 0
          %v593 = vsel %vm564, %v561, 0
          %v596 = vsel %vm564, %v562, 0
          %v599 = vsel %vm564, %v563, 0
          %601 = vmatprep.subr.bf16.mxu0 %v497
          %602 = vmatpush1.bf16.msra.mxu0 %v496
          %603 = vmatprep.subr.bf16.mxu0 %v499
          %604 = vmatpush1.bf16.msra.mxu0 %v498
          %605 = vmatprep.subr.bf16.mxu0 %v501
          %606 = vmatpush1.bf16.msra.mxu0 %v500
          %607 = vmatprep.subr.bf16.mxu0 %v503
          %608 = vmatpush1.bf16.msra.mxu0 %v502
          %609 = vmatprep.subr.bf16.mxu0 0
          %610 = vmatpush1.bf16.msra.mxu0 0
          %611 = vmatprep.subr.bf16.mxu0 0
          %612 = vmatpush1.bf16.msra.mxu0 0
          %613 = vmatprep.subr.bf16.mxu0 0
          %614 = vmatpush1.bf16.msra.mxu0 0
          %615 = vmatprep.subr.bf16.mxu0 0
          %616 = vmatpush1.bf16.msra.mxu0 0
          %617 = vmatprep.subr.bf16.mxu0 0
          %618 = vmatpush1.bf16.msra.mxu0 0
          %619 = vmatprep.subr.bf16.mxu0 0
          %620 = vmatpush1.bf16.msra.mxu0 0
          %621 = vmatprep.subr.bf16.mxu0 0
          %622 = vmatpush1.bf16.msra.mxu0 0
          %623 = vmatprep.subr.bf16.mxu0 0
          %624 = vmatpush1.bf16.msra.mxu0 0
          %625 = vmatprep.subr.bf16.mxu0 0
          %626 = vmatpush1.bf16.msra.mxu0 0
          %627 = vmatprep.subr.bf16.mxu0 0
          %628 = vmatpush1.bf16.msra.mxu0 0
          %629 = vmatprep.subr.bf16.mxu0 0
          %630 = vmatpush1.bf16.msra.mxu0 0
          %631 = vmatprep.subr.bf16.mxu0 0
          %632 = vmatpush1.bf16.msra.mxu0 0
          %633 = vmatprep.mubr.bf16.mxu0 0
          %634 = vmatmul.mubr.bf16.gmra.mrb[0].mxu0 %v566
          %v635 = vpop.f32.mrb[0].mxu0
          %v636 = vadd.f32 %v306, %v635
          %v637 = vpop.f32.mrb[0].mxu0
          %v638 = vadd.f32 %v306, %v637
          %v639 = vpop.f32.mrb[0].mxu0
          %v640 = vadd.f32 %v311, %v639
          %v641 = vpop.f32.mrb[0].mxu0
          %v642 = vadd.f32 %v311, %v641
          %643 = vmatprep.mubr.bf16.mxu0 0
          %644 = vmatmul.mubr.bf16.gmra.mrb[0].mxu0 %v569
          %v645 = vpop.f32.mrb[0].mxu0
          %v646 = vadd.f32 %v316, %v645
          %v647 = vpop.f32.mrb[0].mxu0
          %v648 = vadd.f32 %v316, %v647
          %v649 = vpop.f32.mrb[0].mxu0
          %v650 = vadd.f32 %v321, %v649
          %v651 = vpop.f32.mrb[0].mxu0
          %v652 = vadd.f32 %v321, %v651
          %653 = vmatprep.mubr.bf16.mxu0 0
          %654 = vmatmul.mubr.bf16.gmra.mrb[0].mxu0 %v572
          %v655 = vpop.f32.mrb[0].mxu0
          %v656 = vadd.f32 %v326, %v655
          %v657 = vpop.f32.mrb[0].mxu0
          %v658 = vadd.f32 %v326, %v657
          %v659 = vpop.f32.mrb[0].mxu0
          %v660 = vadd.f32 %v331, %v659
          %v661 = vpop.f32.mrb[0].mxu0
          %v662 = vadd.f32 %v331, %v661
          %663 = vmatprep.mubr.bf16.mxu0 0
          %664 = vmatmul.mubr.bf16.gmra.mrb[0].mxu0 %v575
          %v665 = vpop.f32.mrb[0].mxu0
          %v666 = vadd.f32 %v336, %v665
          %v667 = vpop.f32.mrb[0].mxu0
          %v668 = vadd.f32 %v336, %v667
          %v669 = vpop.f32.mrb[0].mxu0
          %v670 = vadd.f32 %v341, %v669
          %v671 = vpop.f32.mrb[0].mxu0
          %v672 = vadd.f32 %v341, %v671
          %673 = vmatprep.mubr.bf16.mxu0 0
          %674 = vmatmul.mubr.bf16.gmra.mrb[0].mxu0 %v578
          %v675 = vpop.f32.mrb[0].mxu0
          %v676 = vadd.f32 %v346, %v675
          %v677 = vpop.f32.mrb[0].mxu0
          %v678 = vadd.f32 %v346, %v677
          %v679 = vpop.f32.mrb[0].mxu0
          %v680 = vadd.f32 %v351, %v679
          %v681 = vpop.f32.mrb[0].mxu0
          %v682 = vadd.f32 %v351, %v681
          %683 = vmatprep.mubr.bf16.mxu0 0
          %684 = vmatmul.mubr.bf16.gmra.mrb[0].mxu0 %v581
          %v685 = vpop.f32.mrb[0].mxu0
          %v686 = vadd.f32 %v356, %v685
          %v687 = vpop.f32.mrb[0].mxu0
          %v688 = vadd.f32 %v356, %v687
          %v689 = vpop.f32.mrb[0].mxu0
          %v690 = vadd.f32 %v361, %v689
          %v691 = vpop.f32.mrb[0].mxu0
          %v692 = vadd.f32 %v361, %v691
          %693 = vmatprep.mubr.bf16.mxu0 0
          %694 = vmatmul.mubr.bf16.gmra.mrb[0].mxu0 %v584
          %v695 = vpop.f32.mrb[0].mxu0
          %v696 = vadd.f32 %v366, %v695
          %v697 = vpop.f32.mrb[0].mxu0
          %v698 = vadd.f32 %v366, %v697
          %v699 = vpop.f32.mrb[0].mxu0
          %v700 = vadd.f32 %v371, %v699
          %v701 = vpop.f32.mrb[0].mxu0
          %v702 = vadd.f32 %v371, %v701
          %703 = vmatprep.mubr.bf16.mxu0 0
          %704 = vmatmul.mubr.bf16.gmra.mrb[0].mxu0 %v587
          %v705 = vpop.f32.mrb[0].mxu0
          %v706 = vadd.f32 %v376, %v705
          %v707 = vpop.f32.mrb[0].mxu0
          %v708 = vadd.f32 %v376, %v707
          %v709 = vpop.f32.mrb[0].mxu0
          %v710 = vadd.f32 %v381, %v709
          %v711 = vpop.f32.mrb[0].mxu0
          %v712 = vadd.f32 %v381, %v711
          %713 = vmatprep.mubr.bf16.mxu0 0
          %714 = vmatmul.mubr.bf16.gmra.mrb[0].mxu0 %v590
          %v715 = vpop.f32.mrb[0].mxu0
          %v716 = vadd.f32 %v386, %v715
          %v717 = vpop.f32.mrb[0].mxu0
          %v718 = vadd.f32 %v386, %v717
          %v719 = vpop.f32.mrb[0].mxu0
          %v720 = vadd.f32 %v391, %v719
          %v721 = vpop.f32.mrb[0].mxu0
          %v722 = vadd.f32 %v391, %v721
          %723 = vmatprep.mubr.bf16.mxu0 0
          %724 = vmatmul.mubr.bf16.gmra.mrb[0].mxu0 %v593
          %v725 = vpop.f32.mrb[0].mxu0
          %v726 = vadd.f32 %v396, %v725
          %v727 = vpop.f32.mrb[0].mxu0
          %v728 = vadd.f32 %v396, %v727
          %v729 = vpop.f32.mrb[0].mxu0
          %v730 = vadd.f32 %v401, %v729
          %v731 = vpop.f32.mrb[0].mxu0
          %v732 = vadd.f32 %v401, %v731
          %733 = vmatprep.mubr.bf16.mxu0 0
          %734 = vmatmul.mubr.bf16.gmra.mrb[0].mxu0 %v596
          %v735 = vpop.f32.mrb[0].mxu0
          %v736 = vadd.f32 %v406, %v735
          %v737 = vpop.f32.mrb[0].mxu0
          %v738 = vadd.f32 %v406, %v737
          %v739 = vpop.f32.mrb[0].mxu0
          %v740 = vadd.f32 %v411, %v739
          %v741 = vpop.f32.mrb[0].mxu0
          %v742 = vadd.f32 %v411, %v741
          %743 = vmatprep.mubr.bf16.mxu0 0
          %744 = vmatmul.mubr.bf16.gmra.mrb[0].mxu0 %v599
          %v745 = vpop.f32.mrb[0].mxu0
          %v746 = vadd.f32 %v416, %v745
          %v747 = vpop.f32.mrb[0].mxu0
          %v748 = vadd.f32 %v416, %v747
          %v749 = vpop.f32.mrb[0].mxu0
          %v750 = vadd.f32 %v421, %v749
          %v751 = vpop.f32.mrb[0].mxu0
          %v752 = vadd.f32 %v421, %v751
          %753 = vdwg.mxu0
          %v754 = vpack.c.bf16 %v640, %v636
          %v755 = vpack.c.bf16 %v642, %v638
          %v756 = vpack.c.bf16 %v650, %v646
          %v757 = vpack.c.bf16 %v652, %v648
          %v758 = vpack.c.bf16 %v660, %v656
          %v759 = vpack.c.bf16 %v662, %v658
          %v760 = vpack.c.bf16 %v670, %v666
          %v761 = vpack.c.bf16 %v672, %v668
          %v762 = vpack.c.bf16 %v680, %v676
          %v763 = vpack.c.bf16 %v682, %v678
          %v764 = vpack.c.bf16 %v690, %v686
          %v765 = vpack.c.bf16 %v692, %v688
          %v766 = vpack.c.bf16 %v700, %v696
          %v767 = vpack.c.bf16 %v702, %v698
          %v768 = vpack.c.bf16 %v710, %v706
          %v769 = vpack.c.bf16 %v712, %v708
          %v770 = vpack.c.bf16 %v720, %v716
          %v771 = vpack.c.bf16 %v722, %v718
          %v772 = vpack.c.bf16 %v730, %v726
          %v773 = vpack.c.bf16 %v732, %v728
          %v774 = vpack.c.bf16 %v740, %v736
          %v775 = vpack.c.bf16 %v742, %v738
          %v776 = vpack.c.bf16 %v750, %v746
          %v777 = vpack.c.bf16 %v752, %v748
          %778 = vst [vmem:[#allocation2] sm:$0xff] %v754
          %779 = vst [vmem:[#allocation2 + $0x8] sm:$0xff] %v755
          %780 = vst [vmem:[#allocation2 + $0x10] sm:$0xff] %v756
          %781 = vst [vmem:[#allocation2 + $0x18] sm:$0xff] %v757
          %782 = vst [vmem:[#allocation2 + $0x20] sm:$0xff] %v758
          %783 = vst [vmem:[#allocation2 + $0x28] sm:$0xff] %v759
          %784 = vst [vmem:[#allocation2 + $0x30] sm:$0xff] %v760
          %785 = vst [vmem:[#allocation2 + $0x38] sm:$0xff] %v761
          %786 = vst [vmem:[#allocation2 + $0x40] sm:$0xff] %v762
          %787 = vst [vmem:[#allocation2 + $0x48] sm:$0xff] %v763
          %788 = vst [vmem:[#allocation2 + $0x50] sm:$0xff] %v764
          %789 = vst [vmem:[#allocation2 + $0x58] sm:$0xff] %v765
          %790 = vst [vmem:[#allocation2 + $0x60] sm:$0xff] %v766
          %791 = vst [vmem:[#allocation2 + $0x68] sm:$0xff] %v767
          %792 = vst [vmem:[#allocation2 + $0x70] sm:$0xff] %v768
          %793 = vst [vmem:[#allocation2 + $0x78] sm:$0xff] %v769
          %794 = vst [vmem:[#allocation2 + $0x80] sm:$0xff] %v770
          %795 = vst [vmem:[#allocation2 + $0x88] sm:$0xff] %v771
          %796 = vst [vmem:[#allocation2 + $0x90] sm:$0xff] %v772
          %797 = vst [vmem:[#allocation2 + $0x98] sm:$0xff] %v773
          %798 = vst [vmem:[#allocation2 + $0xa0] sm:$0xff] %v774
          %799 = vst [vmem:[#allocation2 + $0xa8] sm:$0xff] %v775
          %800 = vst [vmem:[#allocation2 + $0xb0] sm:$0xff] %v776
          %801 = vst [vmem:[#allocation2 + $0xb8] sm:$0xff] %v777
          %s802 = smul.u32 0, 2
          %s803 = smul.addr %s802, 8
          %s804 = scalar_lea.vmem [#allocation2], %s803
          %v805 = vld [vmem:[%s804] sm:$0xff]
          %v806 = vld [vmem:[%s804 + $0x8] sm:$0xff]
          %s807 = smul.u32 4, 2
          %s808 = smul.addr %s807, 8
          %s809 = scalar_lea.vmem [#allocation2], %s808
          %v810 = vld [vmem:[%s809] sm:$0xff]
          %v811 = vld [vmem:[%s809 + $0x8] sm:$0xff]
          %s812 = smul.u32 8, 2
          %s813 = smul.addr %s812, 8
          %s814 = scalar_lea.vmem [#allocation2], %s813
          %v815 = vld [vmem:[%s814] sm:$0xff]
          %v816 = vld [vmem:[%s814 + $0x8] sm:$0xff]
          %817 = vxpose.xlu0.c.b16.start [1/8] %v805, 128
          %818 = vxpose.xlu0.c.b16.cont [2/8] 0, 128
          %819 = vxpose.xlu0.c.b16.cont [3/8] 0, 128
          %820 = vxpose.xlu0.c.b16.cont [4/8] 0, 128
          %821 = vxpose.xlu0.c.b16.cont [5/8] 0, 128
          %822 = vxpose.xlu0.c.b16.cont [6/8] 0, 128
          %823 = vxpose.xlu0.c.b16.cont [7/8] 0, 128
          %824 = vxpose.xlu0.c.b16.end [8/8] 0, 128
          %v825 = vpop.trf.xlu0
          %v826 = vpop.trf.xlu0
          %v827 = vpop.trf.xlu0
          %v828 = vpop.trf.xlu0
          %v829 = vpop.trf.xlu0
          %v830 = vpop.trf.xlu0
          %v831 = vpop.trf.xlu0
          %v832 = vpop.trf.xlu0
          %833 = vxpose.xlu0.c.b16.start [1/8] %v806, 128
          %834 = vxpose.xlu0.c.b16.cont [2/8] 0, 128
          %835 = vxpose.xlu0.c.b16.cont [3/8] 0, 128
          %836 = vxpose.xlu0.c.b16.cont [4/8] 0, 128
          %837 = vxpose.xlu0.c.b16.cont [5/8] 0, 128
          %838 = vxpose.xlu0.c.b16.cont [6/8] 0, 128
          %839 = vxpose.xlu0.c.b16.cont [7/8] 0, 128
          %840 = vxpose.xlu0.c.b16.end [8/8] 0, 128
          %v841 = vpop.trf.xlu0
          %v842 = vpop.trf.xlu0
          %v843 = vpop.trf.xlu0
          %v844 = vpop.trf.xlu0
          %v845 = vpop.trf.xlu0
          %v846 = vpop.trf.xlu0
          %v847 = vpop.trf.xlu0
          %v848 = vpop.trf.xlu0
          %vm849 = vcmask 130048
          %v851 = vsel %vm849, %v825, 0
          %v854 = vsel %vm849, %v826, 0
          %v857 = vsel %vm849, %v827, 0
          %v860 = vsel %vm849, %v828, 0
          %v863 = vsel %vm849, %v829, 0
          %v866 = vsel %vm849, %v830, 0
          %v869 = vsel %vm849, %v831, 0
          %v872 = vsel %vm849, %v832, 0
          %v875 = vsel %vm849, %v841, 0
          %v878 = vsel %vm849, %v842, 0
          %v881 = vsel %vm849, %v843, 0
          %v884 = vsel %vm849, %v844, 0
          %v887 = vsel %vm849, %v845, 0
          %v890 = vsel %vm849, %v846, 0
          %v893 = vsel %vm849, %v847, 0
          %v896 = vsel %vm849, %v848, 0
          %898 = vmatprep.subr.bf16.mxu0 %v811
          %899 = vmatpush1.bf16.msra.mxu0 %v810
          %900 = vmatprep.subr.bf16.mxu0 0
          %901 = vmatpush1.bf16.msra.mxu0 0
          %902 = vmatprep.subr.bf16.mxu0 0
          %903 = vmatpush1.bf16.msra.mxu0 0
          %904 = vmatprep.subr.bf16.mxu0 0
          %905 = vmatpush1.bf16.msra.mxu0 0
          %906 = vmatprep.subr.bf16.mxu0 0
          %907 = vmatpush1.bf16.msra.mxu0 0
          %908 = vmatprep.subr.bf16.mxu0 0
          %909 = vmatpush1.bf16.msra.mxu0 0
          %910 = vmatprep.subr.bf16.mxu0 0
          %911 = vmatpush1.bf16.msra.mxu0 0
          %912 = vmatprep.subr.bf16.mxu0 0
          %913 = vmatpush1.bf16.msra.mxu0 0
          %914 = vmatprep.subr.bf16.mxu0 0
          %915 = vmatpush1.bf16.msra.mxu0 0
          %916 = vmatprep.subr.bf16.mxu0 0
          %917 = vmatpush1.bf16.msra.mxu0 0
          %918 = vmatprep.subr.bf16.mxu0 0
          %919 = vmatpush1.bf16.msra.mxu0 0
          %920 = vmatprep.subr.bf16.mxu0 0
          %921 = vmatpush1.bf16.msra.mxu0 0
          %922 = vmatprep.subr.bf16.mxu0 0
          %923 = vmatpush1.bf16.msra.mxu0 0
          %924 = vmatprep.subr.bf16.mxu0 0
          %925 = vmatpush1.bf16.msra.mxu0 0
          %926 = vmatprep.subr.bf16.mxu0 0
          %927 = vmatpush1.bf16.msra.mxu0 0
          %928 = vmatprep.subr.bf16.mxu0 0
          %929 = vmatpush1.bf16.msra.mxu0 0
          %930 = vmatprep.mubr.bf16.mxu0 0
          %931 = vmatmul.mubr.bf16.gmra.mrb[0].mxu0 %v851
          %v932 = vpop.f32.mrb[0].mxu0
          %v933 = vadd.f32 0.0, %v932
          %v934 = vpop.f32.mrb[0].mxu0
          %v935 = vadd.f32 0.0, %v934
          %v936 = vpop.f32.mrb[0].mxu0
          %v937 = vadd.f32 0.0, %v936
          %v938 = vpop.f32.mrb[0].mxu0
          %v939 = vadd.f32 0.0, %v938
          %940 = vmatprep.mubr.bf16.mxu0 0
          %941 = vmatmul.mubr.bf16.gmra.mrb[0].mxu0 %v854
          %v942 = vpop.f32.mrb[0].mxu0
          %v943 = vadd.f32 0.0, %v942
          %v944 = vpop.f32.mrb[0].mxu0
          %v945 = vadd.f32 0.0, %v944
          %v946 = vpop.f32.mrb[0].mxu0
          %v947 = vadd.f32 0.0, %v946
          %v948 = vpop.f32.mrb[0].mxu0
          %v949 = vadd.f32 0.0, %v948
          %950 = vmatprep.mubr.bf16.mxu0 0
          %951 = vmatmul.mubr.bf16.gmra.mrb[0].mxu0 %v857
          %v952 = vpop.f32.mrb[0].mxu0
          %v953 = vadd.f32 0.0, %v952
          %v954 = vpop.f32.mrb[0].mxu0
          %v955 = vadd.f32 0.0, %v954
          %v956 = vpop.f32.mrb[0].mxu0
          %v957 = vadd.f32 0.0, %v956
          %v958 = vpop.f32.mrb[0].mxu0
          %v959 = vadd.f32 0.0, %v958
          %960 = vmatprep.mubr.bf16.mxu0 0
          %961 = vmatmul.mubr.bf16.gmra.mrb[0].mxu0 %v860
          %v962 = vpop.f32.mrb[0].mxu0
          %v963 = vadd.f32 0.0, %v962
          %v964 = vpop.f32.mrb[0].mxu0
          %v965 = vadd.f32 0.0, %v964
          %v966 = vpop.f32.mrb[0].mxu0
          %v967 = vadd.f32 0.0, %v966
          %v968 = vpop.f32.mrb[0].mxu0
          %v969 = vadd.f32 0.0, %v968
          %970 = vmatprep.mubr.bf16.mxu0 0
          %971 = vmatmul.mubr.bf16.gmra.mrb[0].mxu0 %v863
          %v972 = vpop.f32.mrb[0].mxu0
          %v973 = vadd.f32 0.0, %v972
          %v974 = vpop.f32.mrb[0].mxu0
          %v975 = vadd.f32 0.0, %v974
          %v976 = vpop.f32.mrb[0].mxu0
          %v977 = vadd.f32 0.0, %v976
          %v978 = vpop.f32.mrb[0].mxu0
          %v979 = vadd.f32 0.0, %v978
          %980 = vmatprep.mubr.bf16.mxu0 0
          %981 = vmatmul.mubr.bf16.gmra.mrb[0].mxu0 %v866
          %v982 = vpop.f32.mrb[0].mxu0
          %v983 = vadd.f32 0.0, %v982
          %v984 = vpop.f32.mrb[0].mxu0
          %v985 = vadd.f32 0.0, %v984
          %v986 = vpop.f32.mrb[0].mxu0
          %v987 = vadd.f32 0.0, %v986
          %v988 = vpop.f32.mrb[0].mxu0
          %v989 = vadd.f32 0.0, %v988
          %990 = vmatprep.mubr.bf16.mxu0 0
          %991 = vmatmul.mubr.bf16.gmra.mrb[0].mxu0 %v869
          %v992 = vpop.f32.mrb[0].mxu0
          %v993 = vadd.f32 0.0, %v992
          %v994 = vpop.f32.mrb[0].mxu0
          %v995 = vadd.f32 0.0, %v994
          %v996 = vpop.f32.mrb[0].mxu0
          %v997 = vadd.f32 0.0, %v996
          %v998 = vpop.f32.mrb[0].mxu0
          %v999 = vadd.f32 0.0, %v998
          %1000 = vmatprep.mubr.bf16.mxu0 0
          %1001 = vmatmul.mubr.bf16.gmra.mrb[0].mxu0 %v872
          %v1002 = vpop.f32.mrb[0].mxu0
          %v1003 = vadd.f32 0.0, %v1002
          %v1004 = vpop.f32.mrb[0].mxu0
          %v1005 = vadd.f32 0.0, %v1004
          %v1006 = vpop.f32.mrb[0].mxu0
          %v1007 = vadd.f32 0.0, %v1006
          %v1008 = vpop.f32.mrb[0].mxu0
          %v1009 = vadd.f32 0.0, %v1008
          %1010 = vmatprep.mubr.bf16.mxu0 0
          %1011 = vmatmul.mubr.bf16.gmra.mrb[0].mxu0 %v875
          %v1012 = vpop.f32.mrb[0].mxu0
          %v1013 = vadd.f32 0.0, %v1012
          %v1014 = vpop.f32.mrb[0].mxu0
          %v1015 = vadd.f32 0.0, %v1014
          %v1016 = vpop.f32.mrb[0].mxu0
          %v1017 = vadd.f32 0.0, %v1016
          %v1018 = vpop.f32.mrb[0].mxu0
          %v1019 = vadd.f32 0.0, %v1018
          %1020 = vmatprep.mubr.bf16.mxu0 0
          %1021 = vmatmul.mubr.bf16.gmra.mrb[0].mxu0 %v878
          %v1022 = vpop.f32.mrb[0].mxu0
          %v1023 = vadd.f32 0.0, %v1022
          %v1024 = vpop.f32.mrb[0].mxu0
          %v1025 = vadd.f32 0.0, %v1024
          %v1026 = vpop.f32.mrb[0].mxu0
          %v1027 = vadd.f32 0.0, %v1026
          %v1028 = vpop.f32.mrb[0].mxu0
          %v1029 = vadd.f32 0.0, %v1028
          %1030 = vmatprep.mubr.bf16.mxu0 0
          %1031 = vmatmul.mubr.bf16.gmra.mrb[0].mxu0 %v881
          %v1032 = vpop.f32.mrb[0].mxu0
          %v1033 = vadd.f32 0.0, %v1032
          %v1034 = vpop.f32.mrb[0].mxu0
          %v1035 = vadd.f32 0.0, %v1034
          %v1036 = vpop.f32.mrb[0].mxu0
          %v1037 = vadd.f32 0.0, %v1036
          %v1038 = vpop.f32.mrb[0].mxu0
          %v1039 = vadd.f32 0.0, %v1038
          %1040 = vmatprep.mubr.bf16.mxu0 0
          %1041 = vmatmul.mubr.bf16.gmra.mrb[0].mxu0 %v884
          %v1042 = vpop.f32.mrb[0].mxu0
          %v1043 = vadd.f32 0.0, %v1042
          %v1044 = vpop.f32.mrb[0].mxu0
          %v1045 = vadd.f32 0.0, %v1044
          %v1046 = vpop.f32.mrb[0].mxu0
          %v1047 = vadd.f32 0.0, %v1046
          %v1048 = vpop.f32.mrb[0].mxu0
          %v1049 = vadd.f32 0.0, %v1048
          %1050 = vmatprep.mubr.bf16.mxu0 0
          %1051 = vmatmul.mubr.bf16.gmra.mrb[0].mxu0 %v887
          %v1052 = vpop.f32.mrb[0].mxu0
          %v1053 = vadd.f32 0.0, %v1052
          %v1054 = vpop.f32.mrb[0].mxu0
          %v1055 = vadd.f32 0.0, %v1054
          %v1056 = vpop.f32.mrb[0].mxu0
          %v1057 = vadd.f32 0.0, %v1056
          %v1058 = vpop.f32.mrb[0].mxu0
          %v1059 = vadd.f32 0.0, %v1058
          %1060 = vmatprep.mubr.bf16.mxu0 0
          %1061 = vmatmul.mubr.bf16.gmra.mrb[0].mxu0 %v890
          %v1062 = vpop.f32.mrb[0].mxu0
          %v1063 = vadd.f32 0.0, %v1062
          %v1064 = vpop.f32.mrb[0].mxu0
          %v1065 = vadd.f32 0.0, %v1064
          %v1066 = vpop.f32.mrb[0].mxu0
          %v1067 = vadd.f32 0.0, %v1066
          %v1068 = vpop.f32.mrb[0].mxu0
          %v1069 = vadd.f32 0.0, %v1068
          %1070 = vmatprep.mubr.bf16.mxu0 0
          %1071 = vmatmul.mubr.bf16.gmra.mrb[0].mxu0 %v893
          %v1072 = vpop.f32.mrb[0].mxu0
          %v1073 = vadd.f32 0.0, %v1072
          %v1074 = vpop.f32.mrb[0].mxu0
          %v1075 = vadd.f32 0.0, %v1074
          %v1076 = vpop.f32.mrb[0].mxu0
          %v1077 = vadd.f32 0.0, %v1076
          %v1078 = vpop.f32.mrb[0].mxu0
          %v1079 = vadd.f32 0.0, %v1078
          %1080 = vmatprep.mubr.bf16.mxu0 0
          %1081 = vmatmul.mubr.bf16.gmra.mrb[0].mxu0 %v896
          %v1082 = vpop.f32.mrb[0].mxu0
          %v1083 = vadd.f32 0.0, %v1082
          %v1084 = vpop.f32.mrb[0].mxu0
          %v1085 = vadd.f32 0.0, %v1084
          %v1086 = vpop.f32.mrb[0].mxu0
          %v1087 = vadd.f32 0.0, %v1086
          %v1088 = vpop.f32.mrb[0].mxu0
          %v1089 = vadd.f32 0.0, %v1088
          %1090 = vdwg.mxu0
          %v1091 = vmax.f32 %v933, %v935
          %1092 = vmax.xlane.f32.xlu0 %v1091
          %v1093 = vpop.xlane.xlu0 %1092
          %v1094 = vmax.f32 %v937, %v939
          %1095 = vmax.xlane.f32.xlu0 %v1094
          %v1096 = vpop.xlane.xlu0 %1095
          %v1097 = vmax.f32 %v943, %v945
          %1098 = vmax.xlane.f32.xlu0 %v1097
          %v1099 = vpop.xlane.xlu0 %1098
          %v1100 = vmax.f32 %v947, %v949
          %1101 = vmax.xlane.f32.xlu0 %v1100
          %v1102 = vpop.xlane.xlu0 %1101
          %v1103 = vmax.f32 %v953, %v955
          %1104 = vmax.xlane.f32.xlu0 %v1103
          %v1105 = vpop.xlane.xlu0 %1104
          %v1106 = vmax.f32 %v957, %v959
          %1107 = vmax.xlane.f32.xlu0 %v1106
          %v1108 = vpop.xlane.xlu0 %1107
          %v1109 = vmax.f32 %v963, %v965
          %1110 = vmax.xlane.f32.xlu0 %v1109
          %v1111 = vpop.xlane.xlu0 %1110
          %v1112 = vmax.f32 %v967, %v969
          %1113 = vmax.xlane.f32.xlu0 %v1112
          %v1114 = vpop.xlane.xlu0 %1113
          %v1115 = vmax.f32 %v973, %v975
          %1116 = vmax.xlane.f32.xlu0 %v1115
          %v1117 = vpop.xlane.xlu0 %1116
          %v1118 = vmax.f32 %v977, %v979
          %1119 = vmax.xlane.f32.xlu0 %v1118
          %v1120 = vpop.xlane.xlu0 %1119
          %v1121 = vmax.f32 %v983, %v985
          %1122 = vmax.xlane.f32.xlu0 %v1121
          %v1123 = vpop.xlane.xlu0 %1122
          %v1124 = vmax.f32 %v987, %v989
          %1125 = vmax.xlane.f32.xlu0 %v1124
          %v1126 = vpop.xlane.xlu0 %1125
          %v1127 = vmax.f32 %v993, %v995
          %1128 = vmax.xlane.f32.xlu0 %v1127
          %v1129 = vpop.xlane.xlu0 %1128
          %v1130 = vmax.f32 %v997, %v999
          %1131 = vmax.xlane.f32.xlu0 %v1130
          %v1132 = vpop.xlane.xlu0 %1131
          %v1133 = vmax.f32 %v1003, %v1005
          %1134 = vmax.xlane.f32.xlu0 %v1133
          %v1135 = vpop.xlane.xlu0 %1134
          %v1136 = vmax.f32 %v1007, %v1009
          %1137 = vmax.xlane.f32.xlu0 %v1136
          %v1138 = vpop.xlane.xlu0 %1137
          %v1139 = vmax.f32 %v1013, %v1015
          %1140 = vmax.xlane.f32.xlu0 %v1139
          %v1141 = vpop.xlane.xlu0 %1140
          %v1142 = vmax.f32 %v1017, %v1019
          %1143 = vmax.xlane.f32.xlu0 %v1142
          %v1144 = vpop.xlane.xlu0 %1143
          %v1145 = vmax.f32 %v1023, %v1025
          %1146 = vmax.xlane.f32.xlu0 %v1145
          %v1147 = vpop.xlane.xlu0 %1146
          %v1148 = vmax.f32 %v1027, %v1029
          %1149 = vmax.xlane.f32.xlu0 %v1148
          %v1150 = vpop.xlane.xlu0 %1149
          %v1151 = vmax.f32 %v1033, %v1035
          %1152 = vmax.xlane.f32.xlu0 %v1151
          %v1153 = vpop.xlane.xlu0 %1152
          %v1154 = vmax.f32 %v1037, %v1039
          %1155 = vmax.xlane.f32.xlu0 %v1154
          %v1156 = vpop.xlane.xlu0 %1155
          %v1157 = vmax.f32 %v1043, %v1045
          %1158 = vmax.xlane.f32.xlu0 %v1157
          %v1159 = vpop.xlane.xlu0 %1158
          %v1160 = vmax.f32 %v1047, %v1049
          %1161 = vmax.xlane.f32.xlu0 %v1160
          %v1162 = vpop.xlane.xlu0 %1161
          %v1163 = vmax.f32 %v1053, %v1055
          %1164 = vmax.xlane.f32.xlu0 %v1163
          %v1165 = vpop.xlane.xlu0 %1164
          %v1166 = vmax.f32 %v1057, %v1059
          %1167 = vmax.xlane.f32.xlu0 %v1166
          %v1168 = vpop.xlane.xlu0 %1167
          %v1169 = vmax.f32 %v1063, %v1065
          %1170 = vmax.xlane.f32.xlu0 %v1169
          %v1171 = vpop.xlane.xlu0 %1170
          %v1172 = vmax.f32 %v1067, %v1069
          %1173 = vmax.xlane.f32.xlu0 %v1172
          %v1174 = vpop.xlane.xlu0 %1173
          %v1175 = vmax.f32 %v1073, %v1075
          %1176 = vmax.xlane.f32.xlu0 %v1175
          %v1177 = vpop.xlane.xlu0 %1176
          %v1178 = vmax.f32 %v1077, %v1079
          %1179 = vmax.xlane.f32.xlu0 %v1178
          %v1180 = vpop.xlane.xlu0 %1179
          %v1181 = vmax.f32 %v1083, %v1085
          %1182 = vmax.xlane.f32.xlu0 %v1181
          %v1183 = vpop.xlane.xlu0 %1182
          %v1184 = vmax.f32 %v1087, %v1089
          %1185 = vmax.xlane.f32.xlu0 %v1184
          %v1186 = vpop.xlane.xlu0 %1185
          %v1187 = vsub.f32 %v933, %v1093
          %v1188 = vsub.f32 %v935, %v1093
          %v1189 = vsub.f32 %v937, %v1096
          %v1190 = vsub.f32 %v939, %v1096
          %v1191 = vsub.f32 %v943, %v1099
          %v1192 = vsub.f32 %v945, %v1099
          %v1193 = vsub.f32 %v947, %v1102
          %v1194 = vsub.f32 %v949, %v1102
          %v1195 = vsub.f32 %v953, %v1105
          %v1196 = vsub.f32 %v955, %v1105
          %v1197 = vsub.f32 %v957, %v1108
          %v1198 = vsub.f32 %v959, %v1108
          %v1199 = vsub.f32 %v963, %v1111
          %v1200 = vsub.f32 %v965, %v1111
          %v1201 = vsub.f32 %v967, %v1114
          %v1202 = vsub.f32 %v969, %v1114
          %v1203 = vsub.f32 %v973, %v1117
          %v1204 = vsub.f32 %v975, %v1117
          %v1205 = vsub.f32 %v977, %v1120
          %v1206 = vsub.f32 %v979, %v1120
          %v1207 = vsub.f32 %v983, %v1123
          %v1208 = vsub.f32 %v985, %v1123
          %v1209 = vsub.f32 %v987, %v1126
          %v1210 = vsub.f32 %v989, %v1126
          %v1211 = vsub.f32 %v993, %v1129
          %v1212 = vsub.f32 %v995, %v1129
          %v1213 = vsub.f32 %v997, %v1132
          %v1214 = vsub.f32 %v999, %v1132
          %v1215 = vsub.f32 %v1003, %v1135
          %v1216 = vsub.f32 %v1005, %v1135
          %v1217 = vsub.f32 %v1007, %v1138
          %v1218 = vsub.f32 %v1009, %v1138
          %v1219 = vsub.f32 %v1013, %v1141
          %v1220 = vsub.f32 %v1015, %v1141
          %v1221 = vsub.f32 %v1017, %v1144
          %v1222 = vsub.f32 %v1019, %v1144
          %v1223 = vsub.f32 %v1023, %v1147
          %v1224 = vsub.f32 %v1025, %v1147
          %v1225 = vsub.f32 %v1027, %v1150
          %v1226 = vsub.f32 %v1029, %v1150
          %v1227 = vsub.f32 %v1033, %v1153
          %v1228 = vsub.f32 %v1035, %v1153
          %v1229 = vsub.f32 %v1037, %v1156
          %v1230 = vsub.f32 %v1039, %v1156
          %v1231 = vsub.f32 %v1043, %v1159
          %v1232 = vsub.f32 %v1045, %v1159
          %v1233 = vsub.f32 %v1047, %v1162
          %v1234 = vsub.f32 %v1049, %v1162
          %v1235 = vsub.f32 %v1053, %v1165
          %v1236 = vsub.f32 %v1055, %v1165
          %v1237 = vsub.f32 %v1057, %v1168
          %v1238 = vsub.f32 %v1059, %v1168
          %v1239 = vsub.f32 %v1063, %v1171
          %v1240 = vsub.f32 %v1065, %v1171
          %v1241 = vsub.f32 %v1067, %v1174
          %v1242 = vsub.f32 %v1069, %v1174
          %v1243 = vsub.f32 %v1073, %v1177
          %v1244 = vsub.f32 %v1075, %v1177
          %v1245 = vsub.f32 %v1077, %v1180
          %v1246 = vsub.f32 %v1079, %v1180
          %v1247 = vsub.f32 %v1083, %v1183
          %v1248 = vsub.f32 %v1085, %v1183
          %v1249 = vsub.f32 %v1087, %v1186
          %v1250 = vsub.f32 %v1089, %v1186
          %v1251 = vmul.f32 %v1187, 1.442695
          %v1252 = vpow.pop %v1251
          %v1253 = vmul.f32 %v1188, 1.442695
          %v1254 = vpow.pop %v1253
          %v1255 = vmul.f32 %v1189, 1.442695
          %v1256 = vpow.pop %v1255
          %v1257 = vmul.f32 %v1190, 1.442695
          %v1258 = vpow.pop %v1257
          %v1259 = vmul.f32 %v1191, 1.442695
          %v1260 = vpow.pop %v1259
          %v1261 = vmul.f32 %v1192, 1.442695
          %v1262 = vpow.pop %v1261
          %v1263 = vmul.f32 %v1193, 1.442695
          %v1264 = vpow.pop %v1263
          %v1265 = vmul.f32 %v1194, 1.442695
          %v1266 = vpow.pop %v1265
          %v1267 = vmul.f32 %v1195, 1.442695
          %v1268 = vpow.pop %v1267
          %v1269 = vmul.f32 %v1196, 1.442695
          %v1270 = vpow.pop %v1269
          %v1271 = vmul.f32 %v1197, 1.442695
          %v1272 = vpow.pop %v1271
          %v1273 = vmul.f32 %v1198, 1.442695
          %v1274 = vpow.pop %v1273
          %v1275 = vmul.f32 %v1199, 1.442695
          %v1276 = vpow.pop %v1275
          %v1277 = vmul.f32 %v1200, 1.442695
          %v1278 = vpow.pop %v1277
          %v1279 = vmul.f32 %v1201, 1.442695
          %v1280 = vpow.pop %v1279
          %v1281 = vmul.f32 %v1202, 1.442695
          %v1282 = vpow.pop %v1281
          %v1283 = vmul.f32 %v1203, 1.442695
          %v1284 = vpow.pop %v1283
          %v1285 = vmul.f32 %v1204, 1.442695
          %v1286 = vpow.pop %v1285
          %v1287 = vmul.f32 %v1205, 1.442695
          %v1288 = vpow.pop %v1287
          %v1289 = vmul.f32 %v1206, 1.442695
          %v1290 = vpow.pop %v1289
          %v1291 = vmul.f32 %v1207, 1.442695
          %v1292 = vpow.pop %v1291
          %v1293 = vmul.f32 %v1208, 1.442695
          %v1294 = vpow.pop %v1293
          %v1295 = vmul.f32 %v1209, 1.442695
          %v1296 = vpow.pop %v1295
          %v1297 = vmul.f32 %v1210, 1.442695
          %v1298 = vpow.pop %v1297
          %v1299 = vmul.f32 %v1211, 1.442695
          %v1300 = vpow.pop %v1299
          %v1301 = vmul.f32 %v1212, 1.442695
          %v1302 = vpow.pop %v1301
          %v1303 = vmul.f32 %v1213, 1.442695
          %v1304 = vpow.pop %v1303
          %v1305 = vmul.f32 %v1214, 1.442695
          %v1306 = vpow.pop %v1305
          %v1307 = vmul.f32 %v1215, 1.442695
          %v1308 = vpow.pop %v1307
          %v1309 = vmul.f32 %v1216, 1.442695
          %v1310 = vpow.pop %v1309
          %v1311 = vmul.f32 %v1217, 1.442695
          %v1312 = vpow.pop %v1311
          %v1313 = vmul.f32 %v1218, 1.442695
          %v1314 = vpow.pop %v1313
          %v1315 = vmul.f32 %v1219, 1.442695
          %v1316 = vpow.pop %v1315
          %v1317 = vmul.f32 %v1220, 1.442695
          %v1318 = vpow.pop %v1317
          %v1319 = vmul.f32 %v1221, 1.442695
          %v1320 = vpow.pop %v1319
          %v1321 = vmul.f32 %v1222, 1.442695
          %v1322 = vpow.pop %v1321
          %v1323 = vmul.f32 %v1223, 1.442695
          %v1324 = vpow.pop %v1323
          %v1325 = vmul.f32 %v1224, 1.442695
          %v1326 = vpow.pop %v1325
          %v1327 = vmul.f32 %v1225, 1.442695
          %v1328 = vpow.pop %v1327
          %v1329 = vmul.f32 %v1226, 1.442695
          %v1330 = vpow.pop %v1329
          %v1331 = vmul.f32 %v1227, 1.442695
          %v1332 = vpow.pop %v1331
          %v1333 = vmul.f32 %v1228, 1.442695
          %v1334 = vpow.pop %v1333
          %v1335 = vmul.f32 %v1229, 1.442695
          %v1336 = vpow.pop %v1335
          %v1337 = vmul.f32 %v1230, 1.442695
          %v1338 = vpow.pop %v1337
          %v1339 = vmul.f32 %v1231, 1.442695
          %v1340 = vpow.pop %v1339
          %v1341 = vmul.f32 %v1232, 1.442695
          %v1342 = vpow.pop %v1341
          %v1343 = vmul.f32 %v1233, 1.442695
          %v1344 = vpow.pop %v1343
          %v1345 = vmul.f32 %v1234, 1.442695
          %v1346 = vpow.pop %v1345
          %v1347 = vmul.f32 %v1235, 1.442695
          %v1348 = vpow.pop %v1347
          %v1349 = vmul.f32 %v1236, 1.442695
          %v1350 = vpow.pop %v1349
          %v1351 = vmul.f32 %v1237, 1.442695
          %v1352 = vpow.pop %v1351
          %v1353 = vmul.f32 %v1238, 1.442695
          %v1354 = vpow.pop %v1353
          %v1355 = vmul.f32 %v1239, 1.442695
          %v1356 = vpow.pop %v1355
          %v1357 = vmul.f32 %v1240, 1.442695
          %v1358 = vpow.pop %v1357
          %v1359 = vmul.f32 %v1241, 1.442695
          %v1360 = vpow.pop %v1359
          %v1361 = vmul.f32 %v1242, 1.442695
          %v1362 = vpow.pop %v1361
          %v1363 = vmul.f32 %v1243, 1.442695
          %v1364 = vpow.pop %v1363
          %v1365 = vmul.f32 %v1244, 1.442695
          %v1366 = vpow.pop %v1365
          %v1367 = vmul.f32 %v1245, 1.442695
          %v1368 = vpow.pop %v1367
          %v1369 = vmul.f32 %v1246, 1.442695
          %v1370 = vpow.pop %v1369
          %v1371 = vmul.f32 %v1247, 1.442695
          %v1372 = vpow.pop %v1371
          %v1373 = vmul.f32 %v1248, 1.442695
          %v1374 = vpow.pop %v1373
          %v1375 = vmul.f32 %v1249, 1.442695
          %v1376 = vpow.pop %v1375
          %v1377 = vmul.f32 %v1250, 1.442695
          %v1378 = vpow.pop %v1377
          %v1379 = vadd.f32 %v1252, %v1254
          %1380 = vadd.xlane.f32.xlu0 %v1379
          %v1381 = vpop.xlane.xlu0 %1380
          %v1382 = vadd.f32 %v1256, %v1258
          %1383 = vadd.xlane.f32.xlu0 %v1382
          %v1384 = vpop.xlane.xlu0 %1383
          %v1385 = vadd.f32 %v1260, %v1262
          %1386 = vadd.xlane.f32.xlu0 %v1385
          %v1387 = vpop.xlane.xlu0 %1386
          %v1388 = vadd.f32 %v1264, %v1266
          %1389 = vadd.xlane.f32.xlu0 %v1388
          %v1390 = vpop.xlane.xlu0 %1389
          %v1391 = vadd.f32 %v1268, %v1270
          %1392 = vadd.xlane.f32.xlu0 %v1391
          %v1393 = vpop.xlane.xlu0 %1392
          %v1394 = vadd.f32 %v1272, %v1274
          %1395 = vadd.xlane.f32.xlu0 %v1394
          %v1396 = vpop.xlane.xlu0 %1395
          %v1397 = vadd.f32 %v1276, %v1278
          %1398 = vadd.xlane.f32.xlu0 %v1397
          %v1399 = vpop.xlane.xlu0 %1398
          %v1400 = vadd.f32 %v1280, %v1282
          %1401 = vadd.xlane.f32.xlu0 %v1400
          %v1402 = vpop.xlane.xlu0 %1401
          %v1403 = vadd.f32 %v1284, %v1286
          %1404 = vadd.xlane.f32.xlu0 %v1403
          %v1405 = vpop.xlane.xlu0 %1404
          %v1406 = vadd.f32 %v1288, %v1290
          %1407 = vadd.xlane.f32.xlu0 %v1406
          %v1408 = vpop.xlane.xlu0 %1407
          %v1409 = vadd.f32 %v1292, %v1294
          %1410 = vadd.xlane.f32.xlu0 %v1409
          %v1411 = vpop.xlane.xlu0 %1410
          %v1412 = vadd.f32 %v1296, %v1298
          %1413 = vadd.xlane.f32.xlu0 %v1412
          %v1414 = vpop.xlane.xlu0 %1413
          %v1415 = vadd.f32 %v1300, %v1302
          %1416 = vadd.xlane.f32.xlu0 %v1415
          %v1417 = vpop.xlane.xlu0 %1416
          %v1418 = vadd.f32 %v1304, %v1306
          %1419 = vadd.xlane.f32.xlu0 %v1418
          %v1420 = vpop.xlane.xlu0 %1419
          %v1421 = vadd.f32 %v1308, %v1310
          %1422 = vadd.xlane.f32.xlu0 %v1421
          %v1423 = vpop.xlane.xlu0 %1422
          %v1424 = vadd.f32 %v1312, %v1314
          %1425 = vadd.xlane.f32.xlu0 %v1424
          %v1426 = vpop.xlane.xlu0 %1425
          %v1427 = vadd.f32 %v1316, %v1318
          %1428 = vadd.xlane.f32.xlu0 %v1427
          %v1429 = vpop.xlane.xlu0 %1428
          %v1430 = vadd.f32 %v1320, %v1322
          %1431 = vadd.xlane.f32.xlu0 %v1430
          %v1432 = vpop.xlane.xlu0 %1431
          %v1433 = vadd.f32 %v1324, %v1326
          %1434 = vadd.xlane.f32.xlu0 %v1433
          %v1435 = vpop.xlane.xlu0 %1434
          %v1436 = vadd.f32 %v1328, %v1330
          %1437 = vadd.xlane.f32.xlu0 %v1436
          %v1438 = vpop.xlane.xlu0 %1437
          %v1439 = vadd.f32 %v1332, %v1334
          %1440 = vadd.xlane.f32.xlu0 %v1439
          %v1441 = vpop.xlane.xlu0 %1440
          %v1442 = vadd.f32 %v1336, %v1338
          %1443 = vadd.xlane.f32.xlu0 %v1442
          %v1444 = vpop.xlane.xlu0 %1443
          %v1445 = vadd.f32 %v1340, %v1342
          %1446 = vadd.xlane.f32.xlu0 %v1445
          %v1447 = vpop.xlane.xlu0 %1446
          %v1448 = vadd.f32 %v1344, %v1346
          %1449 = vadd.xlane.f32.xlu0 %v1448
          %v1450 = vpop.xlane.xlu0 %1449
          %v1451 = vadd.f32 %v1348, %v1350
          %1452 = vadd.xlane.f32.xlu0 %v1451
          %v1453 = vpop.xlane.xlu0 %1452
          %v1454 = vadd.f32 %v1352, %v1354
          %1455 = vadd.xlane.f32.xlu0 %v1454
          %v1456 = vpop.xlane.xlu0 %1455
          %v1457 = vadd.f32 %v1356, %v1358
          %1458 = vadd.xlane.f32.xlu0 %v1457
          %v1459 = vpop.xlane.xlu0 %1458
          %v1460 = vadd.f32 %v1360, %v1362
          %1461 = vadd.xlane.f32.xlu0 %v1460
          %v1462 = vpop.xlane.xlu0 %1461
          %v1463 = vadd.f32 %v1364, %v1366
          %1464 = vadd.xlane.f32.xlu0 %v1463
          %v1465 = vpop.xlane.xlu0 %1464
          %v1466 = vadd.f32 %v1368, %v1370
          %1467 = vadd.xlane.f32.xlu0 %v1466
          %v1468 = vpop.xlane.xlu0 %1467
          %v1469 = vadd.f32 %v1372, %v1374
          %1470 = vadd.xlane.f32.xlu0 %v1469
          %v1471 = vpop.xlane.xlu0 %1470
          %v1472 = vadd.f32 %v1376, %v1378
          %1473 = vadd.xlane.f32.xlu0 %v1472
          %v1474 = vpop.xlane.xlu0 %1473
          %v1475 = vrcp.pop %v1381
          %v1476 = vrcp.pop %v1384
          %v1477 = vrcp.pop %v1387
          %v1478 = vrcp.pop %v1390
          %v1479 = vrcp.pop %v1393
          %v1480 = vrcp.pop %v1396
          %v1481 = vrcp.pop %v1399
          %v1482 = vrcp.pop %v1402
          %v1483 = vrcp.pop %v1405
          %v1484 = vrcp.pop %v1408
          %v1485 = vrcp.pop %v1411
          %v1486 = vrcp.pop %v1414
          %v1487 = vrcp.pop %v1417
          %v1488 = vrcp.pop %v1420
          %v1489 = vrcp.pop %v1423
          %v1490 = vrcp.pop %v1426
          %v1491 = vrcp.pop %v1429
          %v1492 = vrcp.pop %v1432
          %v1493 = vrcp.pop %v1435
          %v1494 = vrcp.pop %v1438
          %v1495 = vrcp.pop %v1441
          %v1496 = vrcp.pop %v1444
          %v1497 = vrcp.pop %v1447
          %v1498 = vrcp.pop %v1450
          %v1499 = vrcp.pop %v1453
          %v1500 = vrcp.pop %v1456
          %v1501 = vrcp.pop %v1459
          %v1502 = vrcp.pop %v1462
          %v1503 = vrcp.pop %v1465
          %v1504 = vrcp.pop %v1468
          %v1505 = vrcp.pop %v1471
          %v1506 = vrcp.pop %v1474
          %v1507 = vmul.f32 %v1252, %v1475
          %v1508 = vmul.f32 %v1254, %v1475
          %v1509 = vmul.f32 %v1256, %v1476
          %v1510 = vmul.f32 %v1258, %v1476
          %v1511 = vmul.f32 %v1260, %v1477
          %v1512 = vmul.f32 %v1262, %v1477
          %v1513 = vmul.f32 %v1264, %v1478
          %v1514 = vmul.f32 %v1266, %v1478
          %v1515 = vmul.f32 %v1268, %v1479
          %v1516 = vmul.f32 %v1270, %v1479
          %v1517 = vmul.f32 %v1272, %v1480
          %v1518 = vmul.f32 %v1274, %v1480
          %v1519 = vmul.f32 %v1276, %v1481
          %v1520 = vmul.f32 %v1278, %v1481
          %v1521 = vmul.f32 %v1280, %v1482
          %v1522 = vmul.f32 %v1282, %v1482
          %v1523 = vmul.f32 %v1284, %v1483
          %v1524 = vmul.f32 %v1286, %v1483
          %v1525 = vmul.f32 %v1288, %v1484
          %v1526 = vmul.f32 %v1290, %v1484
          %v1527 = vmul.f32 %v1292, %v1485
          %v1528 = vmul.f32 %v1294, %v1485
          %v1529 = vmul.f32 %v1296, %v1486
          %v1530 = vmul.f32 %v1298, %v1486
          %v1531 = vmul.f32 %v1300, %v1487
          %v1532 = vmul.f32 %v1302, %v1487
          %v1533 = vmul.f32 %v1304, %v1488
          %v1534 = vmul.f32 %v1306, %v1488
          %v1535 = vmul.f32 %v1308, %v1489
          %v1536 = vmul.f32 %v1310, %v1489
          %v1537 = vmul.f32 %v1312, %v1490
          %v1538 = vmul.f32 %v1314, %v1490
          %v1539 = vmul.f32 %v1316, %v1491
          %v1540 = vmul.f32 %v1318, %v1491
          %v1541 = vmul.f32 %v1320, %v1492
          %v1542 = vmul.f32 %v1322, %v1492
          %v1543 = vmul.f32 %v1324, %v1493
          %v1544 = vmul.f32 %v1326, %v1493
          %v1545 = vmul.f32 %v1328, %v1494
          %v1546 = vmul.f32 %v1330, %v1494
          %v1547 = vmul.f32 %v1332, %v1495
          %v1548 = vmul.f32 %v1334, %v1495
          %v1549 = vmul.f32 %v1336, %v1496
          %v1550 = vmul.f32 %v1338, %v1496
          %v1551 = vmul.f32 %v1340, %v1497
          %v1552 = vmul.f32 %v1342, %v1497
          %v1553 = vmul.f32 %v1344, %v1498
          %v1554 = vmul.f32 %v1346, %v1498
          %v1555 = vmul.f32 %v1348, %v1499
          %v1556 = vmul.f32 %v1350, %v1499
          %v1557 = vmul.f32 %v1352, %v1500
          %v1558 = vmul.f32 %v1354, %v1500
          %v1559 = vmul.f32 %v1356, %v1501
          %v1560 = vmul.f32 %v1358, %v1501
          %v1561 = vmul.f32 %v1360, %v1502
          %v1562 = vmul.f32 %v1362, %v1502
          %v1563 = vmul.f32 %v1364, %v1503
          %v1564 = vmul.f32 %v1366, %v1503
          %v1565 = vmul.f32 %v1368, %v1504
          %v1566 = vmul.f32 %v1370, %v1504
          %v1567 = vmul.f32 %v1372, %v1505
          %v1568 = vmul.f32 %v1374, %v1505
          %v1569 = vmul.f32 %v1376, %v1506
          %v1570 = vmul.f32 %v1378, %v1506
          %v1571 = vpack.c.bf16 %v1509, %v1507
          %v1572 = vpack.c.bf16 %v1510, %v1508
          %v1573 = vpack.c.bf16 %v1513, %v1511
          %v1574 = vpack.c.bf16 %v1514, %v1512
          %v1575 = vpack.c.bf16 %v1517, %v1515
          %v1576 = vpack.c.bf16 %v1518, %v1516
          %v1577 = vpack.c.bf16 %v1521, %v1519
          %v1578 = vpack.c.bf16 %v1522, %v1520
          %v1579 = vpack.c.bf16 %v1525, %v1523
          %v1580 = vpack.c.bf16 %v1526, %v1524
          %v1581 = vpack.c.bf16 %v1529, %v1527
          %v1582 = vpack.c.bf16 %v1530, %v1528
          %v1583 = vpack.c.bf16 %v1533, %v1531
          %v1584 = vpack.c.bf16 %v1534, %v1532
          %v1585 = vpack.c.bf16 %v1537, %v1535
          %v1586 = vpack.c.bf16 %v1538, %v1536
          %v1587 = vpack.c.bf16 %v1541, %v1539
          %v1588 = vpack.c.bf16 %v1542, %v1540
          %v1589 = vpack.c.bf16 %v1545, %v1543
          %v1590 = vpack.c.bf16 %v1546, %v1544
          %v1591 = vpack.c.bf16 %v1549, %v1547
          %v1592 = vpack.c.bf16 %v1550, %v1548
          %v1593 = vpack.c.bf16 %v1553, %v1551
          %v1594 = vpack.c.bf16 %v1554, %v1552
          %v1595 = vpack.c.bf16 %v1557, %v1555
          %v1596 = vpack.c.bf16 %v1558, %v1556
          %v1597 = vpack.c.bf16 %v1561, %v1559
          %v1598 = vpack.c.bf16 %v1562, %v1560
          %v1599 = vpack.c.bf16 %v1565, %v1563
          %v1600 = vpack.c.bf16 %v1566, %v1564
          %v1601 = vpack.c.bf16 %v1569, %v1567
          %v1602 = vpack.c.bf16 %v1570, %v1568
          %1603 = vmatprep.subr.bf16.mxu0 %v1572
          %1604 = vmatpush1.bf16.xpose.msra.mxu0 %v1571
          %1605 = vmatprep.subr.bf16.mxu0 %v1574
          %1606 = vmatpush1.bf16.xpose.msra.mxu0 %v1573
          %1607 = vmatprep.subr.bf16.mxu0 %v1576
          %1608 = vmatpush1.bf16.xpose.msra.mxu0 %v1575
          %1609 = vmatprep.subr.bf16.mxu0 %v1578
          %1610 = vmatpush1.bf16.xpose.msra.mxu0 %v1577
          %1611 = vmatprep.subr.bf16.mxu0 %v1580
          %1612 = vmatpush1.bf16.xpose.msra.mxu0 %v1579
          %1613 = vmatprep.subr.bf16.mxu0 %v1582
          %1614 = vmatpush1.bf16.xpose.msra.mxu0 %v1581
          %1615 = vmatprep.subr.bf16.mxu0 %v1584
          %1616 = vmatpush1.bf16.xpose.msra.mxu0 %v1583
          %1617 = vmatprep.subr.bf16.mxu0 %v1586
          %1618 = vmatpush1.bf16.xpose.msra.mxu0 %v1585
          %1619 = vmatprep.subr.bf16.mxu0 %v1588
          %1620 = vmatpush1.bf16.xpose.msra.mxu0 %v1587
          %1621 = vmatprep.subr.bf16.mxu0 %v1590
          %1622 = vmatpush1.bf16.xpose.msra.mxu0 %v1589
          %1623 = vmatprep.subr.bf16.mxu0 %v1592
          %1624 = vmatpush1.bf16.xpose.msra.mxu0 %v1591
          %1625 = vmatprep.subr.bf16.mxu0 %v1594
          %1626 = vmatpush1.bf16.xpose.msra.mxu0 %v1593
          %1627 = vmatprep.subr.bf16.mxu0 %v1596
          %1628 = vmatpush1.bf16.xpose.msra.mxu0 %v1595
          %1629 = vmatprep.subr.bf16.mxu0 %v1598
          %1630 = vmatpush1.bf16.xpose.msra.mxu0 %v1597
          %1631 = vmatprep.subr.bf16.mxu0 %v1600
          %1632 = vmatpush1.bf16.xpose.msra.mxu0 %v1599
          %1633 = vmatprep.subr.bf16.mxu0 %v1602
          %1634 = vmatpush1.bf16.xpose.msra.mxu0 %v1601
          %1635 = vmatprep.mubr.bf16.mxu0 %v816
          %1636 = vmatmul.mubr.bf16.gmra.mrb[0].mxu0 %v815
          %v1637 = vpop.f32.mrb[0].mxu0
          %v1638 = vadd.f32 0.0, %v1637
          %v1639 = vpop.f32.mrb[0].mxu0
          %v1640 = vadd.f32 0.0, %v1639
          %v1641 = vpop.f32.mrb[0].mxu0
          %v1642 = vadd.f32 0.0, %v1641
          %v1643 = vpop.f32.mrb[0].mxu0
          %v1644 = vadd.f32 0.0, %v1643
          %1645 = vdwg.mxu0
          %v1646 = vpack.c.bf16 %v1642, %v1638
          %v1647 = vpack.c.bf16 %v1644, %v1640
          %s1648 = smul.addr %s802, 8
          %s1649 = scalar_lea.vmem [#allocation3], %s1648
          %1650 = vst [vmem:[%s1649] sm:$0xff] %v1646
          %1651 = vst [vmem:[%s1649 + $0x8] sm:$0xff] %v1647
          %s1652 = smul.u32 1, 2
          %s1653 = smul.addr %s1652, 8
          %s1654 = scalar_lea.vmem [#allocation2], %s1653
          %v1655 = vld [vmem:[%s1654] sm:$0xff]
          %v1656 = vld [vmem:[%s1654 + $0x8] sm:$0xff]
          %s1657 = smul.u32 5, 2
          %s1658 = smul.addr %s1657, 8
          %s1659 = scalar_lea.vmem [#allocation2], %s1658
          %v1660 = vld [vmem:[%s1659] sm:$0xff]
          %v1661 = vld [vmem:[%s1659 + $0x8] sm:$0xff]
          %s1662 = smul.u32 9, 2
          %s1663 = smul.addr %s1662, 8
          %s1664 = scalar_lea.vmem [#allocation2], %s1663
          %v1665 = vld [vmem:[%s1664] sm:$0xff]
          %v1666 = vld [vmem:[%s1664 + $0x8] sm:$0xff]
          %1667 = vxpose.xlu0.c.b16.start [1/8] %v1655, 128
          %1668 = vxpose.xlu0.c.b16.cont [2/8] 0, 128
          %1669 = vxpose.xlu0.c.b16.cont [3/8] 0, 128
          %1670 = vxpose.xlu0.c.b16.cont [4/8] 0, 128
          %1671 = vxpose.xlu0.c.b16.cont [5/8] 0, 128
          %1672 = vxpose.xlu0.c.b16.cont [6/8] 0, 128
          %1673 = vxpose.xlu0.c.b16.cont [7/8] 0, 128
          %1674 = vxpose.xlu0.c.b16.end [8/8] 0, 128
          %v1675 = vpop.trf.xlu0
          %v1676 = vpop.trf.xlu0
          %v1677 = vpop.trf.xlu0
          %v1678 = vpop.trf.xlu0
          %v1679 = vpop.trf.xlu0
          %v1680 = vpop.trf.xlu0
          %v1681 = vpop.trf.xlu0
          %v1682 = vpop.trf.xlu0
          %1683 = vxpose.xlu0.c.b16.start [1/8] %v1656, 128
          %1684 = vxpose.xlu0.c.b16.cont [2/8] 0, 128
          %1685 = vxpose.xlu0.c.b16.cont [3/8] 0, 128
          %1686 = vxpose.xlu0.c.b16.cont [4/8] 0, 128
          %1687 = vxpose.xlu0.c.b16.cont [5/8] 0, 128
          %1688 = vxpose.xlu0.c.b16.cont [6/8] 0, 128
          %1689 = vxpose.xlu0.c.b16.cont [7/8] 0, 128
          %1690 = vxpose.xlu0.c.b16.end [8/8] 0, 128
          %v1691 = vpop.trf.xlu0
          %v1692 = vpop.trf.xlu0
          %v1693 = vpop.trf.xlu0
          %v1694 = vpop.trf.xlu0
          %v1695 = vpop.trf.xlu0
          %v1696 = vpop.trf.xlu0
          %v1697 = vpop.trf.xlu0
          %v1698 = vpop.trf.xlu0
          %v1700 = vsel %vm849, %v1675, 0
          %v1703 = vsel %vm849, %v1676, 0
          %v1706 = vsel %vm849, %v1677, 0
          %v1709 = vsel %vm849, %v1678, 0
          %v1712 = vsel %vm849, %v1679, 0
          %v1715 = vsel %vm849, %v1680, 0
          %v1718 = vsel %vm849, %v1681, 0
          %v1721 = vsel %vm849, %v1682, 0
          %v1724 = vsel %vm849, %v1691, 0
          %v1727 = vsel %vm849, %v1692, 0
          %v1730 = vsel %vm849, %v1693, 0
          %v1733 = vsel %vm849, %v1694, 0
          %v1736 = vsel %vm849, %v1695, 0
          %v1739 = vsel %vm849, %v1696, 0
          %v1742 = vsel %vm849, %v1697, 0
          %v1745 = vsel %vm849, %v1698, 0
          %1747 = vmatprep.subr.bf16.mxu0 %v1661
          %1748 = vmatpush1.bf16.msra.mxu0 %v1660
          %1749 = vmatprep.subr.bf16.mxu0 0
          %1750 = vmatpush1.bf16.msra.mxu0 0
          %1751 = vmatprep.subr.bf16.mxu0 0
          %1752 = vmatpush1.bf16.msra.mxu0 0
          %1753 = vmatprep.subr.bf16.mxu0 0
          %1754 = vmatpush1.bf16.msra.mxu0 0
          %1755 = vmatprep.subr.bf16.mxu0 0
          %1756 = vmatpush1.bf16.msra.mxu0 0
          %1757 = vmatprep.subr.bf16.mxu0 0
          %1758 = vmatpush1.bf16.msra.mxu0 0
          %1759 = vmatprep.subr.bf16.mxu0 0
          %1760 = vmatpush1.bf16.msra.mxu0 0
          %1761 = vmatprep.subr.bf16.mxu0 0
          %1762 = vmatpush1.bf16.msra.mxu0 0
          %1763 = vmatprep.subr.bf16.mxu0 0
          %1764 = vmatpush1.bf16.msra.mxu0 0
          %1765 = vmatprep.subr.bf16.mxu0 0
          %1766 = vmatpush1.bf16.msra.mxu0 0
          %1767 = vmatprep.subr.bf16.mxu0 0
          %1768 = vmatpush1.bf16.msra.mxu0 0
          %1769 = vmatprep.subr.bf16.mxu0 0
          %1770 = vmatpush1.bf16.msra.mxu0 0
          %1771 = vmatprep.subr.bf16.mxu0 0
          %1772 = vmatpush1.bf16.msra.mxu0 0
          %1773 = vmatprep.subr.bf16.mxu0 0
          %1774 = vmatpush1.bf16.msra.mxu0 0
          %1775 = vmatprep.subr.bf16.mxu0 0
          %1776 = vmatpush1.bf16.msra.mxu0 0
          %1777 = vmatprep.subr.bf16.mxu0 0
          %1778 = vmatpush1.bf16.msra.mxu0 0
          %1779 = vmatprep.mubr.bf16.mxu0 0
          %1780 = vmatmul.mubr.bf16.gmra.mrb[0].mxu0 %v1700
          %v1781 = vpop.f32.mrb[0].mxu0
          %v1782 = vadd.f32 0.0, %v1781
          %v1783 = vpop.f32.mrb[0].mxu0
          %v1784 = vadd.f32 0.0, %v1783
          %v1785 = vpop.f32.mrb[0].mxu0
          %v1786 = vadd.f32 0.0, %v1785
          %v1787 = vpop.f32.mrb[0].mxu0
          %v1788 = vadd.f32 0.0, %v1787
          %1789 = vmatprep.mubr.bf16.mxu0 0
          %1790 = vmatmul.mubr.bf16.gmra.mrb[0].mxu0 %v1703
          %v1791 = vpop.f32.mrb[0].mxu0
          %v1792 = vadd.f32 0.0, %v1791
          %v1793 = vpop.f32.mrb[0].mxu0
          %v1794 = vadd.f32 0.0, %v1793
          %v1795 = vpop.f32.mrb[0].mxu0
          %v1796 = vadd.f32 0.0, %v1795
          %v1797 = vpop.f32.mrb[0].mxu0
          %v1798 = vadd.f32 0.0, %v1797
          %1799 = vmatprep.mubr.bf16.mxu0 0
          %1800 = vmatmul.mubr.bf16.gmra.mrb[0].mxu0 %v1706
          %v1801 = vpop.f32.mrb[0].mxu0
          %v1802 = vadd.f32 0.0, %v1801
          %v1803 = vpop.f32.mrb[0].mxu0
          %v1804 = vadd.f32 0.0, %v1803
          %v1805 = vpop.f32.mrb[0].mxu0
          %v1806 = vadd.f32 0.0, %v1805
          %v1807 = vpop.f32.mrb[0].mxu0
          %v1808 = vadd.f32 0.0, %v1807
          %1809 = vmatprep.mubr.bf16.mxu0 0
          %1810 = vmatmul.mubr.bf16.gmra.mrb[0].mxu0 %v1709
          %v1811 = vpop.f32.mrb[0].mxu0
          %v1812 = vadd.f32 0.0, %v1811
          %v1813 = vpop.f32.mrb[0].mxu0
          %v1814 = vadd.f32 0.0, %v1813
          %v1815 = vpop.f32.mrb[0].mxu0
          %v1816 = vadd.f32 0.0, %v1815
          %v1817 = vpop.f32.mrb[0].mxu0
          %v1818 = vadd.f32 0.0, %v1817
          %1819 = vmatprep.mubr.bf16.mxu0 0
          %1820 = vmatmul.mubr.bf16.gmra.mrb[0].mxu0 %v1712
          %v1821 = vpop.f32.mrb[0].mxu0
          %v1822 = vadd.f32 0.0, %v1821
          %v1823 = vpop.f32.mrb[0].mxu0
          %v1824 = vadd.f32 0.0, %v1823
          %v1825 = vpop.f32.mrb[0].mxu0
          %v1826 = vadd.f32 0.0, %v1825
          %v1827 = vpop.f32.mrb[0].mxu0
          %v1828 = vadd.f32 0.0, %v1827
          %1829 = vmatprep.mubr.bf16.mxu0 0
          %1830 = vmatmul.mubr.bf16.gmra.mrb[0].mxu0 %v1715
          %v1831 = vpop.f32.mrb[0].mxu0
          %v1832 = vadd.f32 0.0, %v1831
          %v1833 = vpop.f32.mrb[0].mxu0
          %v1834 = vadd.f32 0.0, %v1833
          %v1835 = vpop.f32.mrb[0].mxu0
          %v1836 = vadd.f32 0.0, %v1835
          %v1837 = vpop.f32.mrb[0].mxu0
          %v1838 = vadd.f32 0.0, %v1837
          %1839 = vmatprep.mubr.bf16.mxu0 0
          %1840 = vmatmul.mubr.bf16.gmra.mrb[0].mxu0 %v1718
          %v1841 = vpop.f32.mrb[0].mxu0
          %v1842 = vadd.f32 0.0, %v1841
          %v1843 = vpop.f32.mrb[0].mxu0
          %v1844 = vadd.f32 0.0, %v1843
          %v1845 = vpop.f32.mrb[0].mxu0
          %v1846 = vadd.f32 0.0, %v1845
          %v1847 = vpop.f32.mrb[0].mxu0
          %v1848 = vadd.f32 0.0, %v1847
          %1849 = vmatprep.mubr.bf16.mxu0 0
          %1850 = vmatmul.mubr.bf16.gmra.mrb[0].mxu0 %v1721
          %v1851 = vpop.f32.mrb[0].mxu0
          %v1852 = vadd.f32 0.0, %v1851
          %v1853 = vpop.f32.mrb[0].mxu0
          %v1854 = vadd.f32 0.0, %v1853
          %v1855 = vpop.f32.mrb[0].mxu0
          %v1856 = vadd.f32 0.0, %v1855
          %v1857 = vpop.f32.mrb[0].mxu0
          %v1858 = vadd.f32 0.0, %v1857
          %1859 = vmatprep.mubr.bf16.mxu0 0
          %1860 = vmatmul.mubr.bf16.gmra.mrb[0].mxu0 %v1724
          %v1861 = vpop.f32.mrb[0].mxu0
          %v1862 = vadd.f32 0.0, %v1861
          %v1863 = vpop.f32.mrb[0].mxu0
          %v1864 = vadd.f32 0.0, %v1863
          %v1865 = vpop.f32.mrb[0].mxu0
          %v1866 = vadd.f32 0.0, %v1865
          %v1867 = vpop.f32.mrb[0].mxu0
          %v1868 = vadd.f32 0.0, %v1867
          %1869 = vmatprep.mubr.bf16.mxu0 0
          %1870 = vmatmul.mubr.bf16.gmra.mrb[0].mxu0 %v1727
          %v1871 = vpop.f32.mrb[0].mxu0
          %v1872 = vadd.f32 0.0, %v1871
          %v1873 = vpop.f32.mrb[0].mxu0
          %v1874 = vadd.f32 0.0, %v1873
          %v1875 = vpop.f32.mrb[0].mxu0
          %v1876 = vadd.f32 0.0, %v1875
          %v1877 = vpop.f32.mrb[0].mxu0
          %v1878 = vadd.f32 0.0, %v1877
          %1879 = vmatprep.mubr.bf16.mxu0 0
          %1880 = vmatmul.mubr.bf16.gmra.mrb[0].mxu0 %v1730
          %v1881 = vpop.f32.mrb[0].mxu0
          %v1882 = vadd.f32 0.0, %v1881
          %v1883 = vpop.f32.mrb[0].mxu0
          %v1884 = vadd.f32 0.0, %v1883
          %v1885 = vpop.f32.mrb[0].mxu0
          %v1886 = vadd.f32 0.0, %v1885
          %v1887 = vpop.f32.mrb[0].mxu0
          %v1888 = vadd.f32 0.0, %v1887
          %1889 = vmatprep.mubr.bf16.mxu0 0
          %1890 = vmatmul.mubr.bf16.gmra.mrb[0].mxu0 %v1733
          %v1891 = vpop.f32.mrb[0].mxu0
          %v1892 = vadd.f32 0.0, %v1891
          %v1893 = vpop.f32.mrb[0].mxu0
          %v1894 = vadd.f32 0.0, %v1893
          %v1895 = vpop.f32.mrb[0].mxu0
          %v1896 = vadd.f32 0.0, %v1895
          %v1897 = vpop.f32.mrb[0].mxu0
          %v1898 = vadd.f32 0.0, %v1897
          %1899 = vmatprep.mubr.bf16.mxu0 0
          %1900 = vmatmul.mubr.bf16.gmra.mrb[0].mxu0 %v1736
          %v1901 = vpop.f32.mrb[0].mxu0
          %v1902 = vadd.f32 0.0, %v1901
          %v1903 = vpop.f32.mrb[0].mxu0
          %v1904 = vadd.f32 0.0, %v1903
          %v1905 = vpop.f32.mrb[0].mxu0
          %v1906 = vadd.f32 0.0, %v1905
          %v1907 = vpop.f32.mrb[0].mxu0
          %v1908 = vadd.f32 0.0, %v1907
          %1909 = vmatprep.mubr.bf16.mxu0 0
          %1910 = vmatmul.mubr.bf16.gmra.mrb[0].mxu0 %v1739
          %v1911 = vpop.f32.mrb[0].mxu0
          %v1912 = vadd.f32 0.0, %v1911
          %v1913 = vpop.f32.mrb[0].mxu0
          %v1914 = vadd.f32 0.0, %v1913
          %v1915 = vpop.f32.mrb[0].mxu0
          %v1916 = vadd.f32 0.0, %v1915
          %v1917 = vpop.f32.mrb[0].mxu0
          %v1918 = vadd.f32 0.0, %v1917
          %1919 = vmatprep.mubr.bf16.mxu0 0
          %1920 = vmatmul.mubr.bf16.gmra.mrb[0].mxu0 %v1742
          %v1921 = vpop.f32.mrb[0].mxu0
          %v1922 = vadd.f32 0.0, %v1921
          %v1923 = vpop.f32.mrb[0].mxu0
          %v1924 = vadd.f32 0.0, %v1923
          %v1925 = vpop.f32.mrb[0].mxu0
          %v1926 = vadd.f32 0.0, %v1925
          %v1927 = vpop.f32.mrb[0].mxu0
          %v1928 = vadd.f32 0.0, %v1927
          %1929 = vmatprep.mubr.bf16.mxu0 0
          %1930 = vmatmul.mubr.bf16.gmra.mrb[0].mxu0 %v1745
          %v1931 = vpop.f32.mrb[0].mxu0
          %v1932 = vadd.f32 0.0, %v1931
          %v1933 = vpop.f32.mrb[0].mxu0
          %v1934 = vadd.f32 0.0, %v1933
          %v1935 = vpop.f32.mrb[0].mxu0
          %v1936 = vadd.f32 0.0, %v1935
          %v1937 = vpop.f32.mrb[0].mxu0
          %v1938 = vadd.f32 0.0, %v1937
          %1939 = vdwg.mxu0
          %v1940 = vmax.f32 %v1782, %v1784
          %1941 = vmax.xlane.f32.xlu0 %v1940
          %v1942 = vpop.xlane.xlu0 %1941
          %v1943 = vmax.f32 %v1786, %v1788
          %1944 = vmax.xlane.f32.xlu0 %v1943
          %v1945 = vpop.xlane.xlu0 %1944
          %v1946 = vmax.f32 %v1792, %v1794
          %1947 = vmax.xlane.f32.xlu0 %v1946
          %v1948 = vpop.xlane.xlu0 %1947
          %v1949 = vmax.f32 %v1796, %v1798
          %1950 = vmax.xlane.f32.xlu0 %v1949
          %v1951 = vpop.xlane.xlu0 %1950
          %v1952 = vmax.f32 %v1802, %v1804
          %1953 = vmax.xlane.f32.xlu0 %v1952
          %v1954 = vpop.xlane.xlu0 %1953
          %v1955 = vmax.f32 %v1806, %v1808
          %1956 = vmax.xlane.f32.xlu0 %v1955
          %v1957 = vpop.xlane.xlu0 %1956
          %v1958 = vmax.f32 %v1812, %v1814
          %1959 = vmax.xlane.f32.xlu0 %v1958
          %v1960 = vpop.xlane.xlu0 %1959
          %v1961 = vmax.f32 %v1816, %v1818
          %1962 = vmax.xlane.f32.xlu0 %v1961
          %v1963 = vpop.xlane.xlu0 %1962
          %v1964 = vmax.f32 %v1822, %v1824
          %1965 = vmax.xlane.f32.xlu0 %v1964
          %v1966 = vpop.xlane.xlu0 %1965
          %v1967 = vmax.f32 %v1826, %v1828
          %1968 = vmax.xlane.f32.xlu0 %v1967
          %v1969 = vpop.xlane.xlu0 %1968
          %v1970 = vmax.f32 %v1832, %v1834
          %1971 = vmax.xlane.f32.xlu0 %v1970
          %v1972 = vpop.xlane.xlu0 %1971
          %v1973 = vmax.f32 %v1836, %v1838
          %1974 = vmax.xlane.f32.xlu0 %v1973
          %v1975 = vpop.xlane.xlu0 %1974
          %v1976 = vmax.f32 %v1842, %v1844
          %1977 = vmax.xlane.f32.xlu0 %v1976
          %v1978 = vpop.xlane.xlu0 %1977
          %v1979 = vmax.f32 %v1846, %v1848
          %1980 = vmax.xlane.f32.xlu0 %v1979
          %v1981 = vpop.xlane.xlu0 %1980
          %v1982 = vmax.f32 %v1852, %v1854
          %1983 = vmax.xlane.f32.xlu0 %v1982
          %v1984 = vpop.xlane.xlu0 %1983
          %v1985 = vmax.f32 %v1856, %v1858
          %1986 = vmax.xlane.f32.xlu0 %v1985
          %v1987 = vpop.xlane.xlu0 %1986
          %v1988 = vmax.f32 %v1862, %v1864
          %1989 = vmax.xlane.f32.xlu0 %v1988
          %v1990 = vpop.xlane.xlu0 %1989
          %v1991 = vmax.f32 %v1866, %v1868
          %1992 = vmax.xlane.f32.xlu0 %v1991
          %v1993 = vpop.xlane.xlu0 %1992
          %v1994 = vmax.f32 %v1872, %v1874
          %1995 = vmax.xlane.f32.xlu0 %v1994
          %v1996 = vpop.xlane.xlu0 %1995
          %v1997 = vmax.f32 %v1876, %v1878
          %1998 = vmax.xlane.f32.xlu0 %v1997
          %v1999 = vpop.xlane.xlu0 %1998
          %v2000 = vmax.f32 %v1882, %v1884
          %2001 = vmax.xlane.f32.xlu0 %v2000
          %v2002 = vpop.xlane.xlu0 %2001
          %v2003 = vmax.f32 %v1886, %v1888
          %2004 = vmax.xlane.f32.xlu0 %v2003
          %v2005 = vpop.xlane.xlu0 %2004
          %v2006 = vmax.f32 %v1892, %v1894
          %2007 = vmax.xlane.f32.xlu0 %v2006
          %v2008 = vpop.xlane.xlu0 %2007
          %v2009 = vmax.f32 %v1896, %v1898
          %2010 = vmax.xlane.f32.xlu0 %v2009
          %v2011 = vpop.xlane.xlu0 %2010
          %v2012 = vmax.f32 %v1902, %v1904
          %2013 = vmax.xlane.f32.xlu0 %v2012
          %v2014 = vpop.xlane.xlu0 %2013
          %v2015 = vmax.f32 %v1906, %v1908
          %2016 = vmax.xlane.f32.xlu0 %v2015
          %v2017 = vpop.xlane.xlu0 %2016
          %v2018 = vmax.f32 %v1912, %v1914
          %2019 = vmax.xlane.f32.xlu0 %v2018
          %v2020 = vpop.xlane.xlu0 %2019
          %v2021 = vmax.f32 %v1916, %v1918
          %2022 = vmax.xlane.f32.xlu0 %v2021
          %v2023 = vpop.xlane.xlu0 %2022
          %v2024 = vmax.f32 %v1922, %v1924
          %2025 = vmax.xlane.f32.xlu0 %v2024
          %v2026 = vpop.xlane.xlu0 %2025
          %v2027 = vmax.f32 %v1926, %v1928
          %2028 = vmax.xlane.f32.xlu0 %v2027
          %v2029 = vpop.xlane.xlu0 %2028
          %v2030 = vmax.f32 %v1932, %v1934
          %2031 = vmax.xlane.f32.xlu0 %v2030
          %v2032 = vpop.xlane.xlu0 %2031
          %v2033 = vmax.f32 %v1936, %v1938
          %2034 = vmax.xlane.f32.xlu0 %v2033
          %v2035 = vpop.xlane.xlu0 %2034
          %v2036 = vsub.f32 %v1782, %v1942
          %v2037 = vsub.f32 %v1784, %v1942
          %v2038 = vsub.f32 %v1786, %v1945
          %v2039 = vsub.f32 %v1788, %v1945
          %v2040 = vsub.f32 %v1792, %v1948
          %v2041 = vsub.f32 %v1794, %v1948
          %v2042 = vsub.f32 %v1796, %v1951
          %v2043 = vsub.f32 %v1798, %v1951
          %v2044 = vsub.f32 %v1802, %v1954
          %v2045 = vsub.f32 %v1804, %v1954
          %v2046 = vsub.f32 %v1806, %v1957
          %v2047 = vsub.f32 %v1808, %v1957
          %v2048 = vsub.f32 %v1812, %v1960
          %v2049 = vsub.f32 %v1814, %v1960
          %v2050 = vsub.f32 %v1816, %v1963
          %v2051 = vsub.f32 %v1818, %v1963
          %v2052 = vsub.f32 %v1822, %v1966
          %v2053 = vsub.f32 %v1824, %v1966
          %v2054 = vsub.f32 %v1826, %v1969
          %v2055 = vsub.f32 %v1828, %v1969
          %v2056 = vsub.f32 %v1832, %v1972
          %v2057 = vsub.f32 %v1834, %v1972
          %v2058 = vsub.f32 %v1836, %v1975
          %v2059 = vsub.f32 %v1838, %v1975
          %v2060 = vsub.f32 %v1842, %v1978
          %v2061 = vsub.f32 %v1844, %v1978
          %v2062 = vsub.f32 %v1846, %v1981
          %v2063 = vsub.f32 %v1848, %v1981
          %v2064 = vsub.f32 %v1852, %v1984
          %v2065 = vsub.f32 %v1854, %v1984
          %v2066 = vsub.f32 %v1856, %v1987
          %v2067 = vsub.f32 %v1858, %v1987
          %v2068 = vsub.f32 %v1862, %v1990
          %v2069 = vsub.f32 %v1864, %v1990
          %v2070 = vsub.f32 %v1866, %v1993
          %v2071 = vsub.f32 %v1868, %v1993
          %v2072 = vsub.f32 %v1872, %v1996
          %v2073 = vsub.f32 %v1874, %v1996
          %v2074 = vsub.f32 %v1876, %v1999
          %v2075 = vsub.f32 %v1878, %v1999
          %v2076 = vsub.f32 %v1882, %v2002
          %v2077 = vsub.f32 %v1884, %v2002
          %v2078 = vsub.f32 %v1886, %v2005
          %v2079 = vsub.f32 %v1888, %v2005
          %v2080 = vsub.f32 %v1892, %v2008
          %v2081 = vsub.f32 %v1894, %v2008
          %v2082 = vsub.f32 %v1896, %v2011
          %v2083 = vsub.f32 %v1898, %v2011
          %v2084 = vsub.f32 %v1902, %v2014
          %v2085 = vsub.f32 %v1904, %v2014
          %v2086 = vsub.f32 %v1906, %v2017
          %v2087 = vsub.f32 %v1908, %v2017
          %v2088 = vsub.f32 %v1912, %v2020
          %v2089 = vsub.f32 %v1914, %v2020
          %v2090 = vsub.f32 %v1916, %v2023
          %v2091 = vsub.f32 %v1918, %v2023
          %v2092 = vsub.f32 %v1922, %v2026
          %v2093 = vsub.f32 %v1924, %v2026
          %v2094 = vsub.f32 %v1926, %v2029
          %v2095 = vsub.f32 %v1928, %v2029
          %v2096 = vsub.f32 %v1932, %v2032
          %v2097 = vsub.f32 %v1934, %v2032
          %v2098 = vsub.f32 %v1936, %v2035
          %v2099 = vsub.f32 %v1938, %v2035
          %v2100 = vmul.f32 %v2036, 1.442695
          %v2101 = vpow.pop %v2100
          %v2102 = vmul.f32 %v2037, 1.442695
          %v2103 = vpow.pop %v2102
          %v2104 = vmul.f32 %v2038, 1.442695
          %v2105 = vpow.pop %v2104
          %v2106 = vmul.f32 %v2039, 1.442695
          %v2107 = vpow.pop %v2106
          %v2108 = vmul.f32 %v2040, 1.442695
          %v2109 = vpow.pop %v2108
          %v2110 = vmul.f32 %v2041, 1.442695
          %v2111 = vpow.pop %v2110
          %v2112 = vmul.f32 %v2042, 1.442695
          %v2113 = vpow.pop %v2112
          %v2114 = vmul.f32 %v2043, 1.442695
          %v2115 = vpow.pop %v2114
          %v2116 = vmul.f32 %v2044, 1.442695
          %v2117 = vpow.pop %v2116
          %v2118 = vmul.f32 %v2045, 1.442695
          %v2119 = vpow.pop %v2118
          %v2120 = vmul.f32 %v2046, 1.442695
          %v2121 = vpow.pop %v2120
          %v2122 = vmul.f32 %v2047, 1.442695
          %v2123 = vpow.pop %v2122
          %v2124 = vmul.f32 %v2048, 1.442695
          %v2125 = vpow.pop %v2124
          %v2126 = vmul.f32 %v2049, 1.442695
          %v2127 = vpow.pop %v2126
          %v2128 = vmul.f32 %v2050, 1.442695
          %v2129 = vpow.pop %v2128
          %v2130 = vmul.f32 %v2051, 1.442695
          %v2131 = vpow.pop %v2130
          %v2132 = vmul.f32 %v2052, 1.442695
          %v2133 = vpow.pop %v2132
          %v2134 = vmul.f32 %v2053, 1.442695
          %v2135 = vpow.pop %v2134
          %v2136 = vmul.f32 %v2054, 1.442695
          %v2137 = vpow.pop %v2136
          %v2138 = vmul.f32 %v2055, 1.442695
          %v2139 = vpow.pop %v2138
          %v2140 = vmul.f32 %v2056, 1.442695
          %v2141 = vpow.pop %v2140
          %v2142 = vmul.f32 %v2057, 1.442695
          %v2143 = vpow.pop %v2142
          %v2144 = vmul.f32 %v2058, 1.442695
          %v2145 = vpow.pop %v2144
          %v2146 = vmul.f32 %v2059, 1.442695
          %v2147 = vpow.pop %v2146
          %v2148 = vmul.f32 %v2060, 1.442695
          %v2149 = vpow.pop %v2148
          %v2150 = vmul.f32 %v2061, 1.442695
          %v2151 = vpow.pop %v2150
          %v2152 = vmul.f32 %v2062, 1.442695
          %v2153 = vpow.pop %v2152
          %v2154 = vmul.f32 %v2063, 1.442695
          %v2155 = vpow.pop %v2154
          %v2156 = vmul.f32 %v2064, 1.442695
          %v2157 = vpow.pop %v2156
          %v2158 = vmul.f32 %v2065, 1.442695
          %v2159 = vpow.pop %v2158
          %v2160 = vmul.f32 %v2066, 1.442695
          %v2161 = vpow.pop %v2160
          %v2162 = vmul.f32 %v2067, 1.442695
          %v2163 = vpow.pop %v2162
          %v2164 = vmul.f32 %v2068, 1.442695
          %v2165 = vpow.pop %v2164
          %v2166 = vmul.f32 %v2069, 1.442695
          %v2167 = vpow.pop %v2166
          %v2168 = vmul.f32 %v2070, 1.442695
          %v2169 = vpow.pop %v2168
          %v2170 = vmul.f32 %v2071, 1.442695
          %v2171 = vpow.pop %v2170
          %v2172 = vmul.f32 %v2072, 1.442695
          %v2173 = vpow.pop %v2172
          %v2174 = vmul.f32 %v2073, 1.442695
          %v2175 = vpow.pop %v2174
          %v2176 = vmul.f32 %v2074, 1.442695
          %v2177 = vpow.pop %v2176
          %v2178 = vmul.f32 %v2075, 1.442695
          %v2179 = vpow.pop %v2178
          %v2180 = vmul.f32 %v2076, 1.442695
          %v2181 = vpow.pop %v2180
          %v2182 = vmul.f32 %v2077, 1.442695
          %v2183 = vpow.pop %v2182
          %v2184 = vmul.f32 %v2078, 1.442695
          %v2185 = vpow.pop %v2184
          %v2186 = vmul.f32 %v2079, 1.442695
          %v2187 = vpow.pop %v2186
          %v2188 = vmul.f32 %v2080, 1.442695
          %v2189 = vpow.pop %v2188
          %v2190 = vmul.f32 %v2081, 1.442695
          %v2191 = vpow.pop %v2190
          %v2192 = vmul.f32 %v2082, 1.442695
          %v2193 = vpow.pop %v2192
          %v2194 = vmul.f32 %v2083, 1.442695
          %v2195 = vpow.pop %v2194
          %v2196 = vmul.f32 %v2084, 1.442695
          %v2197 = vpow.pop %v2196
          %v2198 = vmul.f32 %v2085, 1.442695
          %v2199 = vpow.pop %v2198
          %v2200 = vmul.f32 %v2086, 1.442695
          %v2201 = vpow.pop %v2200
          %v2202 = vmul.f32 %v2087, 1.442695
          %v2203 = vpow.pop %v2202
          %v2204 = vmul.f32 %v2088, 1.442695
          %v2205 = vpow.pop %v2204
          %v2206 = vmul.f32 %v2089, 1.442695
          %v2207 = vpow.pop %v2206
          %v2208 = vmul.f32 %v2090, 1.442695
          %v2209 = vpow.pop %v2208
          %v2210 = vmul.f32 %v2091, 1.442695
          %v2211 = vpow.pop %v2210
          %v2212 = vmul.f32 %v2092, 1.442695
          %v2213 = vpow.pop %v2212
          %v2214 = vmul.f32 %v2093, 1.442695
          %v2215 = vpow.pop %v2214
          %v2216 = vmul.f32 %v2094, 1.442695
          %v2217 = vpow.pop %v2216
          %v2218 = vmul.f32 %v2095, 1.442695
          %v2219 = vpow.pop %v2218
          %v2220 = vmul.f32 %v2096, 1.442695
          %v2221 = vpow.pop %v2220
          %v2222 = vmul.f32 %v2097, 1.442695
          %v2223 = vpow.pop %v2222
          %v2224 = vmul.f32 %v2098, 1.442695
          %v2225 = vpow.pop %v2224
          %v2226 = vmul.f32 %v2099, 1.442695
          %v2227 = vpow.pop %v2226
          %v2228 = vadd.f32 %v2101, %v2103
          %2229 = vadd.xlane.f32.xlu0 %v2228
          %v2230 = vpop.xlane.xlu0 %2229
          %v2231 = vadd.f32 %v2105, %v2107
          %2232 = vadd.xlane.f32.xlu0 %v2231
          %v2233 = vpop.xlane.xlu0 %2232
          %v2234 = vadd.f32 %v2109, %v2111
          %2235 = vadd.xlane.f32.xlu0 %v2234
          %v2236 = vpop.xlane.xlu0 %2235
          %v2237 = vadd.f32 %v2113, %v2115
          %2238 = vadd.xlane.f32.xlu0 %v2237
          %v2239 = vpop.xlane.xlu0 %2238
          %v2240 = vadd.f32 %v2117, %v2119
          %2241 = vadd.xlane.f32.xlu0 %v2240
          %v2242 = vpop.xlane.xlu0 %2241
          %v2243 = vadd.f32 %v2121, %v2123
          %2244 = vadd.xlane.f32.xlu0 %v2243
          %v2245 = vpop.xlane.xlu0 %2244
          %v2246 = vadd.f32 %v2125, %v2127
          %2247 = vadd.xlane.f32.xlu0 %v2246
          %v2248 = vpop.xlane.xlu0 %2247
          %v2249 = vadd.f32 %v2129, %v2131
          %2250 = vadd.xlane.f32.xlu0 %v2249
          %v2251 = vpop.xlane.xlu0 %2250
          %v2252 = vadd.f32 %v2133, %v2135
          %2253 = vadd.xlane.f32.xlu0 %v2252
          %v2254 = vpop.xlane.xlu0 %2253
          %v2255 = vadd.f32 %v2137, %v2139
          %2256 = vadd.xlane.f32.xlu0 %v2255
          %v2257 = vpop.xlane.xlu0 %2256
          %v2258 = vadd.f32 %v2141, %v2143
          %2259 = vadd.xlane.f32.xlu0 %v2258
          %v2260 = vpop.xlane.xlu0 %2259
          %v2261 = vadd.f32 %v2145, %v2147
          %2262 = vadd.xlane.f32.xlu0 %v2261
          %v2263 = vpop.xlane.xlu0 %2262
          %v2264 = vadd.f32 %v2149, %v2151
          %2265 = vadd.xlane.f32.xlu0 %v2264
          %v2266 = vpop.xlane.xlu0 %2265
          %v2267 = vadd.f32 %v2153, %v2155
          %2268 = vadd.xlane.f32.xlu0 %v2267
          %v2269 = vpop.xlane.xlu0 %2268
          %v2270 = vadd.f32 %v2157, %v2159
          %2271 = vadd.xlane.f32.xlu0 %v2270
          %v2272 = vpop.xlane.xlu0 %2271
          %v2273 = vadd.f32 %v2161, %v2163
          %2274 = vadd.xlane.f32.xlu0 %v2273
          %v2275 = vpop.xlane.xlu0 %2274
          %v2276 = vadd.f32 %v2165, %v2167
          %2277 = vadd.xlane.f32.xlu0 %v2276
          %v2278 = vpop.xlane.xlu0 %2277
          %v2279 = vadd.f32 %v2169, %v2171
          %2280 = vadd.xlane.f32.xlu0 %v2279
          %v2281 = vpop.xlane.xlu0 %2280
          %v2282 = vadd.f32 %v2173, %v2175
          %2283 = vadd.xlane.f32.xlu0 %v2282
          %v2284 = vpop.xlane.xlu0 %2283
          %v2285 = vadd.f32 %v2177, %v2179
          %2286 = vadd.xlane.f32.xlu0 %v2285
          %v2287 = vpop.xlane.xlu0 %2286
          %v2288 = vadd.f32 %v2181, %v2183
          %2289 = vadd.xlane.f32.xlu0 %v2288
          %v2290 = vpop.xlane.xlu0 %2289
          %v2291 = vadd.f32 %v2185, %v2187
          %2292 = vadd.xlane.f32.xlu0 %v2291
          %v2293 = vpop.xlane.xlu0 %2292
          %v2294 = vadd.f32 %v2189, %v2191
          %2295 = vadd.xlane.f32.xlu0 %v2294
          %v2296 = vpop.xlane.xlu0 %2295
          %v2297 = vadd.f32 %v2193, %v2195
          %2298 = vadd.xlane.f32.xlu0 %v2297
          %v2299 = vpop.xlane.xlu0 %2298
          %v2300 = vadd.f32 %v2197, %v2199
          %2301 = vadd.xlane.f32.xlu0 %v2300
          %v2302 = vpop.xlane.xlu0 %2301
          %v2303 = vadd.f32 %v2201, %v2203
          %2304 = vadd.xlane.f32.xlu0 %v2303
          %v2305 = vpop.xlane.xlu0 %2304
          %v2306 = vadd.f32 %v2205, %v2207
          %2307 = vadd.xlane.f32.xlu0 %v2306
          %v2308 = vpop.xlane.xlu0 %2307
          %v2309 = vadd.f32 %v2209, %v2211
          %2310 = vadd.xlane.f32.xlu0 %v2309
          %v2311 = vpop.xlane.xlu0 %2310
          %v2312 = vadd.f32 %v2213, %v2215
          %2313 = vadd.xlane.f32.xlu0 %v2312
          %v2314 = vpop.xlane.xlu0 %2313
          %v2315 = vadd.f32 %v2217, %v2219
          %2316 = vadd.xlane.f32.xlu0 %v2315
          %v2317 = vpop.xlane.xlu0 %2316
          %v2318 = vadd.f32 %v2221, %v2223
          %2319 = vadd.xlane.f32.xlu0 %v2318
          %v2320 = vpop.xlane.xlu0 %2319
          %v2321 = vadd.f32 %v2225, %v2227
          %2322 = vadd.xlane.f32.xlu0 %v2321
          %v2323 = vpop.xlane.xlu0 %2322
          %v2324 = vrcp.pop %v2230
          %v2325 = vrcp.pop %v2233
          %v2326 = vrcp.pop %v2236
          %v2327 = vrcp.pop %v2239
          %v2328 = vrcp.pop %v2242
          %v2329 = vrcp.pop %v2245
          %v2330 = vrcp.pop %v2248
          %v2331 = vrcp.pop %v2251
          %v2332 = vrcp.pop %v2254
          %v2333 = vrcp.pop %v2257
          %v2334 = vrcp.pop %v2260
          %v2335 = vrcp.pop %v2263
          %v2336 = vrcp.pop %v2266
          %v2337 = vrcp.pop %v2269
          %v2338 = vrcp.pop %v2272
          %v2339 = vrcp.pop %v2275
          %v2340 = vrcp.pop %v2278
          %v2341 = vrcp.pop %v2281
          %v2342 = vrcp.pop %v2284
          %v2343 = vrcp.pop %v2287
          %v2344 = vrcp.pop %v2290
          %v2345 = vrcp.pop %v2293
          %v2346 = vrcp.pop %v2296
          %v2347 = vrcp.pop %v2299
          %v2348 = vrcp.pop %v2302
          %v2349 = vrcp.pop %v2305
          %v2350 = vrcp.pop %v2308
          %v2351 = vrcp.pop %v2311
          %v2352 = vrcp.pop %v2314
          %v2353 = vrcp.pop %v2317
          %v2354 = vrcp.pop %v2320
          %v2355 = vrcp.pop %v2323
          %v2356 = vmul.f32 %v2101, %v2324
          %v2357 = vmul.f32 %v2103, %v2324
          %v2358 = vmul.f32 %v2105, %v2325
          %v2359 = vmul.f32 %v2107, %v2325
          %v2360 = vmul.f32 %v2109, %v2326
          %v2361 = vmul.f32 %v2111, %v2326
          %v2362 = vmul.f32 %v2113, %v2327
          %v2363 = vmul.f32 %v2115, %v2327
          %v2364 = vmul.f32 %v2117, %v2328
          %v2365 = vmul.f32 %v2119, %v2328
          %v2366 = vmul.f32 %v2121, %v2329
          %v2367 = vmul.f32 %v2123, %v2329
          %v2368 = vmul.f32 %v2125, %v2330
          %v2369 = vmul.f32 %v2127, %v2330
          %v2370 = vmul.f32 %v2129, %v2331
          %v2371 = vmul.f32 %v2131, %v2331
          %v2372 = vmul.f32 %v2133, %v2332
          %v2373 = vmul.f32 %v2135, %v2332
          %v2374 = vmul.f32 %v2137, %v2333
          %v2375 = vmul.f32 %v2139, %v2333
          %v2376 = vmul.f32 %v2141, %v2334
          %v2377 = vmul.f32 %v2143, %v2334
          %v2378 = vmul.f32 %v2145, %v2335
          %v2379 = vmul.f32 %v2147, %v2335
          %v2380 = vmul.f32 %v2149, %v2336
          %v2381 = vmul.f32 %v2151, %v2336
          %v2382 = vmul.f32 %v2153, %v2337
          %v2383 = vmul.f32 %v2155, %v2337
          %v2384 = vmul.f32 %v2157, %v2338
          %v2385 = vmul.f32 %v2159, %v2338
          %v2386 = vmul.f32 %v2161, %v2339
          %v2387 = vmul.f32 %v2163, %v2339
          %v2388 = vmul.f32 %v2165, %v2340
          %v2389 = vmul.f32 %v2167, %v2340
          %v2390 = vmul.f32 %v2169, %v2341
          %v2391 = vmul.f32 %v2171, %v2341
          %v2392 = vmul.f32 %v2173, %v2342
          %v2393 = vmul.f32 %v2175, %v2342
          %v2394 = vmul.f32 %v2177, %v2343
          %v2395 = vmul.f32 %v2179, %v2343
          %v2396 = vmul.f32 %v2181, %v2344
          %v2397 = vmul.f32 %v2183, %v2344
          %v2398 = vmul.f32 %v2185, %v2345
          %v2399 = vmul.f32 %v2187, %v2345
          %v2400 = vmul.f32 %v2189, %v2346
          %v2401 = vmul.f32 %v2191, %v2346
          %v2402 = vmul.f32 %v2193, %v2347
          %v2403 = vmul.f32 %v2195, %v2347
          %v2404 = vmul.f32 %v2197, %v2348
          %v2405 = vmul.f32 %v2199, %v2348
          %v2406 = vmul.f32 %v2201, %v2349
          %v2407 = vmul.f32 %v2203, %v2349
          %v2408 = vmul.f32 %v2205, %v2350
          %v2409 = vmul.f32 %v2207, %v2350
          %v2410 = vmul.f32 %v2209, %v2351
          %v2411 = vmul.f32 %v2211, %v2351
          %v2412 = vmul.f32 %v2213, %v2352
          %v2413 = vmul.f32 %v2215, %v2352
          %v2414 = vmul.f32 %v2217, %v2353
          %v2415 = vmul.f32 %v2219, %v2353
          %v2416 = vmul.f32 %v2221, %v2354
          %v2417 = vmul.f32 %v2223, %v2354
          %v2418 = vmul.f32 %v2225, %v2355
          %v2419 = vmul.f32 %v2227, %v2355
          %v2420 = vpack.c.bf16 %v2358, %v2356
          %v2421 = vpack.c.bf16 %v2359, %v2357
          %v2422 = vpack.c.bf16 %v2362, %v2360
          %v2423 = vpack.c.bf16 %v2363, %v2361
          %v2424 = vpack.c.bf16 %v2366, %v2364
          %v2425 = vpack.c.bf16 %v2367, %v2365
          %v2426 = vpack.c.bf16 %v2370, %v2368
          %v2427 = vpack.c.bf16 %v2371, %v2369
          %v2428 = vpack.c.bf16 %v2374, %v2372
          %v2429 = vpack.c.bf16 %v2375, %v2373
          %v2430 = vpack.c.bf16 %v2378, %v2376
          %v2431 = vpack.c.bf16 %v2379, %v2377
          %v2432 = vpack.c.bf16 %v2382, %v2380
          %v2433 = vpack.c.bf16 %v2383, %v2381
          %v2434 = vpack.c.bf16 %v2386, %v2384
          %v2435 = vpack.c.bf16 %v2387, %v2385
          %v2436 = vpack.c.bf16 %v2390, %v2388
          %v2437 = vpack.c.bf16 %v2391, %v2389
          %v2438 = vpack.c.bf16 %v2394, %v2392
          %v2439 = vpack.c.bf16 %v2395, %v2393
          %v2440 = vpack.c.bf16 %v2398, %v2396
          %v2441 = vpack.c.bf16 %v2399, %v2397
          %v2442 = vpack.c.bf16 %v2402, %v2400
          %v2443 = vpack.c.bf16 %v2403, %v2401
          %v2444 = vpack.c.bf16 %v2406, %v2404
          %v2445 = vpack.c.bf16 %v2407, %v2405
          %v2446 = vpack.c.bf16 %v2410, %v2408
          %v2447 = vpack.c.bf16 %v2411, %v2409
          %v2448 = vpack.c.bf16 %v2414, %v2412
          %v2449 = vpack.c.bf16 %v2415, %v2413
          %v2450 = vpack.c.bf16 %v2418, %v2416
          %v2451 = vpack.c.bf16 %v2419, %v2417
          %2452 = vmatprep.subr.bf16.mxu0 %v2421
          %2453 = vmatpush1.bf16.xpose.msra.mxu0 %v2420
          %2454 = vmatprep.subr.bf16.mxu0 %v2423
          %2455 = vmatpush1.bf16.xpose.msra.mxu0 %v2422
          %2456 = vmatprep.subr.bf16.mxu0 %v2425
          %2457 = vmatpush1.bf16.xpose.msra.mxu0 %v2424
          %2458 = vmatprep.subr.bf16.mxu0 %v2427
          %2459 = vmatpush1.bf16.xpose.msra.mxu0 %v2426
          %2460 = vmatprep.subr.bf16.mxu0 %v2429
          %2461 = vmatpush1.bf16.xpose.msra.mxu0 %v2428
          %2462 = vmatprep.subr.bf16.mxu0 %v2431
          %2463 = vmatpush1.bf16.xpose.msra.mxu0 %v2430
          %2464 = vmatprep.subr.bf16.mxu0 %v2433
          %2465 = vmatpush1.bf16.xpose.msra.mxu0 %v2432
          %2466 = vmatprep.subr.bf16.mxu0 %v2435
          %2467 = vmatpush1.bf16.xpose.msra.mxu0 %v2434
          %2468 = vmatprep.subr.bf16.mxu0 %v2437
          %2469 = vmatpush1.bf16.xpose.msra.mxu0 %v2436
          %2470 = vmatprep.subr.bf16.mxu0 %v2439
          %2471 = vmatpush1.bf16.xpose.msra.mxu0 %v2438
          %2472 = vmatprep.subr.bf16.mxu0 %v2441
          %2473 = vmatpush1.bf16.xpose.msra.mxu0 %v2440
          %2474 = vmatprep.subr.bf16.mxu0 %v2443
          %2475 = vmatpush1.bf16.xpose.msra.mxu0 %v2442
          %2476 = vmatprep.subr.bf16.mxu0 %v2445
          %2477 = vmatpush1.bf16.xpose.msra.mxu0 %v2444
          %2478 = vmatprep.subr.bf16.mxu0 %v2447
          %2479 = vmatpush1.bf16.xpose.msra.mxu0 %v2446
          %2480 = vmatprep.subr.bf16.mxu0 %v2449
          %2481 = vmatpush1.bf16.xpose.msra.mxu0 %v2448
          %2482 = vmatprep.subr.bf16.mxu0 %v2451
          %2483 = vmatpush1.bf16.xpose.msra.mxu0 %v2450
          %2484 = vmatprep.mubr.bf16.mxu0 %v1666
          %2485 = vmatmul.mubr.bf16.gmra.mrb[0].mxu0 %v1665
          %v2486 = vpop.f32.mrb[0].mxu0
          %v2487 = vadd.f32 0.0, %v2486
          %v2488 = vpop.f32.mrb[0].mxu0
          %v2489 = vadd.f32 0.0, %v2488
          %v2490 = vpop.f32.mrb[0].mxu0
          %v2491 = vadd.f32 0.0, %v2490
          %v2492 = vpop.f32.mrb[0].mxu0
          %v2493 = vadd.f32 0.0, %v2492
          %2494 = vdwg.mxu0
          %v2495 = vpack.c.bf16 %v2491, %v2487
          %v2496 = vpack.c.bf16 %v2493, %v2489
          %s2497 = smul.addr %s1652, 8
          %s2498 = scalar_lea.vmem [#allocation3], %s2497
          %2499 = vst [vmem:[%s2498] sm:$0xff] %v2495
          %2500 = vst [vmem:[%s2498 + $0x8] sm:$0xff] %v2496
          %s2501 = smul.u32 2, 2
          %s2502 = smul.addr %s2501, 8
          %s2503 = scalar_lea.vmem [#allocation2], %s2502
          %v2504 = vld [vmem:[%s2503] sm:$0xff]
          %v2505 = vld [vmem:[%s2503 + $0x8] sm:$0xff]
          %s2506 = smul.u32 6, 2
          %s2507 = smul.addr %s2506, 8
          %s2508 = scalar_lea.vmem [#allocation2], %s2507
          %v2509 = vld [vmem:[%s2508] sm:$0xff]
          %v2510 = vld [vmem:[%s2508 + $0x8] sm:$0xff]
          %s2511 = smul.u32 10, 2
          %s2512 = smul.addr %s2511, 8
          %s2513 = scalar_lea.vmem [#allocation2], %s2512
          %v2514 = vld [vmem:[%s2513] sm:$0xff]
          %v2515 = vld [vmem:[%s2513 + $0x8] sm:$0xff]
          %2516 = vxpose.xlu0.c.b16.start [1/8] %v2504, 128
          %2517 = vxpose.xlu0.c.b16.cont [2/8] 0, 128
          %2518 = vxpose.xlu0.c.b16.cont [3/8] 0, 128
          %2519 = vxpose.xlu0.c.b16.cont [4/8] 0, 128
          %2520 = vxpose.xlu0.c.b16.cont [5/8] 0, 128
          %2521 = vxpose.xlu0.c.b16.cont [6/8] 0, 128
          %2522 = vxpose.xlu0.c.b16.cont [7/8] 0, 128
          %2523 = vxpose.xlu0.c.b16.end [8/8] 0, 128
          %v2524 = vpop.trf.xlu0
          %v2525 = vpop.trf.xlu0
          %v2526 = vpop.trf.xlu0
          %v2527 = vpop.trf.xlu0
          %v2528 = vpop.trf.xlu0
          %v2529 = vpop.trf.xlu0
          %v2530 = vpop.trf.xlu0
          %v2531 = vpop.trf.xlu0
          %2532 = vxpose.xlu0.c.b16.start [1/8] %v2505, 128
          %2533 = vxpose.xlu0.c.b16.cont [2/8] 0, 128
          %2534 = vxpose.xlu0.c.b16.cont [3/8] 0, 128
          %2535 = vxpose.xlu0.c.b16.cont [4/8] 0, 128
          %2536 = vxpose.xlu0.c.b16.cont [5/8] 0, 128
          %2537 = vxpose.xlu0.c.b16.cont [6/8] 0, 128
          %2538 = vxpose.xlu0.c.b16.cont [7/8] 0, 128
          %2539 = vxpose.xlu0.c.b16.end [8/8] 0, 128
          %v2540 = vpop.trf.xlu0
          %v2541 = vpop.trf.xlu0
          %v2542 = vpop.trf.xlu0
          %v2543 = vpop.trf.xlu0
          %v2544 = vpop.trf.xlu0
          %v2545 = vpop.trf.xlu0
          %v2546 = vpop.trf.xlu0
          %v2547 = vpop.trf.xlu0
          %v2549 = vsel %vm849, %v2524, 0
          %v2552 = vsel %vm849, %v2525, 0
          %v2555 = vsel %vm849, %v2526, 0
          %v2558 = vsel %vm849, %v2527, 0
          %v2561 = vsel %vm849, %v2528, 0
          %v2564 = vsel %vm849, %v2529, 0
          %v2567 = vsel %vm849, %v2530, 0
          %v2570 = vsel %vm849, %v2531, 0
          %v2573 = vsel %vm849, %v2540, 0
          %v2576 = vsel %vm849, %v2541, 0
          %v2579 = vsel %vm849, %v2542, 0
          %v2582 = vsel %vm849, %v2543, 0
          %v2585 = vsel %vm849, %v2544, 0
          %v2588 = vsel %vm849, %v2545, 0
          %v2591 = vsel %vm849, %v2546, 0
          %v2594 = vsel %vm849, %v2547, 0
          %2596 = vmatprep.subr.bf16.mxu0 %v2510
          %2597 = vmatpush1.bf16.msra.mxu0 %v2509
          %2598 = vmatprep.subr.bf16.mxu0 0
          %2599 = vmatpush1.bf16.msra.mxu0 0
          %2600 = vmatprep.subr.bf16.mxu0 0
          %2601 = vmatpush1.bf16.msra.mxu0 0
          %2602 = vmatprep.subr.bf16.mxu0 0
          %2603 = vmatpush1.bf16.msra.mxu0 0
          %2604 = vmatprep.subr.bf16.mxu0 0
          %2605 = vmatpush1.bf16.msra.mxu0 0
          %2606 = vmatprep.subr.bf16.mxu0 0
          %2607 = vmatpush1.bf16.msra.mxu0 0
          %2608 = vmatprep.subr.bf16.mxu0 0
          %2609 = vmatpush1.bf16.msra.mxu0 0
          %2610 = vmatprep.subr.bf16.mxu0 0
          %2611 = vmatpush1.bf16.msra.mxu0 0
          %2612 = vmatprep.subr.bf16.mxu0 0
          %2613 = vmatpush1.bf16.msra.mxu0 0
          %2614 = vmatprep.subr.bf16.mxu0 0
          %2615 = vmatpush1.bf16.msra.mxu0 0
          %2616 = vmatprep.subr.bf16.mxu0 0
          %2617 = vmatpush1.bf16.msra.mxu0 0
          %2618 = vmatprep.subr.bf16.mxu0 0
          %2619 = vmatpush1.bf16.msra.mxu0 0
          %2620 = vmatprep.subr.bf16.mxu0 0
          %2621 = vmatpush1.bf16.msra.mxu0 0
          %2622 = vmatprep.subr.bf16.mxu0 0
          %2623 = vmatpush1.bf16.msra.mxu0 0
          %2624 = vmatprep.subr.bf16.mxu0 0
          %2625 = vmatpush1.bf16.msra.mxu0 0
          %2626 = vmatprep.subr.bf16.mxu0 0
          %2627 = vmatpush1.bf16.msra.mxu0 0
          %2628 = vmatprep.mubr.bf16.mxu0 0
          %2629 = vmatmul.mubr.bf16.gmra.mrb[0].mxu0 %v2549
          %v2630 = vpop.f32.mrb[0].mxu0
          %v2631 = vadd.f32 0.0, %v2630
          %v2632 = vpop.f32.mrb[0].mxu0
          %v2633 = vadd.f32 0.0, %v2632
          %v2634 = vpop.f32.mrb[0].mxu0
          %v2635 = vadd.f32 0.0, %v2634
          %v2636 = vpop.f32.mrb[0].mxu0
          %v2637 = vadd.f32 0.0, %v2636
          %2638 = vmatprep.mubr.bf16.mxu0 0
          %2639 = vmatmul.mubr.bf16.gmra.mrb[0].mxu0 %v2552
          %v2640 = vpop.f32.mrb[0].mxu0
          %v2641 = vadd.f32 0.0, %v2640
          %v2642 = vpop.f32.mrb[0].mxu0
          %v2643 = vadd.f32 0.0, %v2642
          %v2644 = vpop.f32.mrb[0].mxu0
          %v2645 = vadd.f32 0.0, %v2644
          %v2646 = vpop.f32.mrb[0].mxu0
          %v2647 = vadd.f32 0.0, %v2646
          %2648 = vmatprep.mubr.bf16.mxu0 0
          %2649 = vmatmul.mubr.bf16.gmra.mrb[0].mxu0 %v2555
          %v2650 = vpop.f32.mrb[0].mxu0
          %v2651 = vadd.f32 0.0, %v2650
          %v2652 = vpop.f32.mrb[0].mxu0
          %v2653 = vadd.f32 0.0, %v2652
          %v2654 = vpop.f32.mrb[0].mxu0
          %v2655 = vadd.f32 0.0, %v2654
          %v2656 = vpop.f32.mrb[0].mxu0
          %v2657 = vadd.f32 0.0, %v2656
          %2658 = vmatprep.mubr.bf16.mxu0 0
          %2659 = vmatmul.mubr.bf16.gmra.mrb[0].mxu0 %v2558
          %v2660 = vpop.f32.mrb[0].mxu0
          %v2661 = vadd.f32 0.0, %v2660
          %v2662 = vpop.f32.mrb[0].mxu0
          %v2663 = vadd.f32 0.0, %v2662
          %v2664 = vpop.f32.mrb[0].mxu0
          %v2665 = vadd.f32 0.0, %v2664
          %v2666 = vpop.f32.mrb[0].mxu0
          %v2667 = vadd.f32 0.0, %v2666
          %2668 = vmatprep.mubr.bf16.mxu0 0
          %2669 = vmatmul.mubr.bf16.gmra.mrb[0].mxu0 %v2561
          %v2670 = vpop.f32.mrb[0].mxu0
          %v2671 = vadd.f32 0.0, %v2670
          %v2672 = vpop.f32.mrb[0].mxu0
          %v2673 = vadd.f32 0.0, %v2672
          %v2674 = vpop.f32.mrb[0].mxu0
          %v2675 = vadd.f32 0.0, %v2674
          %v2676 = vpop.f32.mrb[0].mxu0
          %v2677 = vadd.f32 0.0, %v2676
          %2678 = vmatprep.mubr.bf16.mxu0 0
          %2679 = vmatmul.mubr.bf16.gmra.mrb[0].mxu0 %v2564
          %v2680 = vpop.f32.mrb[0].mxu0
          %v2681 = vadd.f32 0.0, %v2680
          %v2682 = vpop.f32.mrb[0].mxu0
          %v2683 = vadd.f32 0.0, %v2682
          %v2684 = vpop.f32.mrb[0].mxu0
          %v2685 = vadd.f32 0.0, %v2684
          %v2686 = vpop.f32.mrb[0].mxu0
          %v2687 = vadd.f32 0.0, %v2686
          %2688 = vmatprep.mubr.bf16.mxu0 0
          %2689 = vmatmul.mubr.bf16.gmra.mrb[0].mxu0 %v2567
          %v2690 = vpop.f32.mrb[0].mxu0
          %v2691 = vadd.f32 0.0, %v2690
          %v2692 = vpop.f32.mrb[0].mxu0
          %v2693 = vadd.f32 0.0, %v2692
          %v2694 = vpop.f32.mrb[0].mxu0
          %v2695 = vadd.f32 0.0, %v2694
          %v2696 = vpop.f32.mrb[0].mxu0
          %v2697 = vadd.f32 0.0, %v2696
          %2698 = vmatprep.mubr.bf16.mxu0 0
          %2699 = vmatmul.mubr.bf16.gmra.mrb[0].mxu0 %v2570
          %v2700 = vpop.f32.mrb[0].mxu0
          %v2701 = vadd.f32 0.0, %v2700
          %v2702 = vpop.f32.mrb[0].mxu0
          %v2703 = vadd.f32 0.0, %v2702
          %v2704 = vpop.f32.mrb[0].mxu0
          %v2705 = vadd.f32 0.0, %v2704
          %v2706 = vpop.f32.mrb[0].mxu0
          %v2707 = vadd.f32 0.0, %v2706
          %2708 = vmatprep.mubr.bf16.mxu0 0
          %2709 = vmatmul.mubr.bf16.gmra.mrb[0].mxu0 %v2573
          %v2710 = vpop.f32.mrb[0].mxu0
          %v2711 = vadd.f32 0.0, %v2710
          %v2712 = vpop.f32.mrb[0].mxu0
          %v2713 = vadd.f32 0.0, %v2712
          %v2714 = vpop.f32.mrb[0].mxu0
          %v2715 = vadd.f32 0.0, %v2714
          %v2716 = vpop.f32.mrb[0].mxu0
          %v2717 = vadd.f32 0.0, %v2716
          %2718 = vmatprep.mubr.bf16.mxu0 0
          %2719 = vmatmul.mubr.bf16.gmra.mrb[0].mxu0 %v2576
          %v2720 = vpop.f32.mrb[0].mxu0
          %v2721 = vadd.f32 0.0, %v2720
          %v2722 = vpop.f32.mrb[0].mxu0
          %v2723 = vadd.f32 0.0, %v2722
          %v2724 = vpop.f32.mrb[0].mxu0
          %v2725 = vadd.f32 0.0, %v2724
          %v2726 = vpop.f32.mrb[0].mxu0
          %v2727 = vadd.f32 0.0, %v2726
          %2728 = vmatprep.mubr.bf16.mxu0 0
          %2729 = vmatmul.mubr.bf16.gmra.mrb[0].mxu0 %v2579
          %v2730 = vpop.f32.mrb[0].mxu0
          %v2731 = vadd.f32 0.0, %v2730
          %v2732 = vpop.f32.mrb[0].mxu0
          %v2733 = vadd.f32 0.0, %v2732
          %v2734 = vpop.f32.mrb[0].mxu0
          %v2735 = vadd.f32 0.0, %v2734
          %v2736 = vpop.f32.mrb[0].mxu0
          %v2737 = vadd.f32 0.0, %v2736
          %2738 = vmatprep.mubr.bf16.mxu0 0
          %2739 = vmatmul.mubr.bf16.gmra.mrb[0].mxu0 %v2582
          %v2740 = vpop.f32.mrb[0].mxu0
          %v2741 = vadd.f32 0.0, %v2740
          %v2742 = vpop.f32.mrb[0].mxu0
          %v2743 = vadd.f32 0.0, %v2742
          %v2744 = vpop.f32.mrb[0].mxu0
          %v2745 = vadd.f32 0.0, %v2744
          %v2746 = vpop.f32.mrb[0].mxu0
          %v2747 = vadd.f32 0.0, %v2746
          %2748 = vmatprep.mubr.bf16.mxu0 0
          %2749 = vmatmul.mubr.bf16.gmra.mrb[0].mxu0 %v2585
          %v2750 = vpop.f32.mrb[0].mxu0
          %v2751 = vadd.f32 0.0, %v2750
          %v2752 = vpop.f32.mrb[0].mxu0
          %v2753 = vadd.f32 0.0, %v2752
          %v2754 = vpop.f32.mrb[0].mxu0
          %v2755 = vadd.f32 0.0, %v2754
          %v2756 = vpop.f32.mrb[0].mxu0
          %v2757 = vadd.f32 0.0, %v2756
          %2758 = vmatprep.mubr.bf16.mxu0 0
          %2759 = vmatmul.mubr.bf16.gmra.mrb[0].mxu0 %v2588
          %v2760 = vpop.f32.mrb[0].mxu0
          %v2761 = vadd.f32 0.0, %v2760
          %v2762 = vpop.f32.mrb[0].mxu0
          %v2763 = vadd.f32 0.0, %v2762
          %v2764 = vpop.f32.mrb[0].mxu0
          %v2765 = vadd.f32 0.0, %v2764
          %v2766 = vpop.f32.mrb[0].mxu0
          %v2767 = vadd.f32 0.0, %v2766
          %2768 = vmatprep.mubr.bf16.mxu0 0
          %2769 = vmatmul.mubr.bf16.gmra.mrb[0].mxu0 %v2591
          %v2770 = vpop.f32.mrb[0].mxu0
          %v2771 = vadd.f32 0.0, %v2770
          %v2772 = vpop.f32.mrb[0].mxu0
          %v2773 = vadd.f32 0.0, %v2772
          %v2774 = vpop.f32.mrb[0].mxu0
          %v2775 = vadd.f32 0.0, %v2774
          %v2776 = vpop.f32.mrb[0].mxu0
          %v2777 = vadd.f32 0.0, %v2776
          %2778 = vmatprep.mubr.bf16.mxu0 0
          %2779 = vmatmul.mubr.bf16.gmra.mrb[0].mxu0 %v2594
          %v2780 = vpop.f32.mrb[0].mxu0
          %v2781 = vadd.f32 0.0, %v2780
          %v2782 = vpop.f32.mrb[0].mxu0
          %v2783 = vadd.f32 0.0, %v2782
          %v2784 = vpop.f32.mrb[0].mxu0
          %v2785 = vadd.f32 0.0, %v2784
          %v2786 = vpop.f32.mrb[0].mxu0
          %v2787 = vadd.f32 0.0, %v2786
          %2788 = vdwg.mxu0
          %v2789 = vmax.f32 %v2631, %v2633
          %2790 = vmax.xlane.f32.xlu0 %v2789
          %v2791 = vpop.xlane.xlu0 %2790
          %v2792 = vmax.f32 %v2635, %v2637
          %2793 = vmax.xlane.f32.xlu0 %v2792
          %v2794 = vpop.xlane.xlu0 %2793
          %v2795 = vmax.f32 %v2641, %v2643
          %2796 = vmax.xlane.f32.xlu0 %v2795
          %v2797 = vpop.xlane.xlu0 %2796
          %v2798 = vmax.f32 %v2645, %v2647
          %2799 = vmax.xlane.f32.xlu0 %v2798
          %v2800 = vpop.xlane.xlu0 %2799
          %v2801 = vmax.f32 %v2651, %v2653
          %2802 = vmax.xlane.f32.xlu0 %v2801
          %v2803 = vpop.xlane.xlu0 %2802
          %v2804 = vmax.f32 %v2655, %v2657
          %2805 = vmax.xlane.f32.xlu0 %v2804
          %v2806 = vpop.xlane.xlu0 %2805
          %v2807 = vmax.f32 %v2661, %v2663
          %2808 = vmax.xlane.f32.xlu0 %v2807
          %v2809 = vpop.xlane.xlu0 %2808
          %v2810 = vmax.f32 %v2665, %v2667
          %2811 = vmax.xlane.f32.xlu0 %v2810
          %v2812 = vpop.xlane.xlu0 %2811
          %v2813 = vmax.f32 %v2671, %v2673
          %2814 = vmax.xlane.f32.xlu0 %v2813
          %v2815 = vpop.xlane.xlu0 %2814
          %v2816 = vmax.f32 %v2675, %v2677
          %2817 = vmax.xlane.f32.xlu0 %v2816
          %v2818 = vpop.xlane.xlu0 %2817
          %v2819 = vmax.f32 %v2681, %v2683
          %2820 = vmax.xlane.f32.xlu0 %v2819
          %v2821 = vpop.xlane.xlu0 %2820
          %v2822 = vmax.f32 %v2685, %v2687
          %2823 = vmax.xlane.f32.xlu0 %v2822
          %v2824 = vpop.xlane.xlu0 %2823
          %v2825 = vmax.f32 %v2691, %v2693
          %2826 = vmax.xlane.f32.xlu0 %v2825
          %v2827 = vpop.xlane.xlu0 %2826
          %v2828 = vmax.f32 %v2695, %v2697
          %2829 = vmax.xlane.f32.xlu0 %v2828
          %v2830 = vpop.xlane.xlu0 %2829
          %v2831 = vmax.f32 %v2701, %v2703
          %2832 = vmax.xlane.f32.xlu0 %v2831
          %v2833 = vpop.xlane.xlu0 %2832
          %v2834 = vmax.f32 %v2705, %v2707
          %2835 = vmax.xlane.f32.xlu0 %v2834
          %v2836 = vpop.xlane.xlu0 %2835
          %v2837 = vmax.f32 %v2711, %v2713
          %2838 = vmax.xlane.f32.xlu0 %v2837
          %v2839 = vpop.xlane.xlu0 %2838
          %v2840 = vmax.f32 %v2715, %v2717
          %2841 = vmax.xlane.f32.xlu0 %v2840
          %v2842 = vpop.xlane.xlu0 %2841
          %v2843 = vmax.f32 %v2721, %v2723
          %2844 = vmax.xlane.f32.xlu0 %v2843
          %v2845 = vpop.xlane.xlu0 %2844
          %v2846 = vmax.f32 %v2725, %v2727
          %2847 = vmax.xlane.f32.xlu0 %v2846
          %v2848 = vpop.xlane.xlu0 %2847
          %v2849 = vmax.f32 %v2731, %v2733
          %2850 = vmax.xlane.f32.xlu0 %v2849
          %v2851 = vpop.xlane.xlu0 %2850
          %v2852 = vmax.f32 %v2735, %v2737
          %2853 = vmax.xlane.f32.xlu0 %v2852
          %v2854 = vpop.xlane.xlu0 %2853
          %v2855 = vmax.f32 %v2741, %v2743
          %2856 = vmax.xlane.f32.xlu0 %v2855
          %v2857 = vpop.xlane.xlu0 %2856
          %v2858 = vmax.f32 %v2745, %v2747
          %2859 = vmax.xlane.f32.xlu0 %v2858
          %v2860 = vpop.xlane.xlu0 %2859
          %v2861 = vmax.f32 %v2751, %v2753
          %2862 = vmax.xlane.f32.xlu0 %v2861
          %v2863 = vpop.xlane.xlu0 %2862
          %v2864 = vmax.f32 %v2755, %v2757
          %2865 = vmax.xlane.f32.xlu0 %v2864
          %v2866 = vpop.xlane.xlu0 %2865
          %v2867 = vmax.f32 %v2761, %v2763
          %2868 = vmax.xlane.f32.xlu0 %v2867
          %v2869 = vpop.xlane.xlu0 %2868
          %v2870 = vmax.f32 %v2765, %v2767
          %2871 = vmax.xlane.f32.xlu0 %v2870
          %v2872 = vpop.xlane.xlu0 %2871
          %v2873 = vmax.f32 %v2771, %v2773
          %2874 = vmax.xlane.f32.xlu0 %v2873
          %v2875 = vpop.xlane.xlu0 %2874
          %v2876 = vmax.f32 %v2775, %v2777
          %2877 = vmax.xlane.f32.xlu0 %v2876
          %v2878 = vpop.xlane.xlu0 %2877
          %v2879 = vmax.f32 %v2781, %v2783
          %2880 = vmax.xlane.f32.xlu0 %v2879
          %v2881 = vpop.xlane.xlu0 %2880
          %v2882 = vmax.f32 %v2785, %v2787
          %2883 = vmax.xlane.f32.xlu0 %v2882
          %v2884 = vpop.xlane.xlu0 %2883
          %v2885 = vsub.f32 %v2631, %v2791
          %v2886 = vsub.f32 %v2633, %v2791
          %v2887 = vsub.f32 %v2635, %v2794
          %v2888 = vsub.f32 %v2637, %v2794
          %v2889 = vsub.f32 %v2641, %v2797
          %v2890 = vsub.f32 %v2643, %v2797
          %v2891 = vsub.f32 %v2645, %v2800
          %v2892 = vsub.f32 %v2647, %v2800
          %v2893 = vsub.f32 %v2651, %v2803
          %v2894 = vsub.f32 %v2653, %v2803
          %v2895 = vsub.f32 %v2655, %v2806
          %v2896 = vsub.f32 %v2657, %v2806
          %v2897 = vsub.f32 %v2661, %v2809
          %v2898 = vsub.f32 %v2663, %v2809
          %v2899 = vsub.f32 %v2665, %v2812
          %v2900 = vsub.f32 %v2667, %v2812
          %v2901 = vsub.f32 %v2671, %v2815
          %v2902 = vsub.f32 %v2673, %v2815
          %v2903 = vsub.f32 %v2675, %v2818
          %v2904 = vsub.f32 %v2677, %v2818
          %v2905 = vsub.f32 %v2681, %v2821
          %v2906 = vsub.f32 %v2683, %v2821
          %v2907 = vsub.f32 %v2685, %v2824
          %v2908 = vsub.f32 %v2687, %v2824
          %v2909 = vsub.f32 %v2691, %v2827
          %v2910 = vsub.f32 %v2693, %v2827
          %v2911 = vsub.f32 %v2695, %v2830
          %v2912 = vsub.f32 %v2697, %v2830
          %v2913 = vsub.f32 %v2701, %v2833
          %v2914 = vsub.f32 %v2703, %v2833
          %v2915 = vsub.f32 %v2705, %v2836
          %v2916 = vsub.f32 %v2707, %v2836
          %v2917 = vsub.f32 %v2711, %v2839
          %v2918 = vsub.f32 %v2713, %v2839
          %v2919 = vsub.f32 %v2715, %v2842
          %v2920 = vsub.f32 %v2717, %v2842
          %v2921 = vsub.f32 %v2721, %v2845
          %v2922 = vsub.f32 %v2723, %v2845
          %v2923 = vsub.f32 %v2725, %v2848
          %v2924 = vsub.f32 %v2727, %v2848
          %v2925 = vsub.f32 %v2731, %v2851
          %v2926 = vsub.f32 %v2733, %v2851
          %v2927 = vsub.f32 %v2735, %v2854
          %v2928 = vsub.f32 %v2737, %v2854
          %v2929 = vsub.f32 %v2741, %v2857
          %v2930 = vsub.f32 %v2743, %v2857
          %v2931 = vsub.f32 %v2745, %v2860
          %v2932 = vsub.f32 %v2747, %v2860
          %v2933 = vsub.f32 %v2751, %v2863
          %v2934 = vsub.f32 %v2753, %v2863
          %v2935 = vsub.f32 %v2755, %v2866
          %v2936 = vsub.f32 %v2757, %v2866
          %v2937 = vsub.f32 %v2761, %v2869
          %v2938 = vsub.f32 %v2763, %v2869
          %v2939 = vsub.f32 %v2765, %v2872
          %v2940 = vsub.f32 %v2767, %v2872
          %v2941 = vsub.f32 %v2771, %v2875
          %v2942 = vsub.f32 %v2773, %v2875
          %v2943 = vsub.f32 %v2775, %v2878
          %v2944 = vsub.f32 %v2777, %v2878
          %v2945 = vsub.f32 %v2781, %v2881
          %v2946 = vsub.f32 %v2783, %v2881
          %v2947 = vsub.f32 %v2785, %v2884
          %v2948 = vsub.f32 %v2787, %v2884
          %v2949 = vmul.f32 %v2885, 1.442695
          %v2950 = vpow.pop %v2949
          %v2951 = vmul.f32 %v2886, 1.442695
          %v2952 = vpow.pop %v2951
          %v2953 = vmul.f32 %v2887, 1.442695
          %v2954 = vpow.pop %v2953
          %v2955 = vmul.f32 %v2888, 1.442695
          %v2956 = vpow.pop %v2955
          %v2957 = vmul.f32 %v2889, 1.442695
          %v2958 = vpow.pop %v2957
          %v2959 = vmul.f32 %v2890, 1.442695
          %v2960 = vpow.pop %v2959
          %v2961 = vmul.f32 %v2891, 1.442695
          %v2962 = vpow.pop %v2961
          %v2963 = vmul.f32 %v2892, 1.442695
          %v2964 = vpow.pop %v2963
          %v2965 = vmul.f32 %v2893, 1.442695
          %v2966 = vpow.pop %v2965
          %v2967 = vmul.f32 %v2894, 1.442695
          %v2968 = vpow.pop %v2967
          %v2969 = vmul.f32 %v2895, 1.442695
          %v2970 = vpow.pop %v2969
          %v2971 = vmul.f32 %v2896, 1.442695
          %v2972 = vpow.pop %v2971
          %v2973 = vmul.f32 %v2897, 1.442695
          %v2974 = vpow.pop %v2973
          %v2975 = vmul.f32 %v2898, 1.442695
          %v2976 = vpow.pop %v2975
          %v2977 = vmul.f32 %v2899, 1.442695
          %v2978 = vpow.pop %v2977
          %v2979 = vmul.f32 %v2900, 1.442695
          %v2980 = vpow.pop %v2979
          %v2981 = vmul.f32 %v2901, 1.442695
          %v2982 = vpow.pop %v2981
          %v2983 = vmul.f32 %v2902, 1.442695
          %v2984 = vpow.pop %v2983
          %v2985 = vmul.f32 %v2903, 1.442695
          %v2986 = vpow.pop %v2985
          %v2987 = vmul.f32 %v2904, 1.442695
          %v2988 = vpow.pop %v2987
          %v2989 = vmul.f32 %v2905, 1.442695
          %v2990 = vpow.pop %v2989
          %v2991 = vmul.f32 %v2906, 1.442695
          %v2992 = vpow.pop %v2991
          %v2993 = vmul.f32 %v2907, 1.442695
          %v2994 = vpow.pop %v2993
          %v2995 = vmul.f32 %v2908, 1.442695
          %v2996 = vpow.pop %v2995
          %v2997 = vmul.f32 %v2909, 1.442695
          %v2998 = vpow.pop %v2997
          %v2999 = vmul.f32 %v2910, 1.442695
          %v3000 = vpow.pop %v2999
          %v3001 = vmul.f32 %v2911, 1.442695
          %v3002 = vpow.pop %v3001
          %v3003 = vmul.f32 %v2912, 1.442695
          %v3004 = vpow.pop %v3003
          %v3005 = vmul.f32 %v2913, 1.442695
          %v3006 = vpow.pop %v3005
          %v3007 = vmul.f32 %v2914, 1.442695
          %v3008 = vpow.pop %v3007
          %v3009 = vmul.f32 %v2915, 1.442695
          %v3010 = vpow.pop %v3009
          %v3011 = vmul.f32 %v2916, 1.442695
          %v3012 = vpow.pop %v3011
          %v3013 = vmul.f32 %v2917, 1.442695
          %v3014 = vpow.pop %v3013
          %v3015 = vmul.f32 %v2918, 1.442695
          %v3016 = vpow.pop %v3015
          %v3017 = vmul.f32 %v2919, 1.442695
          %v3018 = vpow.pop %v3017
          %v3019 = vmul.f32 %v2920, 1.442695
          %v3020 = vpow.pop %v3019
          %v3021 = vmul.f32 %v2921, 1.442695
          %v3022 = vpow.pop %v3021
          %v3023 = vmul.f32 %v2922, 1.442695
          %v3024 = vpow.pop %v3023
          %v3025 = vmul.f32 %v2923, 1.442695
          %v3026 = vpow.pop %v3025
          %v3027 = vmul.f32 %v2924, 1.442695
          %v3028 = vpow.pop %v3027
          %v3029 = vmul.f32 %v2925, 1.442695
          %v3030 = vpow.pop %v3029
          %v3031 = vmul.f32 %v2926, 1.442695
          %v3032 = vpow.pop %v3031
          %v3033 = vmul.f32 %v2927, 1.442695
          %v3034 = vpow.pop %v3033
          %v3035 = vmul.f32 %v2928, 1.442695
          %v3036 = vpow.pop %v3035
          %v3037 = vmul.f32 %v2929, 1.442695
          %v3038 = vpow.pop %v3037
          %v3039 = vmul.f32 %v2930, 1.442695
          %v3040 = vpow.pop %v3039
          %v3041 = vmul.f32 %v2931, 1.442695
          %v3042 = vpow.pop %v3041
          %v3043 = vmul.f32 %v2932, 1.442695
          %v3044 = vpow.pop %v3043
          %v3045 = vmul.f32 %v2933, 1.442695
          %v3046 = vpow.pop %v3045
          %v3047 = vmul.f32 %v2934, 1.442695
          %v3048 = vpow.pop %v3047
          %v3049 = vmul.f32 %v2935, 1.442695
          %v3050 = vpow.pop %v3049
          %v3051 = vmul.f32 %v2936, 1.442695
          %v3052 = vpow.pop %v3051
          %v3053 = vmul.f32 %v2937, 1.442695
          %v3054 = vpow.pop %v3053
          %v3055 = vmul.f32 %v2938, 1.442695
          %v3056 = vpow.pop %v3055
          %v3057 = vmul.f32 %v2939, 1.442695
          %v3058 = vpow.pop %v3057
          %v3059 = vmul.f32 %v2940, 1.442695
          %v3060 = vpow.pop %v3059
          %v3061 = vmul.f32 %v2941, 1.442695
          %v3062 = vpow.pop %v3061
          %v3063 = vmul.f32 %v2942, 1.442695
          %v3064 = vpow.pop %v3063
          %v3065 = vmul.f32 %v2943, 1.442695
          %v3066 = vpow.pop %v3065
          %v3067 = vmul.f32 %v2944, 1.442695
          %v3068 = vpow.pop %v3067
          %v3069 = vmul.f32 %v2945, 1.442695
          %v3070 = vpow.pop %v3069
          %v3071 = vmul.f32 %v2946, 1.442695
          %v3072 = vpow.pop %v3071
          %v3073 = vmul.f32 %v2947, 1.442695
          %v3074 = vpow.pop %v3073
          %v3075 = vmul.f32 %v2948, 1.442695
          %v3076 = vpow.pop %v3075
          %v3077 = vadd.f32 %v2950, %v2952
          %3078 = vadd.xlane.f32.xlu0 %v3077
          %v3079 = vpop.xlane.xlu0 %3078
          %v3080 = vadd.f32 %v2954, %v2956
          %3081 = vadd.xlane.f32.xlu0 %v3080
          %v3082 = vpop.xlane.xlu0 %3081
          %v3083 = vadd.f32 %v2958, %v2960
          %3084 = vadd.xlane.f32.xlu0 %v3083
          %v3085 = vpop.xlane.xlu0 %3084
          %v3086 = vadd.f32 %v2962, %v2964
          %3087 = vadd.xlane.f32.xlu0 %v3086
          %v3088 = vpop.xlane.xlu0 %3087
          %v3089 = vadd.f32 %v2966, %v2968
          %3090 = vadd.xlane.f32.xlu0 %v3089
          %v3091 = vpop.xlane.xlu0 %3090
          %v3092 = vadd.f32 %v2970, %v2972
          %3093 = vadd.xlane.f32.xlu0 %v3092
          %v3094 = vpop.xlane.xlu0 %3093
          %v3095 = vadd.f32 %v2974, %v2976
          %3096 = vadd.xlane.f32.xlu0 %v3095
          %v3097 = vpop.xlane.xlu0 %3096
          %v3098 = vadd.f32 %v2978, %v2980
          %3099 = vadd.xlane.f32.xlu0 %v3098
          %v3100 = vpop.xlane.xlu0 %3099
          %v3101 = vadd.f32 %v2982, %v2984
          %3102 = vadd.xlane.f32.xlu0 %v3101
          %v3103 = vpop.xlane.xlu0 %3102
          %v3104 = vadd.f32 %v2986, %v2988
          %3105 = vadd.xlane.f32.xlu0 %v3104
          %v3106 = vpop.xlane.xlu0 %3105
          %v3107 = vadd.f32 %v2990, %v2992
          %3108 = vadd.xlane.f32.xlu0 %v3107
          %v3109 = vpop.xlane.xlu0 %3108
          %v3110 = vadd.f32 %v2994, %v2996
          %3111 = vadd.xlane.f32.xlu0 %v3110
          %v3112 = vpop.xlane.xlu0 %3111
          %v3113 = vadd.f32 %v2998, %v3000
          %3114 = vadd.xlane.f32.xlu0 %v3113
          %v3115 = vpop.xlane.xlu0 %3114
          %v3116 = vadd.f32 %v3002, %v3004
          %3117 = vadd.xlane.f32.xlu0 %v3116
          %v3118 = vpop.xlane.xlu0 %3117
          %v3119 = vadd.f32 %v3006, %v3008
          %3120 = vadd.xlane.f32.xlu0 %v3119
          %v3121 = vpop.xlane.xlu0 %3120
          %v3122 = vadd.f32 %v3010, %v3012
          %3123 = vadd.xlane.f32.xlu0 %v3122
          %v3124 = vpop.xlane.xlu0 %3123
          %v3125 = vadd.f32 %v3014, %v3016
          %3126 = vadd.xlane.f32.xlu0 %v3125
          %v3127 = vpop.xlane.xlu0 %3126
          %v3128 = vadd.f32 %v3018, %v3020
          %3129 = vadd.xlane.f32.xlu0 %v3128
          %v3130 = vpop.xlane.xlu0 %3129
          %v3131 = vadd.f32 %v3022, %v3024
          %3132 = vadd.xlane.f32.xlu0 %v3131
          %v3133 = vpop.xlane.xlu0 %3132
          %v3134 = vadd.f32 %v3026, %v3028
          %3135 = vadd.xlane.f32.xlu0 %v3134
          %v3136 = vpop.xlane.xlu0 %3135
          %v3137 = vadd.f32 %v3030, %v3032
          %3138 = vadd.xlane.f32.xlu0 %v3137
          %v3139 = vpop.xlane.xlu0 %3138
          %v3140 = vadd.f32 %v3034, %v3036
          %3141 = vadd.xlane.f32.xlu0 %v3140
          %v3142 = vpop.xlane.xlu0 %3141
          %v3143 = vadd.f32 %v3038, %v3040
          %3144 = vadd.xlane.f32.xlu0 %v3143
          %v3145 = vpop.xlane.xlu0 %3144
          %v3146 = vadd.f32 %v3042, %v3044
          %3147 = vadd.xlane.f32.xlu0 %v3146
          %v3148 = vpop.xlane.xlu0 %3147
          %v3149 = vadd.f32 %v3046, %v3048
          %3150 = vadd.xlane.f32.xlu0 %v3149
          %v3151 = vpop.xlane.xlu0 %3150
          %v3152 = vadd.f32 %v3050, %v3052
          %3153 = vadd.xlane.f32.xlu0 %v3152
          %v3154 = vpop.xlane.xlu0 %3153
          %v3155 = vadd.f32 %v3054, %v3056
          %3156 = vadd.xlane.f32.xlu0 %v3155
          %v3157 = vpop.xlane.xlu0 %3156
          %v3158 = vadd.f32 %v3058, %v3060
          %3159 = vadd.xlane.f32.xlu0 %v3158
          %v3160 = vpop.xlane.xlu0 %3159
          %v3161 = vadd.f32 %v3062, %v3064
          %3162 = vadd.xlane.f32.xlu0 %v3161
          %v3163 = vpop.xlane.xlu0 %3162
          %v3164 = vadd.f32 %v3066, %v3068
          %3165 = vadd.xlane.f32.xlu0 %v3164
          %v3166 = vpop.xlane.xlu0 %3165
          %v3167 = vadd.f32 %v3070, %v3072
          %3168 = vadd.xlane.f32.xlu0 %v3167
          %v3169 = vpop.xlane.xlu0 %3168
          %v3170 = vadd.f32 %v3074, %v3076
          %3171 = vadd.xlane.f32.xlu0 %v3170
          %v3172 = vpop.xlane.xlu0 %3171
          %v3173 = vrcp.pop %v3079
          %v3174 = vrcp.pop %v3082
          %v3175 = vrcp.pop %v3085
          %v3176 = vrcp.pop %v3088
          %v3177 = vrcp.pop %v3091
          %v3178 = vrcp.pop %v3094
          %v3179 = vrcp.pop %v3097
          %v3180 = vrcp.pop %v3100
          %v3181 = vrcp.pop %v3103
          %v3182 = vrcp.pop %v3106
          %v3183 = vrcp.pop %v3109
          %v3184 = vrcp.pop %v3112
          %v3185 = vrcp.pop %v3115
          %v3186 = vrcp.pop %v3118
          %v3187 = vrcp.pop %v3121
          %v3188 = vrcp.pop %v3124
          %v3189 = vrcp.pop %v3127
          %v3190 = vrcp.pop %v3130
          %v3191 = vrcp.pop %v3133
          %v3192 = vrcp.pop %v3136
          %v3193 = vrcp.pop %v3139
          %v3194 = vrcp.pop %v3142
          %v3195 = vrcp.pop %v3145
          %v3196 = vrcp.pop %v3148
          %v3197 = vrcp.pop %v3151
          %v3198 = vrcp.pop %v3154
          %v3199 = vrcp.pop %v3157
          %v3200 = vrcp.pop %v3160
          %v3201 = vrcp.pop %v3163
          %v3202 = vrcp.pop %v3166
          %v3203 = vrcp.pop %v3169
          %v3204 = vrcp.pop %v3172
          %v3205 = vmul.f32 %v2950, %v3173
          %v3206 = vmul.f32 %v2952, %v3173
          %v3207 = vmul.f32 %v2954, %v3174
          %v3208 = vmul.f32 %v2956, %v3174
          %v3209 = vmul.f32 %v2958, %v3175
          %v3210 = vmul.f32 %v2960, %v3175
          %v3211 = vmul.f32 %v2962, %v3176
          %v3212 = vmul.f32 %v2964, %v3176
          %v3213 = vmul.f32 %v2966, %v3177
          %v3214 = vmul.f32 %v2968, %v3177
          %v3215 = vmul.f32 %v2970, %v3178
          %v3216 = vmul.f32 %v2972, %v3178
          %v3217 = vmul.f32 %v2974, %v3179
          %v3218 = vmul.f32 %v2976, %v3179
          %v3219 = vmul.f32 %v2978, %v3180
          %v3220 = vmul.f32 %v2980, %v3180
          %v3221 = vmul.f32 %v2982, %v3181
          %v3222 = vmul.f32 %v2984, %v3181
          %v3223 = vmul.f32 %v2986, %v3182
          %v3224 = vmul.f32 %v2988, %v3182
          %v3225 = vmul.f32 %v2990, %v3183
          %v3226 = vmul.f32 %v2992, %v3183
          %v3227 = vmul.f32 %v2994, %v3184
          %v3228 = vmul.f32 %v2996, %v3184
          %v3229 = vmul.f32 %v2998, %v3185
          %v3230 = vmul.f32 %v3000, %v3185
          %v3231 = vmul.f32 %v3002, %v3186
          %v3232 = vmul.f32 %v3004, %v3186
          %v3233 = vmul.f32 %v3006, %v3187
          %v3234 = vmul.f32 %v3008, %v3187
          %v3235 = vmul.f32 %v3010, %v3188
          %v3236 = vmul.f32 %v3012, %v3188
          %v3237 = vmul.f32 %v3014, %v3189
          %v3238 = vmul.f32 %v3016, %v3189
          %v3239 = vmul.f32 %v3018, %v3190
          %v3240 = vmul.f32 %v3020, %v3190
          %v3241 = vmul.f32 %v3022, %v3191
          %v3242 = vmul.f32 %v3024, %v3191
          %v3243 = vmul.f32 %v3026, %v3192
          %v3244 = vmul.f32 %v3028, %v3192
          %v3245 = vmul.f32 %v3030, %v3193
          %v3246 = vmul.f32 %v3032, %v3193
          %v3247 = vmul.f32 %v3034, %v3194
          %v3248 = vmul.f32 %v3036, %v3194
          %v3249 = vmul.f32 %v3038, %v3195
          %v3250 = vmul.f32 %v3040, %v3195
          %v3251 = vmul.f32 %v3042, %v3196
          %v3252 = vmul.f32 %v3044, %v3196
          %v3253 = vmul.f32 %v3046, %v3197
          %v3254 = vmul.f32 %v3048, %v3197
          %v3255 = vmul.f32 %v3050, %v3198
          %v3256 = vmul.f32 %v3052, %v3198
          %v3257 = vmul.f32 %v3054, %v3199
          %v3258 = vmul.f32 %v3056, %v3199
          %v3259 = vmul.f32 %v3058, %v3200
          %v3260 = vmul.f32 %v3060, %v3200
          %v3261 = vmul.f32 %v3062, %v3201
          %v3262 = vmul.f32 %v3064, %v3201
          %v3263 = vmul.f32 %v3066, %v3202
          %v3264 = vmul.f32 %v3068, %v3202
          %v3265 = vmul.f32 %v3070, %v3203
          %v3266 = vmul.f32 %v3072, %v3203
          %v3267 = vmul.f32 %v3074, %v3204
          %v3268 = vmul.f32 %v3076, %v3204
          %v3269 = vpack.c.bf16 %v3207, %v3205
          %v3270 = vpack.c.bf16 %v3208, %v3206
          %v3271 = vpack.c.bf16 %v3211, %v3209
          %v3272 = vpack.c.bf16 %v3212, %v3210
          %v3273 = vpack.c.bf16 %v3215, %v3213
          %v3274 = vpack.c.bf16 %v3216, %v3214
          %v3275 = vpack.c.bf16 %v3219, %v3217
          %v3276 = vpack.c.bf16 %v3220, %v3218
          %v3277 = vpack.c.bf16 %v3223, %v3221
          %v3278 = vpack.c.bf16 %v3224, %v3222
          %v3279 = vpack.c.bf16 %v3227, %v3225
          %v3280 = vpack.c.bf16 %v3228, %v3226
          %v3281 = vpack.c.bf16 %v3231, %v3229
          %v3282 = vpack.c.bf16 %v3232, %v3230
          %v3283 = vpack.c.bf16 %v3235, %v3233
          %v3284 = vpack.c.bf16 %v3236, %v3234
          %v3285 = vpack.c.bf16 %v3239, %v3237
          %v3286 = vpack.c.bf16 %v3240, %v3238
          %v3287 = vpack.c.bf16 %v3243, %v3241
          %v3288 = vpack.c.bf16 %v3244, %v3242
          %v3289 = vpack.c.bf16 %v3247, %v3245
          %v3290 = vpack.c.bf16 %v3248, %v3246
          %v3291 = vpack.c.bf16 %v3251, %v3249
          %v3292 = vpack.c.bf16 %v3252, %v3250
          %v3293 = vpack.c.bf16 %v3255, %v3253
          %v3294 = vpack.c.bf16 %v3256, %v3254
          %v3295 = vpack.c.bf16 %v3259, %v3257
          %v3296 = vpack.c.bf16 %v3260, %v3258
          %v3297 = vpack.c.bf16 %v3263, %v3261
          %v3298 = vpack.c.bf16 %v3264, %v3262
          %v3299 = vpack.c.bf16 %v3267, %v3265
          %v3300 = vpack.c.bf16 %v3268, %v3266
          %3301 = vmatprep.subr.bf16.mxu0 %v3270
          %3302 = vmatpush1.bf16.xpose.msra.mxu0 %v3269
          %3303 = vmatprep.subr.bf16.mxu0 %v3272
          %3304 = vmatpush1.bf16.xpose.msra.mxu0 %v3271
          %3305 = vmatprep.subr.bf16.mxu0 %v3274
          %3306 = vmatpush1.bf16.xpose.msra.mxu0 %v3273
          %3307 = vmatprep.subr.bf16.mxu0 %v3276
          %3308 = vmatpush1.bf16.xpose.msra.mxu0 %v3275
          %3309 = vmatprep.subr.bf16.mxu0 %v3278
          %3310 = vmatpush1.bf16.xpose.msra.mxu0 %v3277
          %3311 = vmatprep.subr.bf16.mxu0 %v3280
          %3312 = vmatpush1.bf16.xpose.msra.mxu0 %v3279
          %3313 = vmatprep.subr.bf16.mxu0 %v3282
          %3314 = vmatpush1.bf16.xpose.msra.mxu0 %v3281
          %3315 = vmatprep.subr.bf16.mxu0 %v3284
          %3316 = vmatpush1.bf16.xpose.msra.mxu0 %v3283
          %3317 = vmatprep.subr.bf16.mxu0 %v3286
          %3318 = vmatpush1.bf16.xpose.msra.mxu0 %v3285
          %3319 = vmatprep.subr.bf16.mxu0 %v3288
          %3320 = vmatpush1.bf16.xpose.msra.mxu0 %v3287
          %3321 = vmatprep.subr.bf16.mxu0 %v3290
          %3322 = vmatpush1.bf16.xpose.msra.mxu0 %v3289
          %3323 = vmatprep.subr.bf16.mxu0 %v3292
          %3324 = vmatpush1.bf16.xpose.msra.mxu0 %v3291
          %3325 = vmatprep.subr.bf16.mxu0 %v3294
          %3326 = vmatpush1.bf16.xpose.msra.mxu0 %v3293
          %3327 = vmatprep.subr.bf16.mxu0 %v3296
          %3328 = vmatpush1.bf16.xpose.msra.mxu0 %v3295
          %3329 = vmatprep.subr.bf16.mxu0 %v3298
          %3330 = vmatpush1.bf16.xpose.msra.mxu0 %v3297
          %3331 = vmatprep.subr.bf16.mxu0 %v3300
          %3332 = vmatpush1.bf16.xpose.msra.mxu0 %v3299
          %3333 = vmatprep.mubr.bf16.mxu0 %v2515
          %3334 = vmatmul.mubr.bf16.gmra.mrb[0].mxu0 %v2514
          %v3335 = vpop.f32.mrb[0].mxu0
          %v3336 = vadd.f32 0.0, %v3335
          %v3337 = vpop.f32.mrb[0].mxu0
          %v3338 = vadd.f32 0.0, %v3337
          %v3339 = vpop.f32.mrb[0].mxu0
          %v3340 = vadd.f32 0.0, %v3339
          %v3341 = vpop.f32.mrb[0].mxu0
          %v3342 = vadd.f32 0.0, %v3341
          %3343 = vdwg.mxu0
          %v3344 = vpack.c.bf16 %v3340, %v3336
          %v3345 = vpack.c.bf16 %v3342, %v3338
          %s3346 = smul.addr %s2501, 8
          %s3347 = scalar_lea.vmem [#allocation3], %s3346
          %3348 = vst [vmem:[%s3347] sm:$0xff] %v3344
          %3349 = vst [vmem:[%s3347 + $0x8] sm:$0xff] %v3345
          %s3350 = smul.u32 3, 2
          %s3351 = smul.addr %s3350, 8
          %s3352 = scalar_lea.vmem [#allocation2], %s3351
          %v3353 = vld [vmem:[%s3352] sm:$0xff]
          %v3354 = vld [vmem:[%s3352 + $0x8] sm:$0xff]
          %s3355 = smul.u32 7, 2
          %s3356 = smul.addr %s3355, 8
          %s3357 = scalar_lea.vmem [#allocation2], %s3356
          %v3358 = vld [vmem:[%s3357] sm:$0xff]
          %v3359 = vld [vmem:[%s3357 + $0x8] sm:$0xff]
          %s3360 = smul.u32 11, 2
          %s3361 = smul.addr %s3360, 8
          %s3362 = scalar_lea.vmem [#allocation2], %s3361
          %v3363 = vld [vmem:[%s3362] sm:$0xff]
          %v3364 = vld [vmem:[%s3362 + $0x8] sm:$0xff]
          %3365 = vxpose.xlu0.c.b16.start [1/8] %v3353, 128
          %3366 = vxpose.xlu0.c.b16.cont [2/8] 0, 128
          %3367 = vxpose.xlu0.c.b16.cont [3/8] 0, 128
          %3368 = vxpose.xlu0.c.b16.cont [4/8] 0, 128
          %3369 = vxpose.xlu0.c.b16.cont [5/8] 0, 128
          %3370 = vxpose.xlu0.c.b16.cont [6/8] 0, 128
          %3371 = vxpose.xlu0.c.b16.cont [7/8] 0, 128
          %3372 = vxpose.xlu0.c.b16.end [8/8] 0, 128
          %v3373 = vpop.trf.xlu0
          %v3374 = vpop.trf.xlu0
          %v3375 = vpop.trf.xlu0
          %v3376 = vpop.trf.xlu0
          %v3377 = vpop.trf.xlu0
          %v3378 = vpop.trf.xlu0
          %v3379 = vpop.trf.xlu0
          %v3380 = vpop.trf.xlu0
          %3381 = vxpose.xlu0.c.b16.start [1/8] %v3354, 128
          %3382 = vxpose.xlu0.c.b16.cont [2/8] 0, 128
          %3383 = vxpose.xlu0.c.b16.cont [3/8] 0, 128
          %3384 = vxpose.xlu0.c.b16.cont [4/8] 0, 128
          %3385 = vxpose.xlu0.c.b16.cont [5/8] 0, 128
          %3386 = vxpose.xlu0.c.b16.cont [6/8] 0, 128
          %3387 = vxpose.xlu0.c.b16.cont [7/8] 0, 128
          %3388 = vxpose.xlu0.c.b16.end [8/8] 0, 128
          %v3389 = vpop.trf.xlu0
          %v3390 = vpop.trf.xlu0
          %v3391 = vpop.trf.xlu0
          %v3392 = vpop.trf.xlu0
          %v3393 = vpop.trf.xlu0
          %v3394 = vpop.trf.xlu0
          %v3395 = vpop.trf.xlu0
          %v3396 = vpop.trf.xlu0
          %v3398 = vsel %vm849, %v3373, 0
          %v3401 = vsel %vm849, %v3374, 0
          %v3404 = vsel %vm849, %v3375, 0
          %v3407 = vsel %vm849, %v3376, 0
          %v3410 = vsel %vm849, %v3377, 0
          %v3413 = vsel %vm849, %v3378, 0
          %v3416 = vsel %vm849, %v3379, 0
          %v3419 = vsel %vm849, %v3380, 0
          %v3422 = vsel %vm849, %v3389, 0
          %v3425 = vsel %vm849, %v3390, 0
          %v3428 = vsel %vm849, %v3391, 0
          %v3431 = vsel %vm849, %v3392, 0
          %v3434 = vsel %vm849, %v3393, 0
          %v3437 = vsel %vm849, %v3394, 0
          %v3440 = vsel %vm849, %v3395, 0
          %v3443 = vsel %vm849, %v3396, 0
          %3445 = vmatprep.subr.bf16.mxu0 %v3359
          %3446 = vmatpush1.bf16.msra.mxu0 %v3358
          %3447 = vmatprep.subr.bf16.mxu0 0
          %3448 = vmatpush1.bf16.msra.mxu0 0
          %3449 = vmatprep.subr.bf16.mxu0 0
          %3450 = vmatpush1.bf16.msra.mxu0 0
          %3451 = vmatprep.subr.bf16.mxu0 0
          %3452 = vmatpush1.bf16.msra.mxu0 0
          %3453 = vmatprep.subr.bf16.mxu0 0
          %3454 = vmatpush1.bf16.msra.mxu0 0
          %3455 = vmatprep.subr.bf16.mxu0 0
          %3456 = vmatpush1.bf16.msra.mxu0 0
          %3457 = vmatprep.subr.bf16.mxu0 0
          %3458 = vmatpush1.bf16.msra.mxu0 0
          %3459 = vmatprep.subr.bf16.mxu0 0
          %3460 = vmatpush1.bf16.msra.mxu0 0
          %3461 = vmatprep.subr.bf16.mxu0 0
          %3462 = vmatpush1.bf16.msra.mxu0 0
          %3463 = vmatprep.subr.bf16.mxu0 0
          %3464 = vmatpush1.bf16.msra.mxu0 0
          %3465 = vmatprep.subr.bf16.mxu0 0
          %3466 = vmatpush1.bf16.msra.mxu0 0
          %3467 = vmatprep.subr.bf16.mxu0 0
          %3468 = vmatpush1.bf16.msra.mxu0 0
          %3469 = vmatprep.subr.bf16.mxu0 0
          %3470 = vmatpush1.bf16.msra.mxu0 0
          %3471 = vmatprep.subr.bf16.mxu0 0
          %3472 = vmatpush1.bf16.msra.mxu0 0
          %3473 = vmatprep.subr.bf16.mxu0 0
          %3474 = vmatpush1.bf16.msra.mxu0 0
          %3475 = vmatprep.subr.bf16.mxu0 0
          %3476 = vmatpush1.bf16.msra.mxu0 0
          %3477 = vmatprep.mubr.bf16.mxu0 0
          %3478 = vmatmul.mubr.bf16.gmra.mrb[0].mxu0 %v3398
          %v3479 = vpop.f32.mrb[0].mxu0
          %v3480 = vadd.f32 0.0, %v3479
          %v3481 = vpop.f32.mrb[0].mxu0
          %v3482 = vadd.f32 0.0, %v3481
          %v3483 = vpop.f32.mrb[0].mxu0
          %v3484 = vadd.f32 0.0, %v3483
          %v3485 = vpop.f32.mrb[0].mxu0
          %v3486 = vadd.f32 0.0, %v3485
          %3487 = vmatprep.mubr.bf16.mxu0 0
          %3488 = vmatmul.mubr.bf16.gmra.mrb[0].mxu0 %v3401
          %v3489 = vpop.f32.mrb[0].mxu0
          %v3490 = vadd.f32 0.0, %v3489
          %v3491 = vpop.f32.mrb[0].mxu0
          %v3492 = vadd.f32 0.0, %v3491
          %v3493 = vpop.f32.mrb[0].mxu0
          %v3494 = vadd.f32 0.0, %v3493
          %v3495 = vpop.f32.mrb[0].mxu0
          %v3496 = vadd.f32 0.0, %v3495
          %3497 = vmatprep.mubr.bf16.mxu0 0
          %3498 = vmatmul.mubr.bf16.gmra.mrb[0].mxu0 %v3404
          %v3499 = vpop.f32.mrb[0].mxu0
          %v3500 = vadd.f32 0.0, %v3499
          %v3501 = vpop.f32.mrb[0].mxu0
          %v3502 = vadd.f32 0.0, %v3501
          %v3503 = vpop.f32.mrb[0].mxu0
          %v3504 = vadd.f32 0.0, %v3503
          %v3505 = vpop.f32.mrb[0].mxu0
          %v3506 = vadd.f32 0.0, %v3505
          %3507 = vmatprep.mubr.bf16.mxu0 0
          %3508 = vmatmul.mubr.bf16.gmra.mrb[0].mxu0 %v3407
          %v3509 = vpop.f32.mrb[0].mxu0
          %v3510 = vadd.f32 0.0, %v3509
          %v3511 = vpop.f32.mrb[0].mxu0
          %v3512 = vadd.f32 0.0, %v3511
          %v3513 = vpop.f32.mrb[0].mxu0
          %v3514 = vadd.f32 0.0, %v3513
          %v3515 = vpop.f32.mrb[0].mxu0
          %v3516 = vadd.f32 0.0, %v3515
          %3517 = vmatprep.mubr.bf16.mxu0 0
          %3518 = vmatmul.mubr.bf16.gmra.mrb[0].mxu0 %v3410
          %v3519 = vpop.f32.mrb[0].mxu0
          %v3520 = vadd.f32 0.0, %v3519
          %v3521 = vpop.f32.mrb[0].mxu0
          %v3522 = vadd.f32 0.0, %v3521
          %v3523 = vpop.f32.mrb[0].mxu0
          %v3524 = vadd.f32 0.0, %v3523
          %v3525 = vpop.f32.mrb[0].mxu0
          %v3526 = vadd.f32 0.0, %v3525
          %3527 = vmatprep.mubr.bf16.mxu0 0
          %3528 = vmatmul.mubr.bf16.gmra.mrb[0].mxu0 %v3413
          %v3529 = vpop.f32.mrb[0].mxu0
          %v3530 = vadd.f32 0.0, %v3529
          %v3531 = vpop.f32.mrb[0].mxu0
          %v3532 = vadd.f32 0.0, %v3531
          %v3533 = vpop.f32.mrb[0].mxu0
          %v3534 = vadd.f32 0.0, %v3533
          %v3535 = vpop.f32.mrb[0].mxu0
          %v3536 = vadd.f32 0.0, %v3535
          %3537 = vmatprep.mubr.bf16.mxu0 0
          %3538 = vmatmul.mubr.bf16.gmra.mrb[0].mxu0 %v3416
          %v3539 = vpop.f32.mrb[0].mxu0
          %v3540 = vadd.f32 0.0, %v3539
          %v3541 = vpop.f32.mrb[0].mxu0
          %v3542 = vadd.f32 0.0, %v3541
          %v3543 = vpop.f32.mrb[0].mxu0
          %v3544 = vadd.f32 0.0, %v3543
          %v3545 = vpop.f32.mrb[0].mxu0
          %v3546 = vadd.f32 0.0, %v3545
          %3547 = vmatprep.mubr.bf16.mxu0 0
          %3548 = vmatmul.mubr.bf16.gmra.mrb[0].mxu0 %v3419
          %v3549 = vpop.f32.mrb[0].mxu0
          %v3550 = vadd.f32 0.0, %v3549
          %v3551 = vpop.f32.mrb[0].mxu0
          %v3552 = vadd.f32 0.0, %v3551
          %v3553 = vpop.f32.mrb[0].mxu0
          %v3554 = vadd.f32 0.0, %v3553
          %v3555 = vpop.f32.mrb[0].mxu0
          %v3556 = vadd.f32 0.0, %v3555
          %3557 = vmatprep.mubr.bf16.mxu0 0
          %3558 = vmatmul.mubr.bf16.gmra.mrb[0].mxu0 %v3422
          %v3559 = vpop.f32.mrb[0].mxu0
          %v3560 = vadd.f32 0.0, %v3559
          %v3561 = vpop.f32.mrb[0].mxu0
          %v3562 = vadd.f32 0.0, %v3561
          %v3563 = vpop.f32.mrb[0].mxu0
          %v3564 = vadd.f32 0.0, %v3563
          %v3565 = vpop.f32.mrb[0].mxu0
          %v3566 = vadd.f32 0.0, %v3565
          %3567 = vmatprep.mubr.bf16.mxu0 0
          %3568 = vmatmul.mubr.bf16.gmra.mrb[0].mxu0 %v3425
          %v3569 = vpop.f32.mrb[0].mxu0
          %v3570 = vadd.f32 0.0, %v3569
          %v3571 = vpop.f32.mrb[0].mxu0
          %v3572 = vadd.f32 0.0, %v3571
          %v3573 = vpop.f32.mrb[0].mxu0
          %v3574 = vadd.f32 0.0, %v3573
          %v3575 = vpop.f32.mrb[0].mxu0
          %v3576 = vadd.f32 0.0, %v3575
          %3577 = vmatprep.mubr.bf16.mxu0 0
          %3578 = vmatmul.mubr.bf16.gmra.mrb[0].mxu0 %v3428
          %v3579 = vpop.f32.mrb[0].mxu0
          %v3580 = vadd.f32 0.0, %v3579
          %v3581 = vpop.f32.mrb[0].mxu0
          %v3582 = vadd.f32 0.0, %v3581
          %v3583 = vpop.f32.mrb[0].mxu0
          %v3584 = vadd.f32 0.0, %v3583
          %v3585 = vpop.f32.mrb[0].mxu0
          %v3586 = vadd.f32 0.0, %v3585
          %3587 = vmatprep.mubr.bf16.mxu0 0
          %3588 = vmatmul.mubr.bf16.gmra.mrb[0].mxu0 %v3431
          %v3589 = vpop.f32.mrb[0].mxu0
          %v3590 = vadd.f32 0.0, %v3589
          %v3591 = vpop.f32.mrb[0].mxu0
          %v3592 = vadd.f32 0.0, %v3591
          %v3593 = vpop.f32.mrb[0].mxu0
          %v3594 = vadd.f32 0.0, %v3593
          %v3595 = vpop.f32.mrb[0].mxu0
          %v3596 = vadd.f32 0.0, %v3595
          %3597 = vmatprep.mubr.bf16.mxu0 0
          %3598 = vmatmul.mubr.bf16.gmra.mrb[0].mxu0 %v3434
          %v3599 = vpop.f32.mrb[0].mxu0
          %v3600 = vadd.f32 0.0, %v3599
          %v3601 = vpop.f32.mrb[0].mxu0
          %v3602 = vadd.f32 0.0, %v3601
          %v3603 = vpop.f32.mrb[0].mxu0
          %v3604 = vadd.f32 0.0, %v3603
          %v3605 = vpop.f32.mrb[0].mxu0
          %v3606 = vadd.f32 0.0, %v3605
          %3607 = vmatprep.mubr.bf16.mxu0 0
          %3608 = vmatmul.mubr.bf16.gmra.mrb[0].mxu0 %v3437
          %v3609 = vpop.f32.mrb[0].mxu0
          %v3610 = vadd.f32 0.0, %v3609
          %v3611 = vpop.f32.mrb[0].mxu0
          %v3612 = vadd.f32 0.0, %v3611
          %v3613 = vpop.f32.mrb[0].mxu0
          %v3614 = vadd.f32 0.0, %v3613
          %v3615 = vpop.f32.mrb[0].mxu0
          %v3616 = vadd.f32 0.0, %v3615
          %3617 = vmatprep.mubr.bf16.mxu0 0
          %3618 = vmatmul.mubr.bf16.gmra.mrb[0].mxu0 %v3440
          %v3619 = vpop.f32.mrb[0].mxu0
          %v3620 = vadd.f32 0.0, %v3619
          %v3621 = vpop.f32.mrb[0].mxu0
          %v3622 = vadd.f32 0.0, %v3621
          %v3623 = vpop.f32.mrb[0].mxu0
          %v3624 = vadd.f32 0.0, %v3623
          %v3625 = vpop.f32.mrb[0].mxu0
          %v3626 = vadd.f32 0.0, %v3625
          %3627 = vmatprep.mubr.bf16.mxu0 0
          %3628 = vmatmul.mubr.bf16.gmra.mrb[0].mxu0 %v3443
          %v3629 = vpop.f32.mrb[0].mxu0
          %v3630 = vadd.f32 0.0, %v3629
          %v3631 = vpop.f32.mrb[0].mxu0
          %v3632 = vadd.f32 0.0, %v3631
          %v3633 = vpop.f32.mrb[0].mxu0
          %v3634 = vadd.f32 0.0, %v3633
          %v3635 = vpop.f32.mrb[0].mxu0
          %v3636 = vadd.f32 0.0, %v3635
          %3637 = vdwg.mxu0
          %v3638 = vmax.f32 %v3480, %v3482
          %3639 = vmax.xlane.f32.xlu0 %v3638
          %v3640 = vpop.xlane.xlu0 %3639
          %v3641 = vmax.f32 %v3484, %v3486
          %3642 = vmax.xlane.f32.xlu0 %v3641
          %v3643 = vpop.xlane.xlu0 %3642
          %v3644 = vmax.f32 %v3490, %v3492
          %3645 = vmax.xlane.f32.xlu0 %v3644
          %v3646 = vpop.xlane.xlu0 %3645
          %v3647 = vmax.f32 %v3494, %v3496
          %3648 = vmax.xlane.f32.xlu0 %v3647
          %v3649 = vpop.xlane.xlu0 %3648
          %v3650 = vmax.f32 %v3500, %v3502
          %3651 = vmax.xlane.f32.xlu0 %v3650
          %v3652 = vpop.xlane.xlu0 %3651
          %v3653 = vmax.f32 %v3504, %v3506
          %3654 = vmax.xlane.f32.xlu0 %v3653
          %v3655 = vpop.xlane.xlu0 %3654
          %v3656 = vmax.f32 %v3510, %v3512
          %3657 = vmax.xlane.f32.xlu0 %v3656
          %v3658 = vpop.xlane.xlu0 %3657
          %v3659 = vmax.f32 %v3514, %v3516
          %3660 = vmax.xlane.f32.xlu0 %v3659
          %v3661 = vpop.xlane.xlu0 %3660
          %v3662 = vmax.f32 %v3520, %v3522
          %3663 = vmax.xlane.f32.xlu0 %v3662
          %v3664 = vpop.xlane.xlu0 %3663
          %v3665 = vmax.f32 %v3524, %v3526
          %3666 = vmax.xlane.f32.xlu0 %v3665
          %v3667 = vpop.xlane.xlu0 %3666
          %v3668 = vmax.f32 %v3530, %v3532
          %3669 = vmax.xlane.f32.xlu0 %v3668
          %v3670 = vpop.xlane.xlu0 %3669
          %v3671 = vmax.f32 %v3534, %v3536
          %3672 = vmax.xlane.f32.xlu0 %v3671
          %v3673 = vpop.xlane.xlu0 %3672
          %v3674 = vmax.f32 %v3540, %v3542
          %3675 = vmax.xlane.f32.xlu0 %v3674
          %v3676 = vpop.xlane.xlu0 %3675
          %v3677 = vmax.f32 %v3544, %v3546
          %3678 = vmax.xlane.f32.xlu0 %v3677
          %v3679 = vpop.xlane.xlu0 %3678
          %v3680 = vmax.f32 %v3550, %v3552
          %3681 = vmax.xlane.f32.xlu0 %v3680
          %v3682 = vpop.xlane.xlu0 %3681
          %v3683 = vmax.f32 %v3554, %v3556
          %3684 = vmax.xlane.f32.xlu0 %v3683
          %v3685 = vpop.xlane.xlu0 %3684
          %v3686 = vmax.f32 %v3560, %v3562
          %3687 = vmax.xlane.f32.xlu0 %v3686
          %v3688 = vpop.xlane.xlu0 %3687
          %v3689 = vmax.f32 %v3564, %v3566
          %3690 = vmax.xlane.f32.xlu0 %v3689
          %v3691 = vpop.xlane.xlu0 %3690
          %v3692 = vmax.f32 %v3570, %v3572
          %3693 = vmax.xlane.f32.xlu0 %v3692
          %v3694 = vpop.xlane.xlu0 %3693
          %v3695 = vmax.f32 %v3574, %v3576
          %3696 = vmax.xlane.f32.xlu0 %v3695
          %v3697 = vpop.xlane.xlu0 %3696
          %v3698 = vmax.f32 %v3580, %v3582
          %3699 = vmax.xlane.f32.xlu0 %v3698
          %v3700 = vpop.xlane.xlu0 %3699
          %v3701 = vmax.f32 %v3584, %v3586
          %3702 = vmax.xlane.f32.xlu0 %v3701
          %v3703 = vpop.xlane.xlu0 %3702
          %v3704 = vmax.f32 %v3590, %v3592
          %3705 = vmax.xlane.f32.xlu0 %v3704
          %v3706 = vpop.xlane.xlu0 %3705
          %v3707 = vmax.f32 %v3594, %v3596
          %3708 = vmax.xlane.f32.xlu0 %v3707
          %v3709 = vpop.xlane.xlu0 %3708
          %v3710 = vmax.f32 %v3600, %v3602
          %3711 = vmax.xlane.f32.xlu0 %v3710
          %v3712 = vpop.xlane.xlu0 %3711
          %v3713 = vmax.f32 %v3604, %v3606
          %3714 = vmax.xlane.f32.xlu0 %v3713
          %v3715 = vpop.xlane.xlu0 %3714
          %v3716 = vmax.f32 %v3610, %v3612
          %3717 = vmax.xlane.f32.xlu0 %v3716
          %v3718 = vpop.xlane.xlu0 %3717
          %v3719 = vmax.f32 %v3614, %v3616
          %3720 = vmax.xlane.f32.xlu0 %v3719
          %v3721 = vpop.xlane.xlu0 %3720
          %v3722 = vmax.f32 %v3620, %v3622
          %3723 = vmax.xlane.f32.xlu0 %v3722
          %v3724 = vpop.xlane.xlu0 %3723
          %v3725 = vmax.f32 %v3624, %v3626
          %3726 = vmax.xlane.f32.xlu0 %v3725
          %v3727 = vpop.xlane.xlu0 %3726
          %v3728 = vmax.f32 %v3630, %v3632
          %3729 = vmax.xlane.f32.xlu0 %v3728
          %v3730 = vpop.xlane.xlu0 %3729
          %v3731 = vmax.f32 %v3634, %v3636
          %3732 = vmax.xlane.f32.xlu0 %v3731
          %v3733 = vpop.xlane.xlu0 %3732
          %v3734 = vsub.f32 %v3480, %v3640
          %v3735 = vsub.f32 %v3482, %v3640
          %v3736 = vsub.f32 %v3484, %v3643
          %v3737 = vsub.f32 %v3486, %v3643
          %v3738 = vsub.f32 %v3490, %v3646
          %v3739 = vsub.f32 %v3492, %v3646
          %v3740 = vsub.f32 %v3494, %v3649
          %v3741 = vsub.f32 %v3496, %v3649
          %v3742 = vsub.f32 %v3500, %v3652
          %v3743 = vsub.f32 %v3502, %v3652
          %v3744 = vsub.f32 %v3504, %v3655
          %v3745 = vsub.f32 %v3506, %v3655
          %v3746 = vsub.f32 %v3510, %v3658
          %v3747 = vsub.f32 %v3512, %v3658
          %v3748 = vsub.f32 %v3514, %v3661
          %v3749 = vsub.f32 %v3516, %v3661
          %v3750 = vsub.f32 %v3520, %v3664
          %v3751 = vsub.f32 %v3522, %v3664
          %v3752 = vsub.f32 %v3524, %v3667
          %v3753 = vsub.f32 %v3526, %v3667
          %v3754 = vsub.f32 %v3530, %v3670
          %v3755 = vsub.f32 %v3532, %v3670
          %v3756 = vsub.f32 %v3534, %v3673
          %v3757 = vsub.f32 %v3536, %v3673
          %v3758 = vsub.f32 %v3540, %v3676
          %v3759 = vsub.f32 %v3542, %v3676
          %v3760 = vsub.f32 %v3544, %v3679
          %v3761 = vsub.f32 %v3546, %v3679
          %v3762 = vsub.f32 %v3550, %v3682
          %v3763 = vsub.f32 %v3552, %v3682
          %v3764 = vsub.f32 %v3554, %v3685
          %v3765 = vsub.f32 %v3556, %v3685
          %v3766 = vsub.f32 %v3560, %v3688
          %v3767 = vsub.f32 %v3562, %v3688
          %v3768 = vsub.f32 %v3564, %v3691
          %v3769 = vsub.f32 %v3566, %v3691
          %v3770 = vsub.f32 %v3570, %v3694
          %v3771 = vsub.f32 %v3572, %v3694
          %v3772 = vsub.f32 %v3574, %v3697
          %v3773 = vsub.f32 %v3576, %v3697
          %v3774 = vsub.f32 %v3580, %v3700
          %v3775 = vsub.f32 %v3582, %v3700
          %v3776 = vsub.f32 %v3584, %v3703
          %v3777 = vsub.f32 %v3586, %v3703
          %v3778 = vsub.f32 %v3590, %v3706
          %v3779 = vsub.f32 %v3592, %v3706
          %v3780 = vsub.f32 %v3594, %v3709
          %v3781 = vsub.f32 %v3596, %v3709
          %v3782 = vsub.f32 %v3600, %v3712
          %v3783 = vsub.f32 %v3602, %v3712
          %v3784 = vsub.f32 %v3604, %v3715
          %v3785 = vsub.f32 %v3606, %v3715
          %v3786 = vsub.f32 %v3610, %v3718
          %v3787 = vsub.f32 %v3612, %v3718
          %v3788 = vsub.f32 %v3614, %v3721
          %v3789 = vsub.f32 %v3616, %v3721
          %v3790 = vsub.f32 %v3620, %v3724
          %v3791 = vsub.f32 %v3622, %v3724
          %v3792 = vsub.f32 %v3624, %v3727
          %v3793 = vsub.f32 %v3626, %v3727
          %v3794 = vsub.f32 %v3630, %v3730
          %v3795 = vsub.f32 %v3632, %v3730
          %v3796 = vsub.f32 %v3634, %v3733
          %v3797 = vsub.f32 %v3636, %v3733
          %v3798 = vmul.f32 %v3734, 1.442695
          %v3799 = vpow.pop %v3798
          %v3800 = vmul.f32 %v3735, 1.442695
          %v3801 = vpow.pop %v3800
          %v3802 = vmul.f32 %v3736, 1.442695
          %v3803 = vpow.pop %v3802
          %v3804 = vmul.f32 %v3737, 1.442695
          %v3805 = vpow.pop %v3804
          %v3806 = vmul.f32 %v3738, 1.442695
          %v3807 = vpow.pop %v3806
          %v3808 = vmul.f32 %v3739, 1.442695
          %v3809 = vpow.pop %v3808
          %v3810 = vmul.f32 %v3740, 1.442695
          %v3811 = vpow.pop %v3810
          %v3812 = vmul.f32 %v3741, 1.442695
          %v3813 = vpow.pop %v3812
          %v3814 = vmul.f32 %v3742, 1.442695
          %v3815 = vpow.pop %v3814
          %v3816 = vmul.f32 %v3743, 1.442695
          %v3817 = vpow.pop %v3816
          %v3818 = vmul.f32 %v3744, 1.442695
          %v3819 = vpow.pop %v3818
          %v3820 = vmul.f32 %v3745, 1.442695
          %v3821 = vpow.pop %v3820
          %v3822 = vmul.f32 %v3746, 1.442695
          %v3823 = vpow.pop %v3822
          %v3824 = vmul.f32 %v3747, 1.442695
          %v3825 = vpow.pop %v3824
          %v3826 = vmul.f32 %v3748, 1.442695
          %v3827 = vpow.pop %v3826
          %v3828 = vmul.f32 %v3749, 1.442695
          %v3829 = vpow.pop %v3828
          %v3830 = vmul.f32 %v3750, 1.442695
          %v3831 = vpow.pop %v3830
          %v3832 = vmul.f32 %v3751, 1.442695
          %v3833 = vpow.pop %v3832
          %v3834 = vmul.f32 %v3752, 1.442695
          %v3835 = vpow.pop %v3834
          %v3836 = vmul.f32 %v3753, 1.442695
          %v3837 = vpow.pop %v3836
          %v3838 = vmul.f32 %v3754, 1.442695
          %v3839 = vpow.pop %v3838
          %v3840 = vmul.f32 %v3755, 1.442695
          %v3841 = vpow.pop %v3840
          %v3842 = vmul.f32 %v3756, 1.442695
          %v3843 = vpow.pop %v3842
          %v3844 = vmul.f32 %v3757, 1.442695
          %v3845 = vpow.pop %v3844
          %v3846 = vmul.f32 %v3758, 1.442695
          %v3847 = vpow.pop %v3846
          %v3848 = vmul.f32 %v3759, 1.442695
          %v3849 = vpow.pop %v3848
          %v3850 = vmul.f32 %v3760, 1.442695
          %v3851 = vpow.pop %v3850
          %v3852 = vmul.f32 %v3761, 1.442695
          %v3853 = vpow.pop %v3852
          %v3854 = vmul.f32 %v3762, 1.442695
          %v3855 = vpow.pop %v3854
          %v3856 = vmul.f32 %v3763, 1.442695
          %v3857 = vpow.pop %v3856
          %v3858 = vmul.f32 %v3764, 1.442695
          %v3859 = vpow.pop %v3858
          %v3860 = vmul.f32 %v3765, 1.442695
          %v3861 = vpow.pop %v3860
          %v3862 = vmul.f32 %v3766, 1.442695
          %v3863 = vpow.pop %v3862
          %v3864 = vmul.f32 %v3767, 1.442695
          %v3865 = vpow.pop %v3864
          %v3866 = vmul.f32 %v3768, 1.442695
          %v3867 = vpow.pop %v3866
          %v3868 = vmul.f32 %v3769, 1.442695
          %v3869 = vpow.pop %v3868
          %v3870 = vmul.f32 %v3770, 1.442695
          %v3871 = vpow.pop %v3870
          %v3872 = vmul.f32 %v3771, 1.442695
          %v3873 = vpow.pop %v3872
          %v3874 = vmul.f32 %v3772, 1.442695
          %v3875 = vpow.pop %v3874
          %v3876 = vmul.f32 %v3773, 1.442695
          %v3877 = vpow.pop %v3876
          %v3878 = vmul.f32 %v3774, 1.442695
          %v3879 = vpow.pop %v3878
          %v3880 = vmul.f32 %v3775, 1.442695
          %v3881 = vpow.pop %v3880
          %v3882 = vmul.f32 %v3776, 1.442695
          %v3883 = vpow.pop %v3882
          %v3884 = vmul.f32 %v3777, 1.442695
          %v3885 = vpow.pop %v3884
          %v3886 = vmul.f32 %v3778, 1.442695
          %v3887 = vpow.pop %v3886
          %v3888 = vmul.f32 %v3779, 1.442695
          %v3889 = vpow.pop %v3888
          %v3890 = vmul.f32 %v3780, 1.442695
          %v3891 = vpow.pop %v3890
          %v3892 = vmul.f32 %v3781, 1.442695
          %v3893 = vpow.pop %v3892
          %v3894 = vmul.f32 %v3782, 1.442695
          %v3895 = vpow.pop %v3894
          %v3896 = vmul.f32 %v3783, 1.442695
          %v3897 = vpow.pop %v3896
          %v3898 = vmul.f32 %v3784, 1.442695
          %v3899 = vpow.pop %v3898
          %v3900 = vmul.f32 %v3785, 1.442695
          %v3901 = vpow.pop %v3900
          %v3902 = vmul.f32 %v3786, 1.442695
          %v3903 = vpow.pop %v3902
          %v3904 = vmul.f32 %v3787, 1.442695
          %v3905 = vpow.pop %v3904
          %v3906 = vmul.f32 %v3788, 1.442695
          %v3907 = vpow.pop %v3906
          %v3908 = vmul.f32 %v3789, 1.442695
          %v3909 = vpow.pop %v3908
          %v3910 = vmul.f32 %v3790, 1.442695
          %v3911 = vpow.pop %v3910
          %v3912 = vmul.f32 %v3791, 1.442695
          %v3913 = vpow.pop %v3912
          %v3914 = vmul.f32 %v3792, 1.442695
          %v3915 = vpow.pop %v3914
          %v3916 = vmul.f32 %v3793, 1.442695
          %v3917 = vpow.pop %v3916
          %v3918 = vmul.f32 %v3794, 1.442695
          %v3919 = vpow.pop %v3918
          %v3920 = vmul.f32 %v3795, 1.442695
          %v3921 = vpow.pop %v3920
          %v3922 = vmul.f32 %v3796, 1.442695
          %v3923 = vpow.pop %v3922
          %v3924 = vmul.f32 %v3797, 1.442695
          %v3925 = vpow.pop %v3924
          %v3926 = vadd.f32 %v3799, %v3801
          %3927 = vadd.xlane.f32.xlu0 %v3926
          %v3928 = vpop.xlane.xlu0 %3927
          %v3929 = vadd.f32 %v3803, %v3805
          %3930 = vadd.xlane.f32.xlu0 %v3929
          %v3931 = vpop.xlane.xlu0 %3930
          %v3932 = vadd.f32 %v3807, %v3809
          %3933 = vadd.xlane.f32.xlu0 %v3932
          %v3934 = vpop.xlane.xlu0 %3933
          %v3935 = vadd.f32 %v3811, %v3813
          %3936 = vadd.xlane.f32.xlu0 %v3935
          %v3937 = vpop.xlane.xlu0 %3936
          %v3938 = vadd.f32 %v3815, %v3817
          %3939 = vadd.xlane.f32.xlu0 %v3938
          %v3940 = vpop.xlane.xlu0 %3939
          %v3941 = vadd.f32 %v3819, %v3821
          %3942 = vadd.xlane.f32.xlu0 %v3941
          %v3943 = vpop.xlane.xlu0 %3942
          %v3944 = vadd.f32 %v3823, %v3825
          %3945 = vadd.xlane.f32.xlu0 %v3944
          %v3946 = vpop.xlane.xlu0 %3945
          %v3947 = vadd.f32 %v3827, %v3829
          %3948 = vadd.xlane.f32.xlu0 %v3947
          %v3949 = vpop.xlane.xlu0 %3948
          %v3950 = vadd.f32 %v3831, %v3833
          %3951 = vadd.xlane.f32.xlu0 %v3950
          %v3952 = vpop.xlane.xlu0 %3951
          %v3953 = vadd.f32 %v3835, %v3837
          %3954 = vadd.xlane.f32.xlu0 %v3953
          %v3955 = vpop.xlane.xlu0 %3954
          %v3956 = vadd.f32 %v3839, %v3841
          %3957 = vadd.xlane.f32.xlu0 %v3956
          %v3958 = vpop.xlane.xlu0 %3957
          %v3959 = vadd.f32 %v3843, %v3845
          %3960 = vadd.xlane.f32.xlu0 %v3959
          %v3961 = vpop.xlane.xlu0 %3960
          %v3962 = vadd.f32 %v3847, %v3849
          %3963 = vadd.xlane.f32.xlu0 %v3962
          %v3964 = vpop.xlane.xlu0 %3963
          %v3965 = vadd.f32 %v3851, %v3853
          %3966 = vadd.xlane.f32.xlu0 %v3965
          %v3967 = vpop.xlane.xlu0 %3966
          %v3968 = vadd.f32 %v3855, %v3857
          %3969 = vadd.xlane.f32.xlu0 %v3968
          %v3970 = vpop.xlane.xlu0 %3969
          %v3971 = vadd.f32 %v3859, %v3861
          %3972 = vadd.xlane.f32.xlu0 %v3971
          %v3973 = vpop.xlane.xlu0 %3972
          %v3974 = vadd.f32 %v3863, %v3865
          %3975 = vadd.xlane.f32.xlu0 %v3974
          %v3976 = vpop.xlane.xlu0 %3975
          %v3977 = vadd.f32 %v3867, %v3869
          %3978 = vadd.xlane.f32.xlu0 %v3977
          %v3979 = vpop.xlane.xlu0 %3978
          %v3980 = vadd.f32 %v3871, %v3873
          %3981 = vadd.xlane.f32.xlu0 %v3980
          %v3982 = vpop.xlane.xlu0 %3981
          %v3983 = vadd.f32 %v3875, %v3877
          %3984 = vadd.xlane.f32.xlu0 %v3983
          %v3985 = vpop.xlane.xlu0 %3984
          %v3986 = vadd.f32 %v3879, %v3881
          %3987 = vadd.xlane.f32.xlu0 %v3986
          %v3988 = vpop.xlane.xlu0 %3987
          %v3989 = vadd.f32 %v3883, %v3885
          %3990 = vadd.xlane.f32.xlu0 %v3989
          %v3991 = vpop.xlane.xlu0 %3990
          %v3992 = vadd.f32 %v3887, %v3889
          %3993 = vadd.xlane.f32.xlu0 %v3992
          %v3994 = vpop.xlane.xlu0 %3993
          %v3995 = vadd.f32 %v3891, %v3893
          %3996 = vadd.xlane.f32.xlu0 %v3995
          %v3997 = vpop.xlane.xlu0 %3996
          %v3998 = vadd.f32 %v3895, %v3897
          %3999 = vadd.xlane.f32.xlu0 %v3998
          %v4000 = vpop.xlane.xlu0 %3999
          %v4001 = vadd.f32 %v3899, %v3901
          %4002 = vadd.xlane.f32.xlu0 %v4001
          %v4003 = vpop.xlane.xlu0 %4002
          %v4004 = vadd.f32 %v3903, %v3905
          %4005 = vadd.xlane.f32.xlu0 %v4004
          %v4006 = vpop.xlane.xlu0 %4005
          %v4007 = vadd.f32 %v3907, %v3909
          %4008 = vadd.xlane.f32.xlu0 %v4007
          %v4009 = vpop.xlane.xlu0 %4008
          %v4010 = vadd.f32 %v3911, %v3913
          %4011 = vadd.xlane.f32.xlu0 %v4010
          %v4012 = vpop.xlane.xlu0 %4011
          %v4013 = vadd.f32 %v3915, %v3917
          %4014 = vadd.xlane.f32.xlu0 %v4013
          %v4015 = vpop.xlane.xlu0 %4014
          %v4016 = vadd.f32 %v3919, %v3921
          %4017 = vadd.xlane.f32.xlu0 %v4016
          %v4018 = vpop.xlane.xlu0 %4017
          %v4019 = vadd.f32 %v3923, %v3925
          %4020 = vadd.xlane.f32.xlu0 %v4019
          %v4021 = vpop.xlane.xlu0 %4020
          %v4022 = vrcp.pop %v3928
          %v4023 = vrcp.pop %v3931
          %v4024 = vrcp.pop %v3934
          %v4025 = vrcp.pop %v3937
          %v4026 = vrcp.pop %v3940
          %v4027 = vrcp.pop %v3943
          %v4028 = vrcp.pop %v3946
          %v4029 = vrcp.pop %v3949
          %v4030 = vrcp.pop %v3952
          %v4031 = vrcp.pop %v3955
          %v4032 = vrcp.pop %v3958
          %v4033 = vrcp.pop %v3961
          %v4034 = vrcp.pop %v3964
          %v4035 = vrcp.pop %v3967
          %v4036 = vrcp.pop %v3970
          %v4037 = vrcp.pop %v3973
          %v4038 = vrcp.pop %v3976
          %v4039 = vrcp.pop %v3979
          %v4040 = vrcp.pop %v3982
          %v4041 = vrcp.pop %v3985
          %v4042 = vrcp.pop %v3988
          %v4043 = vrcp.pop %v3991
          %v4044 = vrcp.pop %v3994
          %v4045 = vrcp.pop %v3997
          %v4046 = vrcp.pop %v4000
          %v4047 = vrcp.pop %v4003
          %v4048 = vrcp.pop %v4006
          %v4049 = vrcp.pop %v4009
          %v4050 = vrcp.pop %v4012
          %v4051 = vrcp.pop %v4015
          %v4052 = vrcp.pop %v4018
          %v4053 = vrcp.pop %v4021
          %v4054 = vmul.f32 %v3799, %v4022
          %v4055 = vmul.f32 %v3801, %v4022
          %v4056 = vmul.f32 %v3803, %v4023
          %v4057 = vmul.f32 %v3805, %v4023
          %v4058 = vmul.f32 %v3807, %v4024
          %v4059 = vmul.f32 %v3809, %v4024
          %v4060 = vmul.f32 %v3811, %v4025
          %v4061 = vmul.f32 %v3813, %v4025
          %v4062 = vmul.f32 %v3815, %v4026
          %v4063 = vmul.f32 %v3817, %v4026
          %v4064 = vmul.f32 %v3819, %v4027
          %v4065 = vmul.f32 %v3821, %v4027
          %v4066 = vmul.f32 %v3823, %v4028
          %v4067 = vmul.f32 %v3825, %v4028
          %v4068 = vmul.f32 %v3827, %v4029
          %v4069 = vmul.f32 %v3829, %v4029
          %v4070 = vmul.f32 %v3831, %v4030
          %v4071 = vmul.f32 %v3833, %v4030
          %v4072 = vmul.f32 %v3835, %v4031
          %v4073 = vmul.f32 %v3837, %v4031
          %v4074 = vmul.f32 %v3839, %v4032
          %v4075 = vmul.f32 %v3841, %v4032
          %v4076 = vmul.f32 %v3843, %v4033
          %v4077 = vmul.f32 %v3845, %v4033
          %v4078 = vmul.f32 %v3847, %v4034
          %v4079 = vmul.f32 %v3849, %v4034
          %v4080 = vmul.f32 %v3851, %v4035
          %v4081 = vmul.f32 %v3853, %v4035
          %v4082 = vmul.f32 %v3855, %v4036
          %v4083 = vmul.f32 %v3857, %v4036
          %v4084 = vmul.f32 %v3859, %v4037
          %v4085 = vmul.f32 %v3861, %v4037
          %v4086 = vmul.f32 %v3863, %v4038
          %v4087 = vmul.f32 %v3865, %v4038
          %v4088 = vmul.f32 %v3867, %v4039
          %v4089 = vmul.f32 %v3869, %v4039
          %v4090 = vmul.f32 %v3871, %v4040
          %v4091 = vmul.f32 %v3873, %v4040
          %v4092 = vmul.f32 %v3875, %v4041
          %v4093 = vmul.f32 %v3877, %v4041
          %v4094 = vmul.f32 %v3879, %v4042
          %v4095 = vmul.f32 %v3881, %v4042
          %v4096 = vmul.f32 %v3883, %v4043
          %v4097 = vmul.f32 %v3885, %v4043
          %v4098 = vmul.f32 %v3887, %v4044
          %v4099 = vmul.f32 %v3889, %v4044
          %v4100 = vmul.f32 %v3891, %v4045
          %v4101 = vmul.f32 %v3893, %v4045
          %v4102 = vmul.f32 %v3895, %v4046
          %v4103 = vmul.f32 %v3897, %v4046
          %v4104 = vmul.f32 %v3899, %v4047
          %v4105 = vmul.f32 %v3901, %v4047
          %v4106 = vmul.f32 %v3903, %v4048
          %v4107 = vmul.f32 %v3905, %v4048
          %v4108 = vmul.f32 %v3907, %v4049
          %v4109 = vmul.f32 %v3909, %v4049
          %v4110 = vmul.f32 %v3911, %v4050
          %v4111 = vmul.f32 %v3913, %v4050
          %v4112 = vmul.f32 %v3915, %v4051
          %v4113 = vmul.f32 %v3917, %v4051
          %v4114 = vmul.f32 %v3919, %v4052
          %v4115 = vmul.f32 %v3921, %v4052
          %v4116 = vmul.f32 %v3923, %v4053
          %v4117 = vmul.f32 %v3925, %v4053
          %v4118 = vpack.c.bf16 %v4056, %v4054
          %v4119 = vpack.c.bf16 %v4057, %v4055
          %v4120 = vpack.c.bf16 %v4060, %v4058
          %v4121 = vpack.c.bf16 %v4061, %v4059
          %v4122 = vpack.c.bf16 %v4064, %v4062
          %v4123 = vpack.c.bf16 %v4065, %v4063
          %v4124 = vpack.c.bf16 %v4068, %v4066
          %v4125 = vpack.c.bf16 %v4069, %v4067
          %v4126 = vpack.c.bf16 %v4072, %v4070
          %v4127 = vpack.c.bf16 %v4073, %v4071
          %v4128 = vpack.c.bf16 %v4076, %v4074
          %v4129 = vpack.c.bf16 %v4077, %v4075
          %v4130 = vpack.c.bf16 %v4080, %v4078
          %v4131 = vpack.c.bf16 %v4081, %v4079
          %v4132 = vpack.c.bf16 %v4084, %v4082
          %v4133 = vpack.c.bf16 %v4085, %v4083
          %v4134 = vpack.c.bf16 %v4088, %v4086
          %v4135 = vpack.c.bf16 %v4089, %v4087
          %v4136 = vpack.c.bf16 %v4092, %v4090
          %v4137 = vpack.c.bf16 %v4093, %v4091
          %v4138 = vpack.c.bf16 %v4096, %v4094
          %v4139 = vpack.c.bf16 %v4097, %v4095
          %v4140 = vpack.c.bf16 %v4100, %v4098
          %v4141 = vpack.c.bf16 %v4101, %v4099
          %v4142 = vpack.c.bf16 %v4104, %v4102
          %v4143 = vpack.c.bf16 %v4105, %v4103
          %v4144 = vpack.c.bf16 %v4108, %v4106
          %v4145 = vpack.c.bf16 %v4109, %v4107
          %v4146 = vpack.c.bf16 %v4112, %v4110
          %v4147 = vpack.c.bf16 %v4113, %v4111
          %v4148 = vpack.c.bf16 %v4116, %v4114
          %v4149 = vpack.c.bf16 %v4117, %v4115
          %4150 = vmatprep.subr.bf16.mxu0 %v4119
          %4151 = vmatpush1.bf16.xpose.msra.mxu0 %v4118
          %4152 = vmatprep.subr.bf16.mxu0 %v4121
          %4153 = vmatpush1.bf16.xpose.msra.mxu0 %v4120
          %4154 = vmatprep.subr.bf16.mxu0 %v4123
          %4155 = vmatpush1.bf16.xpose.msra.mxu0 %v4122
          %4156 = vmatprep.subr.bf16.mxu0 %v4125
          %4157 = vmatpush1.bf16.xpose.msra.mxu0 %v4124
          %4158 = vmatprep.subr.bf16.mxu0 %v4127
          %4159 = vmatpush1.bf16.xpose.msra.mxu0 %v4126
          %4160 = vmatprep.subr.bf16.mxu0 %v4129
          %4161 = vmatpush1.bf16.xpose.msra.mxu0 %v4128
          %4162 = vmatprep.subr.bf16.mxu0 %v4131
          %4163 = vmatpush1.bf16.xpose.msra.mxu0 %v4130
          %4164 = vmatprep.subr.bf16.mxu0 %v4133
          %4165 = vmatpush1.bf16.xpose.msra.mxu0 %v4132
          %4166 = vmatprep.subr.bf16.mxu0 %v4135
          %4167 = vmatpush1.bf16.xpose.msra.mxu0 %v4134
          %4168 = vmatprep.subr.bf16.mxu0 %v4137
          %4169 = vmatpush1.bf16.xpose.msra.mxu0 %v4136
          %4170 = vmatprep.subr.bf16.mxu0 %v4139
          %4171 = vmatpush1.bf16.xpose.msra.mxu0 %v4138
          %4172 = vmatprep.subr.bf16.mxu0 %v4141
          %4173 = vmatpush1.bf16.xpose.msra.mxu0 %v4140
          %4174 = vmatprep.subr.bf16.mxu0 %v4143
          %4175 = vmatpush1.bf16.xpose.msra.mxu0 %v4142
          %4176 = vmatprep.subr.bf16.mxu0 %v4145
          %4177 = vmatpush1.bf16.xpose.msra.mxu0 %v4144
          %4178 = vmatprep.subr.bf16.mxu0 %v4147
          %4179 = vmatpush1.bf16.xpose.msra.mxu0 %v4146
          %4180 = vmatprep.subr.bf16.mxu0 %v4149
          %4181 = vmatpush1.bf16.xpose.msra.mxu0 %v4148
          %4182 = vmatprep.mubr.bf16.mxu0 %v3364
          %4183 = vmatmul.mubr.bf16.gmra.mrb[0].mxu0 %v3363
          %v4184 = vpop.f32.mrb[0].mxu0
          %v4185 = vadd.f32 0.0, %v4184
          %v4186 = vpop.f32.mrb[0].mxu0
          %v4187 = vadd.f32 0.0, %v4186
          %v4188 = vpop.f32.mrb[0].mxu0
          %v4189 = vadd.f32 0.0, %v4188
          %v4190 = vpop.f32.mrb[0].mxu0
          %v4191 = vadd.f32 0.0, %v4190
          %4192 = vdwg.mxu0
          %v4193 = vpack.c.bf16 %v4189, %v4185
          %v4194 = vpack.c.bf16 %v4191, %v4187
          %s4195 = smul.addr %s3350, 8
          %s4196 = scalar_lea.vmem [#allocation3], %s4195
          %4197 = vst [vmem:[%s4196] sm:$0xff] %v4193
          %4198 = vst [vmem:[%s4196 + $0x8] sm:$0xff] %v4194
          %v4199 = vld [vmem:[#allocation3] sm:$0xff]
          %v4200 = vld [vmem:[#allocation3 + $0x8] sm:$0xff]
          %v4201 = vld [vmem:[#allocation3 + $0x10] sm:$0xff]
          %v4202 = vld [vmem:[#allocation3 + $0x18] sm:$0xff]
          %v4203 = vld [vmem:[#allocation3 + $0x20] sm:$0xff]
          %v4204 = vld [vmem:[#allocation3 + $0x28] sm:$0xff]
          %v4205 = vld [vmem:[#allocation3 + $0x30] sm:$0xff]
          %v4206 = vld [vmem:[#allocation3 + $0x38] sm:$0xff]
          %v4207 = vld [vmem:[%s479] sm:$0xff]
          %v4208 = vld [vmem:[%s479 + $0x8] sm:$0xff]
          %v4209 = vld [vmem:[%s479 + $0x10] sm:$0xff]
          %v4210 = vld [vmem:[%s479 + $0x18] sm:$0xff]
          %v4211 = vld [vmem:[%s479 + $0x20] sm:$0xff]
          %v4212 = vld [vmem:[%s479 + $0x28] sm:$0xff]
          %v4213 = vld [vmem:[%s479 + $0x30] sm:$0xff]
          %v4214 = vld [vmem:[%s479 + $0x38] sm:$0xff]
          %v4215 = vld [vmem:[%s479 + $0x40] sm:$0xff]
          %v4216 = vld [vmem:[%s479 + $0x48] sm:$0xff]
          %v4217 = vld [vmem:[%s479 + $0x50] sm:$0xff]
          %v4218 = vld [vmem:[%s479 + $0x58] sm:$0xff]
          %v4219 = vld [vmem:[%s479 + $0x60] sm:$0xff]
          %v4220 = vld [vmem:[%s479 + $0x68] sm:$0xff]
          %v4221 = vld [vmem:[%s479 + $0x70] sm:$0xff]
          %v4222 = vld [vmem:[%s479 + $0x78] sm:$0xff]
          %v4231 = vunpack.c.l.b16 %v271
          %v4232 = vunpack.c.l.b16 %v272
          %v4233 = vunpack.c.l.b16 %v273
          %v4234 = vunpack.c.l.b16 %v274
          %v4235 = vunpack.c.l.b16 %v275
          %v4236 = vunpack.c.l.b16 %v276
          %v4237 = vunpack.c.l.b16 %v277
          %v4238 = vunpack.c.l.b16 %v278
          %v4239 = vpack.c.b16 %v4232, %v4231
          %v4240 = vpack.c.b16 %v4234, %v4233
          %v4241 = vpack.c.b16 %v4236, %v4235
          %v4242 = vpack.c.b16 %v4238, %v4237
          %v4244 = vsel %vm564, %v4239, 0
          %v4247 = vsel %vm564, %v4240, 0
          %v4250 = vsel %vm564, %v4241, 0
          %v4253 = vsel %vm564, %v4242, 0
          %4255 = vmatprep.subr.bf16.mxu0 %v4200
          %4256 = vmatpush1.bf16.msra.mxu0 %v4199
          %4257 = vmatprep.subr.bf16.mxu0 %v4202
          %4258 = vmatpush1.bf16.msra.mxu0 %v4201
          %4259 = vmatprep.subr.bf16.mxu0 %v4204
          %4260 = vmatpush1.bf16.msra.mxu0 %v4203
          %4261 = vmatprep.subr.bf16.mxu0 %v4206
          %4262 = vmatpush1.bf16.msra.mxu0 %v4205
          %4263 = vmatprep.subr.bf16.mxu0 0
          %4264 = vmatpush1.bf16.msra.mxu0 0
          %4265 = vmatprep.subr.bf16.mxu0 0
          %4266 = vmatpush1.bf16.msra.mxu0 0
          %4267 = vmatprep.subr.bf16.mxu0 0
          %4268 = vmatpush1.bf16.msra.mxu0 0
          %4269 = vmatprep.subr.bf16.mxu0 0
          %4270 = vmatpush1.bf16.msra.mxu0 0
          %4271 = vmatprep.subr.bf16.mxu0 0
          %4272 = vmatpush1.bf16.msra.mxu0 0
          %4273 = vmatprep.subr.bf16.mxu0 0
          %4274 = vmatpush1.bf16.msra.mxu0 0
          %4275 = vmatprep.subr.bf16.mxu0 0
          %4276 = vmatpush1.bf16.msra.mxu0 0
          %4277 = vmatprep.subr.bf16.mxu0 0
          %4278 = vmatpush1.bf16.msra.mxu0 0
          %4279 = vmatprep.subr.bf16.mxu0 0
          %4280 = vmatpush1.bf16.msra.mxu0 0
          %4281 = vmatprep.subr.bf16.mxu0 0
          %4282 = vmatpush1.bf16.msra.mxu0 0
          %4283 = vmatprep.subr.bf16.mxu0 0
          %4284 = vmatpush1.bf16.msra.mxu0 0
          %4285 = vmatprep.subr.bf16.mxu0 0
          %4286 = vmatpush1.bf16.msra.mxu0 0
          %4287 = vmatprep.mubr.bf16.mxu0 0
          %4288 = vmatmul.mubr.bf16.gmra.mrb[0].mxu0 %v4244
          %v4289 = vpop.f32.mrb[0].mxu0
          %v4290 = vadd.f32 %v434, %v4289
          %v4291 = vpop.f32.mrb[0].mxu0
          %v4292 = vadd.f32 %v434, %v4291
          %v4293 = vpop.f32.mrb[0].mxu0
          %v4294 = vadd.f32 %v439, %v4293
          %v4295 = vpop.f32.mrb[0].mxu0
          %v4296 = vadd.f32 %v439, %v4295
          %4297 = vmatprep.mubr.bf16.mxu0 0
          %4298 = vmatmul.mubr.bf16.gmra.mrb[0].mxu0 %v4247
          %v4299 = vpop.f32.mrb[0].mxu0
          %v4300 = vadd.f32 %v444, %v4299
          %v4301 = vpop.f32.mrb[0].mxu0
          %v4302 = vadd.f32 %v444, %v4301
          %v4303 = vpop.f32.mrb[0].mxu0
          %v4304 = vadd.f32 %v449, %v4303
          %v4305 = vpop.f32.mrb[0].mxu0
          %v4306 = vadd.f32 %v449, %v4305
          %4307 = vmatprep.mubr.bf16.mxu0 0
          %4308 = vmatmul.mubr.bf16.gmra.mrb[0].mxu0 %v4250
          %v4309 = vpop.f32.mrb[0].mxu0
          %v4310 = vadd.f32 %v454, %v4309
          %v4311 = vpop.f32.mrb[0].mxu0
          %v4312 = vadd.f32 %v454, %v4311
          %v4313 = vpop.f32.mrb[0].mxu0
          %v4314 = vadd.f32 %v459, %v4313
          %v4315 = vpop.f32.mrb[0].mxu0
          %v4316 = vadd.f32 %v459, %v4315
          %4317 = vmatprep.mubr.bf16.mxu0 0
          %4318 = vmatmul.mubr.bf16.gmra.mrb[0].mxu0 %v4253
          %v4319 = vpop.f32.mrb[0].mxu0
          %v4320 = vadd.f32 %v464, %v4319
          %v4321 = vpop.f32.mrb[0].mxu0
          %v4322 = vadd.f32 %v464, %v4321
          %v4323 = vpop.f32.mrb[0].mxu0
          %v4324 = vadd.f32 %v469, %v4323
          %v4325 = vpop.f32.mrb[0].mxu0
          %v4326 = vadd.f32 %v469, %v4325
          %4327 = vdwg.mxu0
          %v4328 = vadd.f32 %v4207, %v4290
          %v4329 = vadd.f32 %v4208, %v4292
          %v4330 = vadd.f32 %v4209, %v4294
          %v4331 = vadd.f32 %v4210, %v4296
          %v4332 = vadd.f32 %v4211, %v4300
          %v4333 = vadd.f32 %v4212, %v4302
          %v4334 = vadd.f32 %v4213, %v4304
          %v4335 = vadd.f32 %v4214, %v4306
          %v4336 = vadd.f32 %v4215, %v4310
          %v4337 = vadd.f32 %v4216, %v4312
          %v4338 = vadd.f32 %v4217, %v4314
          %v4339 = vadd.f32 %v4218, %v4316
          %v4340 = vadd.f32 %v4219, %v4320
          %v4341 = vadd.f32 %v4220, %v4322
          %v4342 = vadd.f32 %v4221, %v4324
          %v4343 = vadd.f32 %v4222, %v4326
          %s4344 = smul.addr %s477, 8
          %s4345 = scalar_lea.vmem %s243, %s4344 [#allocation7]
          %4346 = vst [vmem:[%s4345] sm:$0xff] %v4328
          %4347 = vst [vmem:[%s4345 + $0x8] sm:$0xff] %v4329
          %4348 = vst [vmem:[%s4345 + $0x10] sm:$0xff] %v4330
          %4349 = vst [vmem:[%s4345 + $0x18] sm:$0xff] %v4331
          %4350 = vst [vmem:[%s4345 + $0x20] sm:$0xff] %v4332
          %4351 = vst [vmem:[%s4345 + $0x28] sm:$0xff] %v4333
          %4352 = vst [vmem:[%s4345 + $0x30] sm:$0xff] %v4334
          %4353 = vst [vmem:[%s4345 + $0x38] sm:$0xff] %v4335
          %4354 = vst [vmem:[%s4345 + $0x40] sm:$0xff] %v4336
          %4355 = vst [vmem:[%s4345 + $0x48] sm:$0xff] %v4337
          %4356 = vst [vmem:[%s4345 + $0x50] sm:$0xff] %v4338
          %4357 = vst [vmem:[%s4345 + $0x58] sm:$0xff] %v4339
          %4358 = vst [vmem:[%s4345 + $0x60] sm:$0xff] %v4340
          %4359 = vst [vmem:[%s4345 + $0x68] sm:$0xff] %v4341
          %4360 = vst [vmem:[%s4345 + $0x70] sm:$0xff] %v4342
          %4361 = vst [vmem:[%s4345 + $0x78] sm:$0xff] %v4343
        $region49: #{tpu_custom_call.1} parent=39 // loop_footer
          %s476 = sadd.s32 1, %s472
        $region50: #{tpu_custom_call.1} parent=39 // loop_footer_branch
          %471 = sbr.rel target = $region46
        $region51: #{tpu_custom_call.1} parent=39 // loop_exit
          _
        %s4362 = sand.u32 %s140, 1
        %s4363 = scalar_lea.sflag [#allocation6], %s4362
        %s4364 = sand.u32 %s140, 1
        %s4365 = smul.addr %s4364, 256
        %s4366 = scalar_lea.vmem [#allocation7], %s4365
        // Predicated region
        $region52: #{tpu_custom_call.1} parent=39 // pred_check
          %p4367 = pneg %p150
        $region53: #{tpu_custom_call.1} parent=39 // pred_check_branch
          %4369 = sbr.rel (%p4367) target = $region55
        $region54: #{tpu_custom_call.1} parent=39 // pred_region
          %s4370 = smul.u32 2, %s22
          %s4372 = ssub.s32 4096, 4096
          %4373 = vsyncadd %s4363, %s4372
          %s4374 = smul.addr %s4370, 16
          %s4375 = smul.addr %s4374, 128
          %s4376 = scalar_lea.hbm %s5, %s4375
          %s4377 = sshll.u32 %s4366, 4
          %s4378 = int_to_ptr.vmem [resolvable:$true] %s4377
          %4383 = dma.vmem_to_hbm [thread:$0]  %s4378, 4096, %s4376, %s4363, 256, 256, 16
        $region55: #{tpu_custom_call.1} parent=39 // pred_fallthru
          _
      $region40: #{tpu_custom_call.1} parent=5 // pred_fallthru
        _
      %p4384 = scmp.le.s32.totalorder 2, %s17
      // Predicated region
      $region56: #{tpu_custom_call.1} parent=5 // pred_check
        %p4385 = pneg %p4384
      $region57: #{tpu_custom_call.1} parent=5 // pred_check_branch
        %4387 = sbr.rel (%p4385) target = $region59
      $region58: #{tpu_custom_call.1} parent=5 // pred_region
        %s4388 = ssub.s32 %s17, 2
        // Predicated region
        $region60: #{tpu_custom_call.1} parent=58 // pred_check
          %p4389 = pneg %p156
        $region61: #{tpu_custom_call.1} parent=58 // pred_check_branch
          %4391 = sbr.rel (%p4389) target = $region63
        $region62: #{tpu_custom_call.1} parent=58 // pred_region
          %s4392 = sand.u32 %s141, 1
          %s4393 = scalar_lea.sflag [#allocation6], %s4392
          %s4394 = sand.u32 %s141, 1
          %s4395 = smul.addr %s4394, 256
          %s4396 = scalar_lea.vmem [#allocation7], %s4395
          %4397 = dma.done %s4393, 4096
        $region63: #{tpu_custom_call.1} parent=58 // pred_fallthru
          _
      $region59: #{tpu_custom_call.1} parent=5 // pred_fallthru
        _
    $region6: #{tpu_custom_call.1} parent=1 // loop_footer
      %s21 = sadd.s32 1, %s17
    $region7: #{tpu_custom_call.1} parent=1 // loop_footer_branch
      %16 = sbr.rel target = $region3
    $region8: #{tpu_custom_call.1} parent=1 // loop_exit
      _
    %4398 = vsyncpa [#allocation5], 1
    %s4399 = scalar_lea.sflag [#allocation5], 1
    %4400 = vsyncpa %s4399, 1
    %4401 = vsyncpa [#allocation6], 1
    %s4402 = scalar_lea.sflag [#allocation6], 1
    %4403 = vsyncpa %s4402, 1

</llo_original>
